<compile_context>
chip_gen: v5e
topology: v5e:2x2
jax: 0.10.0
libtpu: 0.0.40
codegen_flags: <defaults>
</compile_context>

<pallas_src>
import functools
import math

import jax
import jax.numpy as jnp
from jax.experimental import pallas as pl
from jax.experimental.pallas import tpu as pltpu


_PARAM_ORDER = ("ln1_g", "ln1_b", "wq", "bq", "wk", "bk", "wv", "bv",
                "wo", "bo", "ln2_g", "ln2_b", "w1", "b1", "w2", "b2")


def _layernorm(h, g, b, eps=1e-5):
    mu = jnp.mean(h, axis=-1, keepdims=True)
    var = jnp.mean((h - mu) ** 2, axis=-1, keepdims=True)
    return (h - mu) * jax.lax.rsqrt(var + eps) * g + b


def _activation(m, kind):
    if kind == "quick_gelu":                    # x * sigmoid(1.702 x) (HF CLIP-L)
        return m * jax.nn.sigmoid(1.702 * m)
    if kind == "gelu":                          # exact erf GELU (torch.nn.GELU)
        return 0.5 * m * (1.0 + jax.lax.erf(m * (1.0 / math.sqrt(2.0))))
    raise ValueError(f"unknown activation: {kind}")


# ----------------------------------------------------------------------------
# Kernel: one (batch_block, layer, mlp_chunk) grid step.
# ----------------------------------------------------------------------------
def clip_encoder_kernel(
    x_ref,
    ln1_g_ref, ln1_b_ref,
    wq_ref, bq_ref, wk_ref, bk_ref, wv_ref, bv_ref, wo_ref, bo_ref,
    ln2_g_ref, ln2_b_ref,
    w1_ref, b1_ref, w2_ref, b2_ref,
    out_ref, inter_ref,
    h2_scratch, y_acc,
    *, heads, causal, activation, inter_layer,
):
    bb, S, D = out_ref.shape
    dh = D // heads
    rows = bb * S
    f32 = jnp.float32
    bf16 = jnp.bfloat16

    l = pl.program_id(1)
    i = pl.program_id(2)
    n_i = pl.num_programs(2)

    # ---- residual stream init: copy the encoder input once per batch block --
    @pl.when(jnp.logical_and(l == 0, i == 0))
    def _():
        out_ref[...] = x_ref[...]

    # ---- attention + LN2 (first MLP chunk of every layer only) --------------
    @pl.when(i == 0)
    def _():
        x_res = out_ref[...].astype(f32).reshape(rows, D)
        h1 = _layernorm(x_res, ln1_g_ref[0], ln1_b_ref[0]).astype(bf16)

        # QKV projections: bf16 MXU operands, f32 accumulation.
        # 1/sqrt(dh) has been folded into wq / bq by the wrapper.
        q = jnp.dot(h1, wq_ref[0], preferred_element_type=f32) + bq_ref[0]
        k = jnp.dot(h1, wk_ref[0], preferred_element_type=f32) + bk_ref[0]
        v = jnp.dot(h1, wv_ref[0], preferred_element_type=f32) + bv_ref[0]
        q = q.astype(bf16).reshape(bb, S, heads, dh)
        k = k.astype(bf16).reshape(bb, S, heads, dh)
        v = v.astype(bf16).reshape(bb, S, heads, dh)

        if causal:
            r_idx = jax.lax.broadcasted_iota(jnp.int32, (S, S), 0)
            c_idx = jax.lax.broadcasted_iota(jnp.int32, (S, S), 1)
            keep = (c_idx <= r_idx)[None]                       # (1, S, S)

        # Attention per sequence inside the block (softmax must not mix
        # sequences); heads batched in one einsum pair per sequence.
        outs = []
        for b in range(bb):                                     # static unroll
            qh = jnp.transpose(q[b], (1, 0, 2))                 # (H, S, dh) bf16
            kh = jnp.transpose(k[b], (1, 0, 2))
            vh = jnp.transpose(v[b], (1, 0, 2))
            s = jnp.einsum("hqd,hkd->hqk", qh, kh,
                           preferred_element_type=f32)
            if causal:
                s = jnp.where(keep, s, -1e9)
            s = s - jnp.max(s, axis=-1, keepdims=True)
            p = jnp.exp(s)
            p = p * pl.reciprocal(jnp.sum(p, axis=-1, keepdims=True),
                                  approx=True)                  # EUP recip
            o = jnp.einsum("hqk,hkd->hqd", p.astype(bf16), vh,
                           preferred_element_type=f32).astype(bf16)
            outs.append(jnp.transpose(o, (1, 0, 2)).reshape(S, D))
        o_all = outs[0] if bb == 1 else jnp.concatenate(outs, axis=0)

        attn = jnp.dot(o_all, wo_ref[0], preferred_element_type=f32) + bo_ref[0]
        x1 = x_res + attn                                       # residual 1 (f32)
        out_ref[...] = x1.reshape(bb, S, D).astype(out_ref.dtype)

        h2 = _layernorm(x1, ln2_g_ref[0], ln2_b_ref[0])
        h2_scratch[...] = h2.reshape(bb, S, D).astype(h2_scratch.dtype)

    # ---- MLP: one intermediate-dim chunk per i step --------------------------
    h2b = h2_scratch[...].reshape(rows, D)                      # bf16
    m = jnp.dot(h2b, w1_ref[0], preferred_element_type=f32) + b1_ref[0]
    m = _activation(m, activation)                              # f32 stats
    y = jnp.dot(m.astype(bf16), w2_ref[0], preferred_element_type=f32)

    @pl.when(i == 0)
    def _():
        y_acc[...] = y.reshape(bb, S, D)

    @pl.when(i > 0)
    def _():
        y_acc[...] += y.reshape(bb, S, D)

    # ---- residual 2 (+ bias added once) and optional intermediate snapshot ---
    @pl.when(i == n_i - 1)
    def _():
        out_ref[...] = (out_ref[...].astype(f32) + y_acc[...]
                        + b2_ref[0]).astype(out_ref.dtype)

    @pl.when(jnp.logical_and(i == n_i - 1, l == inter_layer))
    def _():
        inter_ref[...] = out_ref[...].astype(inter_ref.dtype)


# ----------------------------------------------------------------------------
# Wrapper: mirrors CLIPEncoder.forward(x, mask, intermediate_output)
# ----------------------------------------------------------------------------
def clip_encoder(x, layer_params, heads, intermediate_output=None, *,
                 causal=True, activation="gelu", batch_block=1, mlp_chunks=1):
    B, S, D = x.shape
    L = len(layer_params)
    I = layer_params[0]["w1"].shape[1]
    bb = int(batch_block)
    n_i = int(mlp_chunks)
    assert D % heads == 0
    assert B % bb == 0, "batch_block must divide batch"
    assert I % n_i == 0, "mlp_chunks must divide the intermediate size"
    Ic = I // n_i
    assert n_i == 1 or Ic % 128 == 0, \
        "intermediate chunk must be a multiple of 128 lanes (or mlp_chunks==1)"

    if intermediate_output is not None and intermediate_output < 0:
        intermediate_output = L + intermediate_output
    # The snapshot output always exists; point it at the last layer if unused.
    inter_layer = intermediate_output if intermediate_output is not None else L - 1

    # Stack per-layer params into (L, ...) and fold the 1/sqrt(dh) scale.
    stacked = {n: jnp.stack([p[n] for p in layer_params], axis=0)
               for n in _PARAM_ORDER}
    scale = 1.0 / math.sqrt(D // heads)
    stacked["wq"] = (stacked["wq"].astype(jnp.float32) * scale).astype(
        layer_params[0]["wq"].dtype)
    stacked["bq"] = stacked["bq"] * scale

    def idx_batch(b, l, i):
        return (b, 0, 0)

    def idx_layer(b, l, i):
        return (l, 0, 0)

    def idx_w1(b, l, i):
        return (l, 0, i)

    def idx_w2(b, l, i):
        return (l, i, 0)

    spec_table = {
        "ln1_g": ((1, 1, D), idx_layer), "ln1_b": ((1, 1, D), idx_layer),
        "wq": ((1, D, D), idx_layer), "bq": ((1, 1, D), idx_layer),
        "wk": ((1, D, D), idx_layer), "bk": ((1, 1, D), idx_layer),
        "wv": ((1, D, D), idx_layer), "bv": ((1, 1, D), idx_layer),
        "wo": ((1, D, D), idx_layer), "bo": ((1, 1, D), idx_layer),
        "ln2_g": ((1, 1, D), idx_layer), "ln2_b": ((1, 1, D), idx_layer),
        "w1": ((1, D, Ic), idx_w1), "b1": ((1, 1, Ic), idx_w1),
        "w2": ((1, Ic, D), idx_w2), "b2": ((1, 1, D), idx_layer),
    }
    in_specs = [pl.BlockSpec((bb, S, D), idx_batch)]
    in_specs += [pl.BlockSpec(*spec_table[n]) for n in _PARAM_ORDER]
    out_specs = (pl.BlockSpec((bb, S, D), idx_batch),
                 pl.BlockSpec((bb, S, D), idx_batch))
    out_shape = (jax.ShapeDtypeStruct((B, S, D), x.dtype),
                 jax.ShapeDtypeStruct((B, S, D), x.dtype))

    # ---- VMEM budget: double-buffered weight blocks + io blocks + scratch ---
    rows = bb * S
    itemsize_x = jnp.dtype(x.dtype).itemsize
    w_blk_bytes = 0
    for n in _PARAM_ORDER:
        blk = spec_table[n][0]
        w_blk_bytes += blk[0] * blk[1] * blk[2] * jnp.dtype(stacked[n].dtype).itemsize
    io_bytes = bb * S * D * itemsize_x
    scratch_bytes = bb * S * D * (2 + 4)
    temp_bytes = 4 * (6 * rows * D + 3 * bb * heads * S * S + 2 * rows * Ic)
    est = 2 * w_blk_bytes + 2 * 3 * io_bytes + scratch_bytes + temp_bytes
    try:
        vmem_cap = int(pltpu.get_tpu_info().vmem_capacity_bytes)
    except Exception:
        vmem_cap = 128 * 1024 * 1024
    vmem_limit = int(min(max(int(1.25 * est), 32 * 1024 * 1024),
                         int(0.85 * vmem_cap)))

    kernel = functools.partial(
        clip_encoder_kernel, heads=heads, causal=causal,
        activation=activation, inter_layer=int(inter_layer))

    out, inter = pl.pallas_call(
        kernel,
        grid=(B // bb, L, n_i),
        in_specs=in_specs,
        out_specs=out_specs,
        out_shape=out_shape,
        scratch_shapes=[pltpu.VMEM((bb, S, D), jnp.bfloat16),   # LN2 output
                        pltpu.VMEM((bb, S, D), jnp.float32)],   # fc2 accumulator
        compiler_params=pltpu.CompilerParams(
            dimension_semantics=("parallel", "arbitrary", "arbitrary"),
            vmem_limit_bytes=vmem_limit),
    )(x, *[stacked[n] for n in _PARAM_ORDER])

    return out, (inter if intermediate_output is not None else None)


# ----------------------------------------------------------------------------
# Pure-JAX reference (mirrors the kernel's bf16-at-MXU / f32-accumulate math)
# ----------------------------------------------------------------------------
def _ref_layer(x, p, heads, *, causal, activation):
    B, S, D = x.shape
    dh = D // heads
    bf16 = jnp.bfloat16
    f32 = jnp.float32

    def matmul(a, w, b):
        return jnp.einsum("bsd,df->bsf", a.astype(bf16), w,
                          preferred_element_type=f32) + b

    h = _layernorm(x.astype(f32), p["ln1_g"], p["ln1_b"])
    q = matmul(h, p["wq"], p["bq"]) * (1.0 / math.sqrt(dh))
    k = matmul(h, p["wk"], p["bk"])
    v = matmul(h, p["wv"], p["bv"])
    q = q.astype(bf16).reshape(B, S, heads, dh).transpose(0, 2, 1, 3)
    k = k.astype(bf16).reshape(B, S, heads, dh).transpose(0, 2, 1, 3)
    v = v.astype(bf16).reshape(B, S, heads, dh).transpose(0, 2, 1, 3)
    s = jnp.einsum("bhqd,bhkd->bhqk", q, k, preferred_element_type=f32)
    if causal:
        r = jax.lax.broadcasted_iota(jnp.int32, (S, S), 0)
        c = jax.lax.broadcasted_iota(jnp.int32, (S, S), 1)
        s = jnp.where((c <= r)[None, None], s, -1e9)
    s = s - jnp.max(s, axis=-1, keepdims=True)
    pr = jnp.exp(s)
    pr = pr / jnp.sum(pr, axis=-1, keepdims=True)
    o = jnp.einsum("bhqk,bhkd->bhqd", pr.astype(bf16), v,
                   preferred_element_type=f32).astype(bf16)
    o = o.transpose(0, 2, 1, 3).reshape(B, S, D)
    x = x + (jnp.einsum("bsd,df->bsf", o, p["wo"],
                        preferred_element_type=f32) + p["bo"])
    h2 = _layernorm(x, p["ln2_g"], p["ln2_b"])
    m = matmul(h2, p["w1"], p["b1"])
    m = _activation(m, activation)
    x = x + (jnp.einsum("bsf,fd->bsd", m.astype(bf16), p["w2"],
                        preferred_element_type=f32) + p["b2"])
    return x


def _ref_encoder(x, layer_params, heads, intermediate_output=None, *,
                 causal=True, activation="gelu"):
    L = len(layer_params)
    if intermediate_output is not None and intermediate_output < 0:
        intermediate_output = L + intermediate_output
    inter = None
    for li, p in enumerate(layer_params):
        x = _ref_layer(x, p, heads, causal=causal, activation=activation)
        if li == intermediate_output:
            inter = x
    return x, inter


# ----------------------------------------------------------------------------
# Deterministic parameter construction (bf16 matrices, f32 biases / LN params)
# ----------------------------------------------------------------------------
def init_params(key, num_layers, embed_dim, intermediate_size):
    D, I = embed_dim, intermediate_size

    def nrm(k, shape, scale, dtype):
        return (scale * jax.random.normal(k, shape, jnp.float32)).astype(dtype)

    layers = []
    for _ in range(num_layers):
        ks = jax.random.split(key, 13)
        key = ks[0]
        layers.append({
            "ln1_g": jnp.ones((1, D), jnp.float32),
            "ln1_b": jnp.zeros((1, D), jnp.float32),
            "wq": nrm(ks[1], (D, D), 0.02, jnp.bfloat16),
            "bq": nrm(ks[2], (1, D), 0.01, jnp.float32),
            "wk": nrm(ks[3], (D, D), 0.02, jnp.bfloat16),
            "bk": nrm(ks[4], (1, D), 0.01, jnp.float32),
            "wv": nrm(ks[5], (D, D), 0.02, jnp.bfloat16),
            "bv": nrm(ks[6], (1, D), 0.01, jnp.float32),
            "wo": nrm(ks[7], (D, D), 0.02, jnp.bfloat16),
            "bo": nrm(ks[8], (1, D), 0.01, jnp.float32),
            "ln2_g": jnp.ones((1, D), jnp.float32),
            "ln2_b": jnp.zeros((1, D), jnp.float32),
            "w1": nrm(ks[9], (D, I), 0.02, jnp.bfloat16),
            "b1": nrm(ks[10], (1, I), 0.01, jnp.float32),
            "w2": nrm(ks[11], (I, D), 0.02, jnp.bfloat16),
            "b2": nrm(ks[12], (1, D), 0.01, jnp.float32),
        })
    return layers


# ----------------------------------------------------------------------------
if __name__ == "__main__":
    num_layers = 3
    B, S, D, heads, I = 2, 16, 128, 2, 256   # dh=64 (matches real CLIP head dim)

    key = jax.random.PRNGKey(0)
    kx, kp = jax.random.split(key)
    x = jax.random.normal(kx, (B, S, D), jnp.float32)
    params = init_params(kp, num_layers, D, I)

    # --- config 1: defaults (one MLP chunk, one batch row per grid step) -----
    ref_out, ref_inter = _ref_encoder(x, params, heads, intermediate_output=-2)
    out, inter = clip_encoder(x, params, heads, intermediate_output=-2)
    out, inter = jax.block_until_ready((out, inter))
    assert out.shape == (B, S, D) and inter.shape == (B, S, D)
    assert jnp.allclose(out, ref_out, atol=2e-2, rtol=2e-2), \
        float(jnp.max(jnp.abs(out - ref_out)))
    assert jnp.allclose(inter, ref_inter, atol=2e-2, rtol=2e-2), \
        float(jnp.max(jnp.abs(inter - ref_inter)))

    # --- config 2: folded batch rows (M = 2*S) + I-chunked MLP + quick_gelu ---
    ref_out2, _ = _ref_encoder(x, params, heads, activation="quick_gelu")
    out2, inter2 = clip_encoder(x, params, heads, activation="quick_gelu",
                                batch_block=2, mlp_chunks=2)
    out2 = jax.block_until_ready(out2)
    assert inter2 is None
    assert jnp.allclose(out2, ref_out2, atol=2e-2, rtol=2e-2), \
        float(jnp.max(jnp.abs(out2 - ref_out2)))

    print("KERNEL_OK")
</pallas_src>

<mosaic_0001>
module attributes {stable_mosaic.version = 11 : i64} {
  func.func @clip_encoder_kernel(%arg0: i32, %arg1: i32, %arg2: i32, %arg3: memref<1x16x128xf32, #tpu.memory_space<vmem>>, %arg4: memref<1x1x128xf32, #tpu.memory_space<vmem>>, %arg5: memref<1x1x128xf32, #tpu.memory_space<vmem>>, %arg6: memref<1x128x128xbf16, #tpu.memory_space<vmem>>, %arg7: memref<1x1x128xf32, #tpu.memory_space<vmem>>, %arg8: memref<1x128x128xbf16, #tpu.memory_space<vmem>>, %arg9: memref<1x1x128xf32, #tpu.memory_space<vmem>>, %arg10: memref<1x128x128xbf16, #tpu.memory_space<vmem>>, %arg11: memref<1x1x128xf32, #tpu.memory_space<vmem>>, %arg12: memref<1x128x128xbf16, #tpu.memory_space<vmem>>, %arg13: memref<1x1x128xf32, #tpu.memory_space<vmem>>, %arg14: memref<1x1x128xf32, #tpu.memory_space<vmem>>, %arg15: memref<1x1x128xf32, #tpu.memory_space<vmem>>, %arg16: memref<1x128x256xbf16, #tpu.memory_space<vmem>>, %arg17: memref<1x1x256xf32, #tpu.memory_space<vmem>>, %arg18: memref<1x256x128xbf16, #tpu.memory_space<vmem>>, %arg19: memref<1x1x128xf32, #tpu.memory_space<vmem>>, %arg20: memref<1x16x128xf32, #tpu.memory_space<vmem>>, %arg21: memref<1x16x128xf32, #tpu.memory_space<vmem>>, %arg22: memref<1x16x128xbf16, #tpu.memory_space<vmem>>, %arg23: memref<1x16x128xf32, #tpu.memory_space<vmem>>) attributes {dimension_semantics = [#tpu.dimension_semantics<parallel>, #tpu.dimension_semantics<arbitrary>, #tpu.dimension_semantics<arbitrary>], iteration_bounds = array<i64: 2, 3, 1>, scalar_prefetch = 0 : i64, scratch_operands = 2 : i64, tpu.core_type = #tpu.core_type<tc>, window_params = [{transform_indices = @transform_0, window_bounds = array<i64: 1, 16, 128>}, {transform_indices = @transform_1, window_bounds = array<i64: 1, 1, 128>}, {transform_indices = @transform_2, window_bounds = array<i64: 1, 1, 128>}, {transform_indices = @transform_3, window_bounds = array<i64: 1, 128, 128>}, {transform_indices = @transform_4, window_bounds = array<i64: 1, 1, 128>}, {transform_indices = @transform_5, window_bounds = array<i64: 1, 128, 128>}, {transform_indices = @transform_6, window_bounds = array<i64: 1, 1, 128>}, {transform_indices = @transform_7, window_bounds = array<i64: 1, 128, 128>}, {transform_indices = @transform_8, window_bounds = array<i64: 1, 1, 128>}, {transform_indices = @transform_9, window_bounds = array<i64: 1, 128, 128>}, {transform_indices = @transform_10, window_bounds = array<i64: 1, 1, 128>}, {transform_indices = @transform_11, window_bounds = array<i64: 1, 1, 128>}, {transform_indices = @transform_12, window_bounds = array<i64: 1, 1, 128>}, {transform_indices = @transform_13, window_bounds = array<i64: 1, 128, 256>}, {transform_indices = @transform_14, window_bounds = array<i64: 1, 1, 256>}, {transform_indices = @transform_15, window_bounds = array<i64: 1, 256, 128>}, {transform_indices = @transform_16, window_bounds = array<i64: 1, 1, 128>}, {transform_indices = @transform_17, window_bounds = array<i64: 1, 16, 128>}, {transform_indices = @transform_18, window_bounds = array<i64: 1, 16, 128>}]} {
    %c0_i32 = arith.constant 0 : i32
    %0 = arith.cmpi eq, %arg1, %c0_i32 : i32
    %c0_i32_0 = arith.constant 0 : i32
    %1 = arith.cmpi eq, %arg2, %c0_i32_0 : i32
    %2 = arith.andi %0, %1 : i1
    %3 = arith.extui %2 : i1 to i32
    %c0_i32_1 = arith.constant 0 : i32
    %4 = arith.cmpi ne, %3, %c0_i32_1 : i32
    scf.if %4 {
      %c0_27 = arith.constant 0 : index
      %c0_28 = arith.constant 0 : index
      %c0_29 = arith.constant 0 : index
      %43 = vector.load %arg3[%c0_27, %c0_28, %c0_29] : memref<1x16x128xf32, #tpu.memory_space<vmem>>, vector<1x16x128xf32>
      %c0_30 = arith.constant 0 : index
      %c0_31 = arith.constant 0 : index
      %c0_32 = arith.constant 0 : index
      %44 = vector.load %arg20[%c0_30, %c0_31, %c0_32] : memref<1x16x128xf32, #tpu.memory_space<vmem>>, vector<1x16x128xf32>
      tpu.vector_store %arg20[%c0_30, %c0_31, %c0_32], %43 {strides = array<i32>} : memref<1x16x128xf32, #tpu.memory_space<vmem>>, vector<1x16x128xf32>,
    } else {
    }
    %c0_i32_2 = arith.constant 0 : i32
    %5 = arith.cmpi eq, %arg2, %c0_i32_2 : i32
    %6 = arith.extui %5 : i1 to i32
    %c0_i32_3 = arith.constant 0 : i32
    %7 = arith.cmpi ne, %6, %c0_i32_3 : i32
    scf.if %7 {
      %c0_27 = arith.constant 0 : index
      %c0_28 = arith.constant 0 : index
      %c0_29 = arith.constant 0 : index
      %43 = vector.load %arg20[%c0_27, %c0_28, %c0_29] : memref<1x16x128xf32, #tpu.memory_space<vmem>>, vector<1x16x128xf32>
      %44 = vector.shape_cast %43 : vector<1x16x128xf32> to vector<16x128xf32>
      %c0_30 = arith.constant 0 : index
      %c0_31 = arith.constant 0 : index
      %c0_32 = arith.constant 0 : index
      %45 = vector.load %arg4[%c0_30, %c0_31, %c0_32] : memref<1x1x128xf32, #tpu.memory_space<vmem>>, vector<1x1x128xf32>
      %46 = vector.shape_cast %45 : vector<1x1x128xf32> to vector<1x128xf32>
      %c0_33 = arith.constant 0 : index
      %c0_34 = arith.constant 0 : index
      %c0_35 = arith.constant 0 : index
      %47 = vector.load %arg5[%c0_33, %c0_34, %c0_35] : memref<1x1x128xf32, #tpu.memory_space<vmem>>, vector<1x1x128xf32>
      %48 = vector.shape_cast %47 : vector<1x1x128xf32> to vector<1x128xf32>
      %cst_36 = arith.constant dense<0.000000e+00> : vector<16xf32>
      %49 = vector.multi_reduction <add>, %44, %cst_36 [1] : vector<16x128xf32> to vector<16xf32>
      %50 = vector.shape_cast %49 : vector<16xf32> to vector<16x1xf32>
      %cst_37 = arith.constant 1.280000e+02 : f32
      %51 = vector.broadcast %cst_37 : f32 to vector<16x1xf32>
      %52 = arith.divf %50, %51 : vector<16x1xf32>
      %53 = vector.broadcast %52 : vector<16x1xf32> to vector<16x128xf32>
      %54 = arith.subf %44, %53 : vector<16x128xf32>
      %55 = arith.mulf %54, %54 : vector<16x128xf32>
      %cst_38 = arith.constant dense<0.000000e+00> : vector<16xf32>
      %56 = vector.multi_reduction <add>, %55, %cst_38 [1] : vector<16x128xf32> to vector<16xf32>
      %57 = vector.shape_cast %56 : vector<16xf32> to vector<16x1xf32>
      %cst_39 = arith.constant 1.280000e+02 : f32
      %58 = vector.broadcast %cst_39 : f32 to vector<16x1xf32>
      %59 = arith.divf %57, %58 : vector<16x1xf32>
      %60 = vector.broadcast %52 : vector<16x1xf32> to vector<16x128xf32>
      %61 = arith.subf %44, %60 : vector<16x128xf32>
      %cst_40 = arith.constant 9.99999974E-6 : f32
      %62 = vector.broadcast %cst_40 : f32 to vector<16x1xf32>
      %63 = arith.addf %59, %62 : vector<16x1xf32>
      %64 = math.rsqrt %63 : vector<16x1xf32>
      %65 = vector.broadcast %64 : vector<16x1xf32> to vector<16x128xf32>
      %66 = arith.mulf %61, %65 : vector<16x128xf32>
      %67 = vector.broadcast %46 : vector<1x128xf32> to vector<16x128xf32>
      %68 = arith.mulf %66, %67 : vector<16x128xf32>
      %69 = vector.broadcast %48 : vector<1x128xf32> to vector<16x128xf32>
      %70 = arith.addf %68, %69 : vector<16x128xf32>
      %71 = arith.truncf %70 : vector<16x128xf32> to vector<16x128xbf16>
      %c0_41 = arith.constant 0 : index
      %c0_42 = arith.constant 0 : index
      %c0_43 = arith.constant 0 : index
      %72 = vector.load %arg6[%c0_41, %c0_42, %c0_43] : memref<1x128x128xbf16, #tpu.memory_space<vmem>>, vector<1x128x128xbf16>
      %73 = vector.shape_cast %72 : vector<1x128x128xbf16> to vector<128x128xbf16>
      %cst_44 = arith.constant dense<0.000000e+00> : vector<16x128xf32>
      %74 = tpu.matmul %71, %73, %cst_44 {dimension_numbers = #tpu.dot_dimension_numbers<[1], [0], [0], [1], [0, 0, 1, 1], [], []>} : vector<16x128xbf16>, vector<128x128xbf16>, vector<16x128xf32> -> vector<16x128xf32>
      %c0_45 = arith.constant 0 : index
      %c0_46 = arith.constant 0 : index
      %c0_47 = arith.constant 0 : index
      %75 = vector.load %arg7[%c0_45, %c0_46, %c0_47] : memref<1x1x128xf32, #tpu.memory_space<vmem>>, vector<1x1x128xf32>
      %76 = vector.shape_cast %75 : vector<1x1x128xf32> to vector<1x128xf32>
      %77 = vector.broadcast %76 : vector<1x128xf32> to vector<16x128xf32>
      %78 = arith.addf %74, %77 : vector<16x128xf32>
      %c0_48 = arith.constant 0 : index
      %c0_49 = arith.constant 0 : index
      %c0_50 = arith.constant 0 : index
      %79 = vector.load %arg8[%c0_48, %c0_49, %c0_50] : memref<1x128x128xbf16, #tpu.memory_space<vmem>>, vector<1x128x128xbf16>
      %80 = vector.shape_cast %79 : vector<1x128x128xbf16> to vector<128x128xbf16>
      %cst_51 = arith.constant dense<0.000000e+00> : vector<16x128xf32>
      %81 = tpu.matmul %71, %80, %cst_51 {dimension_numbers = #tpu.dot_dimension_numbers<[1], [0], [0], [1], [0, 0, 1, 1], [], []>} : vector<16x128xbf16>, vector<128x128xbf16>, vector<16x128xf32> -> vector<16x128xf32>
      %c0_52 = arith.constant 0 : index
      %c0_53 = arith.constant 0 : index
      %c0_54 = arith.constant 0 : index
      %82 = vector.load %arg9[%c0_52, %c0_53, %c0_54] : memref<1x1x128xf32, #tpu.memory_space<vmem>>, vector<1x1x128xf32>
      %83 = vector.shape_cast %82 : vector<1x1x128xf32> to vector<1x128xf32>
      %84 = vector.broadcast %83 : vector<1x128xf32> to vector<16x128xf32>
      %85 = arith.addf %81, %84 : vector<16x128xf32>
      %c0_55 = arith.constant 0 : index
      %c0_56 = arith.constant 0 : index
      %c0_57 = arith.constant 0 : index
      %86 = vector.load %arg10[%c0_55, %c0_56, %c0_57] : memref<1x128x128xbf16, #tpu.memory_space<vmem>>, vector<1x128x128xbf16>
      %87 = vector.shape_cast %86 : vector<1x128x128xbf16> to vector<128x128xbf16>
      %cst_58 = arith.constant dense<0.000000e+00> : vector<16x128xf32>
      %88 = tpu.matmul %71, %87, %cst_58 {dimension_numbers = #tpu.dot_dimension_numbers<[1], [0], [0], [1], [0, 0, 1, 1], [], []>} : vector<16x128xbf16>, vector<128x128xbf16>, vector<16x128xf32> -> vector<16x128xf32>
      %c0_59 = arith.constant 0 : index
      %c0_60 = arith.constant 0 : index
      %c0_61 = arith.constant 0 : index
      %89 = vector.load %arg11[%c0_59, %c0_60, %c0_61] : memref<1x1x128xf32, #tpu.memory_space<vmem>>, vector<1x1x128xf32>
      %90 = vector.shape_cast %89 : vector<1x1x128xf32> to vector<1x128xf32>
      %91 = vector.broadcast %90 : vector<1x128xf32> to vector<16x128xf32>
      %92 = arith.addf %88, %91 : vector<16x128xf32>
      %93 = arith.truncf %78 : vector<16x128xf32> to vector<16x128xbf16>
      %94 = vector.shape_cast %93 : vector<16x128xbf16> to vector<1x16x2x64xbf16>
      %95 = arith.truncf %85 : vector<16x128xf32> to vector<16x128xbf16>
      %96 = vector.shape_cast %95 : vector<16x128xbf16> to vector<1x16x2x64xbf16>
      %97 = arith.truncf %92 : vector<16x128xf32> to vector<16x128xbf16>
      %98 = vector.shape_cast %97 : vector<16x128xbf16> to vector<1x16x2x64xbf16>
      %99 = tpu.iota {dimensions = array<i32: 0>} : vector<16x16xi32>
      %100 = tpu.iota {dimensions = array<i32: 1>} : vector<16x16xi32>
      %101 = arith.cmpi sle, %100, %99 : vector<16x16xi32>
      %102 = vector.shape_cast %101 : vector<16x16xi1> to vector<1x16x16xi1>
      %103 = vector.shape_cast %94 : vector<1x16x2x64xbf16> to vector<16x2x64xbf16>
      %104 = tpu.transpose %103, [1, 0, 2] : vector<16x2x64xbf16> -> vector<2x16x64xbf16>
      %105 = vector.shape_cast %96 : vector<1x16x2x64xbf16> to vector<16x2x64xbf16>
      %106 = tpu.transpose %105, [1, 0, 2] : vector<16x2x64xbf16> -> vector<2x16x64xbf16>
      %107 = vector.shape_cast %98 : vector<1x16x2x64xbf16> to vector<16x2x64xbf16>
      %108 = tpu.transpose %107, [1, 0, 2] : vector<16x2x64xbf16> -> vector<2x16x64xbf16>
      "tpu.trace_start"() <{level = 10 : i32, message = "hqd,hkd->hqk"}> : () -> ()
      %cst_62 = arith.constant dense<0.000000e+00> : vector<2x16x16xf32>
      %109 = tpu.matmul %104, %106, %cst_62 {dimension_numbers = #tpu.dot_dimension_numbers<[2], [2], [1], [1], [0, 0, 0, 1, 1, 1], [0], [0]>} : vector<2x16x64xbf16>, vector<2x16x64xbf16>, vector<2x16x16xf32> -> vector<2x16x16xf32>
      %cst_63 = arith.constant -1.000000e+09 : f32
      "tpu.trace_stop"() : () -> ()
      %110 = vector.shape_cast %102 : vector<1x16x16xi1> to vector<1x16x16xi1>
      %111 = vector.broadcast %110 : vector<1x16x16xi1> to vector<2x16x16xi1>
      %112 = vector.broadcast %cst_63 : f32 to vector<2x16x16xf32>
      %113 = arith.select %111, %109, %112 : vector<2x16x16xi1>, vector<2x16x16xf32>
      %cst_64 = arith.constant dense<0xFF800000> : vector<2x16xf32>
      %114 = vector.multi_reduction <maximumf>, %113, %cst_64 [2] : vector<2x16x16xf32> to vector<2x16xf32>
      %115 = vector.shape_cast %114 : vector<2x16xf32> to vector<2x16x1xf32>
      %116 = vector.broadcast %115 : vector<2x16x1xf32> to vector<2x16x16xf32>
      %117 = arith.subf %113, %116 : vector<2x16x16xf32>
      %118 = math.exp %117 : vector<2x16x16xf32>
      %cst_65 = arith.constant dense<0.000000e+00> : vector<2x16xf32>
      %119 = vector.multi_reduction <add>, %118, %cst_65 [2] : vector<2x16x16xf32> to vector<2x16xf32>
      %120 = vector.shape_cast %119 : vector<2x16xf32> to vector<2x16x1xf32>
      %121 = tpu.reciprocal %120 {approx = true} : vector<2x16x1xf32> -> vector<2x16x1xf32>
      %122 = vector.broadcast %121 : vector<2x16x1xf32> to vector<2x16x16xf32>
      %123 = arith.mulf %118, %122 : vector<2x16x16xf32>
      %124 = arith.truncf %123 : vector<2x16x16xf32> to vector<2x16x16xbf16>
      "tpu.trace_start"() <{level = 10 : i32, message = "hqk,hkd->hqd"}> : () -> ()
      %cst_66 = arith.constant dense<0.000000e+00> : vector<2x16x64xf32>
      %125 = tpu.matmul %124, %108, %cst_66 {dimension_numbers = #tpu.dot_dimension_numbers<[2], [1], [1], [2], [0, 0, 0, 1, 1, 2], [0], [0]>} : vector<2x16x16xbf16>, vector<2x16x64xbf16>, vector<2x16x64xf32> -> vector<2x16x64xf32>
      "tpu.trace_stop"() : () -> ()
      %126 = arith.truncf %125 : vector<2x16x64xf32> to vector<2x16x64xbf16>
      %127 = tpu.transpose %126, [1, 0, 2] : vector<2x16x64xbf16> -> vector<16x2x64xbf16>
      %128 = vector.shape_cast %127 : vector<16x2x64xbf16> to vector<16x128xbf16>
      %c0_67 = arith.constant 0 : index
      %c0_68 = arith.constant 0 : index
      %c0_69 = arith.constant 0 : index
      %129 = vector.load %arg12[%c0_67, %c0_68, %c0_69] : memref<1x128x128xbf16, #tpu.memory_space<vmem>>, vector<1x128x128xbf16>
      %130 = vector.shape_cast %129 : vector<1x128x128xbf16> to vector<128x128xbf16>
      %cst_70 = arith.constant dense<0.000000e+00> : vector<16x128xf32>
      %131 = tpu.matmul %128, %130, %cst_70 {dimension_numbers = #tpu.dot_dimension_numbers<[1], [0], [0], [1], [0, 0, 1, 1], [], []>} : vector<16x128xbf16>, vector<128x128xbf16>, vector<16x128xf32> -> vector<16x128xf32>
      %c0_71 = arith.constant 0 : index
      %c0_72 = arith.constant 0 : index
      %c0_73 = arith.constant 0 : index
      %132 = vector.load %arg13[%c0_71, %c0_72, %c0_73] : memref<1x1x128xf32, #tpu.memory_space<vmem>>, vector<1x1x128xf32>
      %133 = vector.shape_cast %132 : vector<1x1x128xf32> to vector<1x128xf32>
      %134 = vector.broadcast %133 : vector<1x128xf32> to vector<16x128xf32>
      %135 = arith.addf %131, %134 : vector<16x128xf32>
      %136 = arith.addf %44, %135 : vector<16x128xf32>
      %137 = vector.shape_cast %136 : vector<16x128xf32> to vector<1x16x128xf32>
      %c0_74 = arith.constant 0 : index
      %c0_75 = arith.constant 0 : index
      %c0_76 = arith.constant 0 : index
      %138 = vector.load %arg20[%c0_74, %c0_75, %c0_76] : memref<1x16x128xf32, #tpu.memory_space<vmem>>, vector<1x16x128xf32>
      tpu.vector_store %arg20[%c0_74, %c0_75, %c0_76], %137 {strides = array<i32>} : memref<1x16x128xf32, #tpu.memory_space<vmem>>, vector<1x16x128xf32>,
      %c0_77 = arith.constant 0 : index
      %c0_78 = arith.constant 0 : index
      %c0_79 = arith.constant 0 : index
      %139 = vector.load %arg14[%c0_77, %c0_78, %c0_79] : memref<1x1x128xf32, #tpu.memory_space<vmem>>, vector<1x1x128xf32>
      %140 = vector.shape_cast %139 : vector<1x1x128xf32> to vector<1x128xf32>
      %c0_80 = arith.constant 0 : index
      %c0_81 = arith.constant 0 : index
      %c0_82 = arith.constant 0 : index
      %141 = vector.load %arg15[%c0_80, %c0_81, %c0_82] : memref<1x1x128xf32, #tpu.memory_space<vmem>>, vector<1x1x128xf32>
      %142 = vector.shape_cast %141 : vector<1x1x128xf32> to vector<1x128xf32>
      %cst_83 = arith.constant dense<0.000000e+00> : vector<16xf32>
      %143 = vector.multi_reduction <add>, %136, %cst_83 [1] : vector<16x128xf32> to vector<16xf32>
      %144 = vector.shape_cast %143 : vector<16xf32> to vector<16x1xf32>
      %cst_84 = arith.constant 1.280000e+02 : f32
      %145 = vector.broadcast %cst_84 : f32 to vector<16x1xf32>
      %146 = arith.divf %144, %145 : vector<16x1xf32>
      %147 = vector.broadcast %146 : vector<16x1xf32> to vector<16x128xf32>
      %148 = arith.subf %136, %147 : vector<16x128xf32>
      %149 = arith.mulf %148, %148 : vector<16x128xf32>
      %cst_85 = arith.constant dense<0.000000e+00> : vector<16xf32>
      %150 = vector.multi_reduction <add>, %149, %cst_85 [1] : vector<16x128xf32> to vector<16xf32>
      %151 = vector.shape_cast %150 : vector<16xf32> to vector<16x1xf32>
      %cst_86 = arith.constant 1.280000e+02 : f32
      %152 = vector.broadcast %cst_86 : f32 to vector<16x1xf32>
      %153 = arith.divf %151, %152 : vector<16x1xf32>
      %154 = vector.broadcast %146 : vector<16x1xf32> to vector<16x128xf32>
      %155 = arith.subf %136, %154 : vector<16x128xf32>
      %cst_87 = arith.constant 9.99999974E-6 : f32
      %156 = vector.broadcast %cst_87 : f32 to vector<16x1xf32>
      %157 = arith.addf %153, %156 : vector<16x1xf32>
      %158 = math.rsqrt %157 : vector<16x1xf32>
      %159 = vector.broadcast %158 : vector<16x1xf32> to vector<16x128xf32>
      %160 = arith.mulf %155, %159 : vector<16x128xf32>
      %161 = vector.broadcast %140 : vector<1x128xf32> to vector<16x128xf32>
      %162 = arith.mulf %160, %161 : vector<16x128xf32>
      %163 = vector.broadcast %142 : vector<1x128xf32> to vector<16x128xf32>
      %164 = arith.addf %162, %163 : vector<16x128xf32>
      %165 = vector.shape_cast %164 : vector<16x128xf32> to vector<1x16x128xf32>
      %166 = arith.truncf %165 : vector<1x16x128xf32> to vector<1x16x128xbf16>
      %c0_88 = arith.constant 0 : index
      %c0_89 = arith.constant 0 : index
      %c0_90 = arith.constant 0 : index
      %167 = vector.load %arg22[%c0_88, %c0_89, %c0_90] : memref<1x16x128xbf16, #tpu.memory_space<vmem>>, vector<1x16x128xbf16>
      tpu.vector_store %arg22[%c0_88, %c0_89, %c0_90], %166 {strides = array<i32>} : memref<1x16x128xbf16, #tpu.memory_space<vmem>>, vector<1x16x128xbf16>,
    } else {
    }
    %c0 = arith.constant 0 : index
    %c0_4 = arith.constant 0 : index
    %c0_5 = arith.constant 0 : index
    %8 = vector.load %arg22[%c0, %c0_4, %c0_5] : memref<1x16x128xbf16, #tpu.memory_space<vmem>>, vector<1x16x128xbf16>
    %9 = vector.shape_cast %8 : vector<1x16x128xbf16> to vector<16x128xbf16>
    %c0_6 = arith.constant 0 : index
    %c0_7 = arith.constant 0 : index
    %c0_8 = arith.constant 0 : index
    %10 = vector.load %arg16[%c0_6, %c0_7, %c0_8] : memref<1x128x256xbf16, #tpu.memory_space<vmem>>, vector<1x128x256xbf16>
    %11 = vector.shape_cast %10 : vector<1x128x256xbf16> to vector<128x256xbf16>
    %cst = arith.constant dense<0.000000e+00> : vector<16x256xf32>
    %12 = tpu.matmul %9, %11, %cst {dimension_numbers = #tpu.dot_dimension_numbers<[1], [0], [0], [1], [0, 0, 1, 1], [], []>} : vector<16x128xbf16>, vector<128x256xbf16>, vector<16x256xf32> -> vector<16x256xf32>
    %c0_9 = arith.constant 0 : index
    %c0_10 = arith.constant 0 : index
    %c0_11 = arith.constant 0 : index
    %13 = vector.load %arg17[%c0_9, %c0_10, %c0_11] : memref<1x1x256xf32, #tpu.memory_space<vmem>>, vector<1x1x256xf32>
    %14 = vector.shape_cast %13 : vector<1x1x256xf32> to vector<1x256xf32>
    %15 = vector.broadcast %14 : vector<1x256xf32> to vector<16x256xf32>
    %16 = arith.addf %12, %15 : vector<16x256xf32>
    %cst_12 = arith.constant 5.000000e-01 : f32
    %17 = vector.broadcast %cst_12 : f32 to vector<16x256xf32>
    %18 = arith.mulf %17, %16 : vector<16x256xf32>
    %cst_13 = arith.constant 0.707106769 : f32
    %19 = vector.broadcast %cst_13 : f32 to vector<16x256xf32>
    %20 = arith.mulf %16, %19 : vector<16x256xf32>
    %21 = math.erf %20 : vector<16x256xf32>
    %cst_14 = arith.constant 1.000000e+00 : f32
    %22 = vector.broadcast %cst_14 : f32 to vector<16x256xf32>
    %23 = arith.addf %22, %21 : vector<16x256xf32>
    %24 = arith.mulf %18, %23 : vector<16x256xf32>
    %25 = arith.truncf %24 : vector<16x256xf32> to vector<16x256xbf16>
    %c0_15 = arith.constant 0 : index
    %c0_16 = arith.constant 0 : index
    %c0_17 = arith.constant 0 : index
    %26 = vector.load %arg18[%c0_15, %c0_16, %c0_17] : memref<1x256x128xbf16, #tpu.memory_space<vmem>>, vector<1x256x128xbf16>
    %27 = vector.shape_cast %26 : vector<1x256x128xbf16> to vector<256x128xbf16>
    %cst_18 = arith.constant dense<0.000000e+00> : vector<16x128xf32>
    %28 = tpu.matmul %25, %27, %cst_18 {dimension_numbers = #tpu.dot_dimension_numbers<[1], [0], [0], [1], [0, 0, 1, 1], [], []>} : vector<16x256xbf16>, vector<256x128xbf16>, vector<16x128xf32> -> vector<16x128xf32>
    %c0_i32_19 = arith.constant 0 : i32
    %29 = arith.cmpi eq, %arg2, %c0_i32_19 : i32
    %30 = arith.extui %29 : i1 to i32
    %c0_i32_20 = arith.constant 0 : i32
    %31 = arith.cmpi ne, %30, %c0_i32_20 : i32
    scf.if %31 {
      %43 = vector.shape_cast %28 : vector<16x128xf32> to vector<1x16x128xf32>
      %c0_27 = arith.constant 0 : index
      %c0_28 = arith.constant 0 : index
      %c0_29 = arith.constant 0 : index
      %44 = vector.load %arg23[%c0_27, %c0_28, %c0_29] : memref<1x16x128xf32, #tpu.memory_space<vmem>>, vector<1x16x128xf32>
      tpu.vector_store %arg23[%c0_27, %c0_28, %c0_29], %43 {strides = array<i32>} : memref<1x16x128xf32, #tpu.memory_space<vmem>>, vector<1x16x128xf32>,
    } else {
    }
    %c0_i32_21 = arith.constant 0 : i32
    %32 = arith.cmpi sgt, %arg2, %c0_i32_21 : i32
    %33 = arith.extui %32 : i1 to i32
    %c0_i32_22 = arith.constant 0 : i32
    %34 = arith.cmpi ne, %33, %c0_i32_22 : i32
    scf.if %34 {
      %c0_27 = arith.constant 0 : index
      %c0_28 = arith.constant 0 : index
      %c0_29 = arith.constant 0 : index
      %43 = vector.load %arg23[%c0_27, %c0_28, %c0_29] : memref<1x16x128xf32, #tpu.memory_space<vmem>>, vector<1x16x128xf32>
      %44 = vector.shape_cast %28 : vector<16x128xf32> to vector<1x16x128xf32>
      %45 = arith.addf %43, %44 : vector<1x16x128xf32>
      %c0_30 = arith.constant 0 : index
      %c0_31 = arith.constant 0 : index
      %c0_32 = arith.constant 0 : index
      %46 = vector.load %arg23[%c0_30, %c0_31, %c0_32] : memref<1x16x128xf32, #tpu.memory_space<vmem>>, vector<1x16x128xf32>
      tpu.vector_store %arg23[%c0_30, %c0_31, %c0_32], %45 {strides = array<i32>} : memref<1x16x128xf32, #tpu.memory_space<vmem>>, vector<1x16x128xf32>,
    } else {
    }
    %c0_i32_23 = arith.constant 0 : i32
    %35 = arith.cmpi eq, %arg2, %c0_i32_23 : i32
    %36 = arith.extui %35 : i1 to i32
    %c0_i32_24 = arith.constant 0 : i32
    %37 = arith.cmpi ne, %36, %c0_i32_24 : i32
    scf.if %37 {
      %c0_27 = arith.constant 0 : index
      %c0_28 = arith.constant 0 : index
      %c0_29 = arith.constant 0 : index
      %43 = vector.load %arg20[%c0_27, %c0_28, %c0_29] : memref<1x16x128xf32, #tpu.memory_space<vmem>>, vector<1x16x128xf32>
      %c0_30 = arith.constant 0 : index
      %c0_31 = arith.constant 0 : index
      %c0_32 = arith.constant 0 : index
      %44 = vector.load %arg23[%c0_30, %c0_31, %c0_32] : memref<1x16x128xf32, #tpu.memory_space<vmem>>, vector<1x16x128xf32>
      %45 = arith.addf %43, %44 : vector<1x16x128xf32>
      %c0_33 = arith.constant 0 : index
      %c0_34 = arith.constant 0 : index
      %c0_35 = arith.constant 0 : index
      %46 = vector.load %arg19[%c0_33, %c0_34, %c0_35] : memref<1x1x128xf32, #tpu.memory_space<vmem>>, vector<1x1x128xf32>
      %47 = vector.shape_cast %46 : vector<1x1x128xf32> to vector<1x128xf32>
      %48 = vector.shape_cast %47 : vector<1x128xf32> to vector<1x1x128xf32>
      %49 = vector.broadcast %48 : vector<1x1x128xf32> to vector<1x16x128xf32>
      %50 = arith.addf %45, %49 : vector<1x16x128xf32>
      %c0_36 = arith.constant 0 : index
      %c0_37 = arith.constant 0 : index
      %c0_38 = arith.constant 0 : index
      %51 = vector.load %arg20[%c0_36, %c0_37, %c0_38] : memref<1x16x128xf32, #tpu.memory_space<vmem>>, vector<1x16x128xf32>
      tpu.vector_store %arg20[%c0_36, %c0_37, %c0_38], %50 {strides = array<i32>} : memref<1x16x128xf32, #tpu.memory_space<vmem>>, vector<1x16x128xf32>,
    } else {
    }
    %c0_i32_25 = arith.constant 0 : i32
    %38 = arith.cmpi eq, %arg2, %c0_i32_25 : i32
    %c1_i32 = arith.constant 1 : i32
    %39 = arith.cmpi eq, %arg1, %c1_i32 : i32
    %40 = arith.andi %38, %39 : i1
    %41 = arith.extui %40 : i1 to i32
    %c0_i32_26 = arith.constant 0 : i32
    %42 = arith.cmpi ne, %41, %c0_i32_26 : i32
    scf.if %42 {
      %c0_27 = arith.constant 0 : index
      %c0_28 = arith.constant 0 : index
      %c0_29 = arith.constant 0 : index
      %43 = vector.load %arg20[%c0_27, %c0_28, %c0_29] : memref<1x16x128xf32, #tpu.memory_space<vmem>>, vector<1x16x128xf32>
      %c0_30 = arith.constant 0 : index
      %c0_31 = arith.constant 0 : index
      %c0_32 = arith.constant 0 : index
      %44 = vector.load %arg21[%c0_30, %c0_31, %c0_32] : memref<1x16x128xf32, #tpu.memory_space<vmem>>, vector<1x16x128xf32>
      tpu.vector_store %arg21[%c0_30, %c0_31, %c0_32], %43 {strides = array<i32>} : memref<1x16x128xf32, #tpu.memory_space<vmem>>, vector<1x16x128xf32>,
    } else {
    }
    return
  }
  func.func @transform_0(%arg0: i32, %arg1: i32, %arg2: i32) -> (i32, i32, i32) {
    %c0_i32 = arith.constant 0 : i32
    %c0_i32_0 = arith.constant 0 : i32
    %c0_i32_1 = arith.constant 0 : i32
    return %arg0, %c0_i32, %c0_i32_0 : i32, i32, i32
  }
  func.func @transform_1(%arg0: i32, %arg1: i32, %arg2: i32) -> (i32, i32, i32) {
    %c0_i32 = arith.constant 0 : i32
    %c0_i32_0 = arith.constant 0 : i32
    %c0_i32_1 = arith.constant 0 : i32
    return %arg1, %c0_i32, %c0_i32_0 : i32, i32, i32
  }
  func.func @transform_2(%arg0: i32, %arg1: i32, %arg2: i32) -> (i32, i32, i32) {
    %c0_i32 = arith.constant 0 : i32
    %c0_i32_0 = arith.constant 0 : i32
    %c0_i32_1 = arith.constant 0 : i32
    return %arg1, %c0_i32, %c0_i32_0 : i32, i32, i32
  }
  func.func @transform_3(%arg0: i32, %arg1: i32, %arg2: i32) -> (i32, i32, i32) {
    %c0_i32 = arith.constant 0 : i32
    %c0_i32_0 = arith.constant 0 : i32
    %c0_i32_1 = arith.constant 0 : i32
    return %arg1, %c0_i32, %c0_i32_0 : i32, i32, i32
  }
  func.func @transform_4(%arg0: i32, %arg1: i32, %arg2: i32) -> (i32, i32, i32) {
    %c0_i32 = arith.constant 0 : i32
    %c0_i32_0 = arith.constant 0 : i32
    %c0_i32_1 = arith.constant 0 : i32
    return %arg1, %c0_i32, %c0_i32_0 : i32, i32, i32
  }
  func.func @transform_5(%arg0: i32, %arg1: i32, %arg2: i32) -> (i32, i32, i32) {
    %c0_i32 = arith.constant 0 : i32
    %c0_i32_0 = arith.constant 0 : i32
    %c0_i32_1 = arith.constant 0 : i32
    return %arg1, %c0_i32, %c0_i32_0 : i32, i32, i32
  }
  func.func @transform_6(%arg0: i32, %arg1: i32, %arg2: i32) -> (i32, i32, i32) {
    %c0_i32 = arith.constant 0 : i32
    %c0_i32_0 = arith.constant 0 : i32
    %c0_i32_1 = arith.constant 0 : i32
    return %arg1, %c0_i32, %c0_i32_0 : i32, i32, i32
  }
  func.func @transform_7(%arg0: i32, %arg1: i32, %arg2: i32) -> (i32, i32, i32) {
    %c0_i32 = arith.constant 0 : i32
    %c0_i32_0 = arith.constant 0 : i32
    %c0_i32_1 = arith.constant 0 : i32
    return %arg1, %c0_i32, %c0_i32_0 : i32, i32, i32
  }
  func.func @transform_8(%arg0: i32, %arg1: i32, %arg2: i32) -> (i32, i32, i32) {
    %c0_i32 = arith.constant 0 : i32
    %c0_i32_0 = arith.constant 0 : i32
    %c0_i32_1 = arith.constant 0 : i32
    return %arg1, %c0_i32, %c0_i32_0 : i32, i32, i32
  }
  func.func @transform_9(%arg0: i32, %arg1: i32, %arg2: i32) -> (i32, i32, i32) {
    %c0_i32 = arith.constant 0 : i32
    %c0_i32_0 = arith.constant 0 : i32
    %c0_i32_1 = arith.constant 0 : i32
    return %arg1, %c0_i32, %c0_i32_0 : i32, i32, i32
  }
  func.func @transform_10(%arg0: i32, %arg1: i32, %arg2: i32) -> (i32, i32, i32) {
    %c0_i32 = arith.constant 0 : i32
    %c0_i32_0 = arith.constant 0 : i32
    %c0_i32_1 = arith.constant 0 : i32
    return %arg1, %c0_i32, %c0_i32_0 : i32, i32, i32
  }
  func.func @transform_11(%arg0: i32, %arg1: i32, %arg2: i32) -> (i32, i32, i32) {
    %c0_i32 = arith.constant 0 : i32
    %c0_i32_0 = arith.constant 0 : i32
    %c0_i32_1 = arith.constant 0 : i32
    return %arg1, %c0_i32, %c0_i32_0 : i32, i32, i32
  }
  func.func @transform_12(%arg0: i32, %arg1: i32, %arg2: i32) -> (i32, i32, i32) {
    %c0_i32 = arith.constant 0 : i32
    %c0_i32_0 = arith.constant 0 : i32
    %c0_i32_1 = arith.constant 0 : i32
    return %arg1, %c0_i32, %c0_i32_0 : i32, i32, i32
  }
  func.func @transform_13(%arg0: i32, %arg1: i32, %arg2: i32) -> (i32, i32, i32) {
    %c0_i32 = arith.constant 0 : i32
    %c0_i32_0 = arith.constant 0 : i32
    return %arg1, %c0_i32, %arg2 : i32, i32, i32
  }
  func.func @transform_14(%arg0: i32, %arg1: i32, %arg2: i32) -> (i32, i32, i32) {
    %c0_i32 = arith.constant 0 : i32
    %c0_i32_0 = arith.constant 0 : i32
    return %arg1, %c0_i32, %arg2 : i32, i32, i32
  }
  func.func @transform_15(%arg0: i32, %arg1: i32, %arg2: i32) -> (i32, i32, i32) {
    %c0_i32 = arith.constant 0 : i32
    %c0_i32_0 = arith.constant 0 : i32
    return %arg1, %arg2, %c0_i32 : i32, i32, i32
  }
  func.func @transform_16(%arg0: i32, %arg1: i32, %arg2: i32) -> (i32, i32, i32) {
    %c0_i32 = arith.constant 0 : i32
    %c0_i32_0 = arith.constant 0 : i32
    %c0_i32_1 = arith.constant 0 : i32
    return %arg1, %c0_i32, %c0_i32_0 : i32, i32, i32
  }
  func.func @transform_17(%arg0: i32, %arg1: i32, %arg2: i32) -> (i32, i32, i32) {
    %c0_i32 = arith.constant 0 : i32
    %c0_i32_0 = arith.constant 0 : i32
    %c0_i32_1 = arith.constant 0 : i32
    return %arg0, %c0_i32, %c0_i32_0 : i32, i32, i32
  }
  func.func @transform_18(%arg0: i32, %arg1: i32, %arg2: i32) -> (i32, i32, i32) {
    %c0_i32 = arith.constant 0 : i32
    %c0_i32_0 = arith.constant 0 : i32
    %c0_i32_1 = arith.constant 0 : i32
    return %arg0, %c0_i32, %c0_i32_0 : i32, i32, i32
  }
}

</mosaic_0001>

<llo_original>
// kernel: tpu_custom_call.1
$region0: #{tpu_custom_call.1}
  #allocation0 [shape = 'u32[]', space=smem, size = 0x4, offset = 0x4, fixed_abs, tag = 'smem constant byte address 0x4 - core index']
  #allocation1 [shape = 'u32[72,128]{1,0:T(1,128)}', space=vmem, size = 0x9000, scoped, tag = 'internal scratch']
  #allocation2 [shape = 'bf16[1,16,128]{2,1,0:T(8,128)(2,1)}', space=vmem, size = 0x1000, scoped, tag = 'scratch operand']
  #allocation3 [shape = 'f32[1,16,128]{2,1,0:T(8,128)}', space=vmem, size = 0x2000, scoped, tag = 'scratch operand']
  %s0 = inlined_call_operand.hbm [shape: f32[2,16,128], index: 0, kind: input, shape index: {}]
  %s1 = inlined_call_operand.hbm [shape: f32[3,1,128], index: 1, kind: input, shape index: {}]
  %s2 = inlined_call_operand.hbm [shape: f32[3,1,128], index: 2, kind: input, shape index: {}]
  %s3 = inlined_call_operand.hbm [shape: bf16[3,128,128], index: 3, kind: input, shape index: {}]
  %s4 = inlined_call_operand.vmem [shape: f32[3,1,128], index: 4, kind: input, shape index: {}]
  %s5 = inlined_call_operand.hbm [shape: bf16[3,128,128], index: 5, kind: input, shape index: {}]
  %s6 = inlined_call_operand.hbm [shape: f32[3,1,128], index: 6, kind: input, shape index: {}]
  %s7 = inlined_call_operand.hbm [shape: bf16[3,128,128], index: 7, kind: input, shape index: {}]
  %s8 = inlined_call_operand.hbm [shape: f32[3,1,128], index: 8, kind: input, shape index: {}]
  %s9 = inlined_call_operand.hbm [shape: bf16[3,128,128], index: 9, kind: input, shape index: {}]
  %s10 = inlined_call_operand.hbm [shape: f32[3,1,128], index: 10, kind: input, shape index: {}]
  %s11 = inlined_call_operand.hbm [shape: f32[3,1,128], index: 11, kind: input, shape index: {}]
  %s12 = inlined_call_operand.hbm [shape: f32[3,1,128], index: 12, kind: input, shape index: {}]
  %s13 = inlined_call_operand.hbm [shape: bf16[3,128,256], index: 13, kind: input, shape index: {}]
  %s14 = inlined_call_operand.vmem [shape: f32[3,1,256], index: 14, kind: input, shape index: {}]
  %s15 = inlined_call_operand.hbm [shape: bf16[3,256,128], index: 15, kind: input, shape index: {}]
  %s16 = inlined_call_operand.vmem [shape: f32[3,1,128], index: 16, kind: input, shape index: {}]
  %s17 = inlined_call_operand.hbm [shape: f32[2,16,128], index: 17, kind: output, shape index: {0}]
  %s18 = inlined_call_operand.hbm [shape: f32[2,16,128], index: 18, kind: output, shape index: {1}]
  %19 = xla_tuple %s17, %s18
  %s20 = sld [smem:[#allocation0]]
  $region189: #{tpu_custom_call.1} parent=0
    _
  %s22 = ssub.s32 1, %s20
  %s23 = scalar_select 0, %s22, %s20
  $region1: #{tpu_custom_call.1} parent=0
    #allocation4 [shape = 'u8[16384]{0}', space=vmem, size = 0x4000, scoped, tag = 'input window, operand 0']
    #allocation5 [shape = 's32[2]{0}', space=sflag, size = 0x8, scoped, tag = 'scoped memory for tpu_custom_call.1']
    #allocation6 [shape = 's32[2]{0}', space=sflag, size = 0x8, scoped, tag = 'scoped memory for tpu_custom_call.1']
    #allocation7 [shape = 'u8[1024]{0}', space=vmem, size = 0x400, scoped, tag = 'input window, operand 1']
    #allocation8 [shape = 's32[2]{0}', space=sflag, size = 0x8, scoped, tag = 'scoped memory for tpu_custom_call.1']
    #allocation9 [shape = 'u8[1024]{0}', space=vmem, size = 0x400, scoped, tag = 'input window, operand 2']
    #allocation10 [shape = 'u8[65536]{0}', space=vmem, size = 0x10000, scoped, tag = 'input window, operand 3']
    #allocation11 [shape = 's32[2]{0}', space=sflag, size = 0x8, scoped, tag = 'scoped memory for tpu_custom_call.1']
    #allocation12 [shape = 'u8[65536]{0}', space=vmem, size = 0x10000, scoped, tag = 'input window, operand 5']
    #allocation13 [shape = 'u8[1024]{0}', space=vmem, size = 0x400, scoped, tag = 'input window, operand 6']
    #allocation14 [shape = 's32[2]{0}', space=sflag, size = 0x8, scoped, tag = 'scoped memory for tpu_custom_call.1']
    #allocation15 [shape = 'u8[65536]{0}', space=vmem, size = 0x10000, scoped, tag = 'input window, operand 7']
    #allocation16 [shape = 'u8[1024]{0}', space=vmem, size = 0x400, scoped, tag = 'input window, operand 8']
    #allocation17 [shape = 's32[2]{0}', space=sflag, size = 0x8, scoped, tag = 'scoped memory for tpu_custom_call.1']
    #allocation18 [shape = 'u8[65536]{0}', space=vmem, size = 0x10000, scoped, tag = 'input window, operand 9']
    #allocation19 [shape = 'u8[1024]{0}', space=vmem, size = 0x400, scoped, tag = 'input window, operand 10']
    #allocation20 [shape = 's32[2]{0}', space=sflag, size = 0x8, scoped, tag = 'scoped memory for tpu_custom_call.1']
    #allocation21 [shape = 'u8[1024]{0}', space=vmem, size = 0x400, scoped, tag = 'input window, operand 11']
    #allocation22 [shape = 'u8[1024]{0}', space=vmem, size = 0x400, scoped, tag = 'input window, operand 12']
    #allocation23 [shape = 's32[2]{0}', space=sflag, size = 0x8, scoped, tag = 'scoped memory for tpu_custom_call.1']
    #allocation24 [shape = 'u8[131072]{0}', space=vmem, size = 0x20000, scoped, tag = 'input window, operand 13']
    #allocation25 [shape = 'u8[131072]{0}', space=vmem, size = 0x20000, scoped, tag = 'input window, operand 15']
    #allocation26 [shape = 's32[2]{0}', space=sflag, size = 0x8, scoped, tag = 'scoped memory for tpu_custom_call.1']
    #allocation27 [shape = 'u8[16384]{0}', space=vmem, size = 0x4000, scoped, tag = 'output window, operand 0']
    #allocation28 [shape = 'u8[16384]{0}', space=vmem, size = 0x4000, scoped, tag = 'output window, operand 1']
    #allocation29 [shape = 's32[2]{0}', space=sflag, size = 0x8, scoped, tag = 'scoped memory for tpu_custom_call.1']
    %24 = vsyncpa [#allocation5], 0
    %s25 = scalar_lea.sflag [#allocation5], 1
    %26 = vsyncpa %s25, 0
    %27 = vsyncpa [#allocation8], 0
    %s28 = scalar_lea.sflag [#allocation8], 1
    %29 = vsyncpa %s28, 0
    %30 = vsyncpa [#allocation11], 0
    %s31 = scalar_lea.sflag [#allocation11], 1
    %32 = vsyncpa %s31, 0
    %33 = vsyncpa [#allocation14], 0
    %s34 = scalar_lea.sflag [#allocation14], 1
    %35 = vsyncpa %s34, 0
    %36 = vsyncpa [#allocation17], 0
    %s37 = scalar_lea.sflag [#allocation17], 1
    %38 = vsyncpa %s37, 0
    %39 = vsyncpa [#allocation20], 0
    %s40 = scalar_lea.sflag [#allocation20], 1
    %41 = vsyncpa %s40, 0
    %42 = vsyncpa [#allocation23], 0
    %s43 = scalar_lea.sflag [#allocation23], 1
    %44 = vsyncpa %s43, 0
    %45 = vsyncpa [#allocation26], 0
    %s46 = scalar_lea.sflag [#allocation26], 1
    %47 = vsyncpa %s46, 0
    %48 = vsyncpa [#allocation6], 0
    %s49 = scalar_lea.sflag [#allocation6], 1
    %50 = vsyncpa %s49, 0
    %51 = vsyncpa [#allocation29], 0
    %s52 = scalar_lea.sflag [#allocation29], 1
    %53 = vsyncpa %s52, 0
    loop: start=0, step=1, limit=8
    $region2: #{tpu_custom_call.1} parent=1 // loop_pre_header
      _
    $region3: #{tpu_custom_call.1} parent=1 // loop_header
      %s55 = sphi 0, %s59
      %p56 = scmp.ge.s32.totalorder %s55, 8
      %s62 = sphi 0, %s81
      %s63 = sphi 0, %s77
      %s64 = sphi 0, %s73
      %s65 = sphi 0, %s62
      %s66 = sphi 0, %s63
      %s67 = sphi 0, %s64
      %s68 = sphi 0, %s65
      %s69 = sphi 0, %s66
      %s70 = sphi 0, %s67
      %s84 = sphi 0, %s86
      %s87 = sphi 0, %s84
      %s88 = sphi 0, %s87
      %s104 = sphi 0, %s88
      %s110 = sphi 0, %s112
      %s113 = sphi 0, %s110
      %s114 = sphi 0, %s113
      %s130 = sphi 0, %s114
      %s136 = sphi 0, %s138
      %s139 = sphi 0, %s136
      %s140 = sphi 0, %s139
      %s156 = sphi 0, %s140
      %s162 = sphi 0, %s164
      %s165 = sphi 0, %s162
      %s166 = sphi 0, %s165
      %s182 = sphi 0, %s166
      %s188 = sphi 0, %s190
      %s191 = sphi 0, %s188
      %s192 = sphi 0, %s191
      %s208 = sphi 0, %s192
      %s214 = sphi 0, %s216
      %s217 = sphi 0, %s214
      %s218 = sphi 0, %s217
      %s234 = sphi 0, %s218
      %s240 = sphi 0, %s242
      %s243 = sphi 0, %s240
      %s244 = sphi 0, %s243
      %s260 = sphi 0, %s244
      %s266 = sphi 0, %s268
      %s269 = sphi 0, %s266
      %s270 = sphi 0, %s269
      %s286 = sphi 0, %s270
      %s292 = sphi 0, %s294
      %s295 = sphi 0, %s292
      %s296 = sphi 0, %s295
      %s312 = sphi 0, %s296
      %s318 = sphi 0, %s320
      %s321 = sphi 0, %s318
      %s322 = sphi 0, %s321
      %s338 = sphi 0, %s322
      %s344 = sphi 0, %s346
      %s347 = sphi 0, %s344
      %s348 = sphi 0, %s347
      %s364 = sphi 0, %s348
      %s370 = sphi 0, %s372
      %s373 = sphi 0, %s370
      %s374 = sphi 0, %s373
      %s390 = sphi 0, %s374
      %s396 = sphi 0, %s398
      %s399 = sphi 0, %s396
      %s400 = sphi 0, %s399
      %s416 = sphi 0, %s400
      %s424 = sphi 0, %s426
      %s427 = sphi 0, %s424
      %s428 = sphi 0, %s427
      %s444 = sphi 0, %s428
      %s452 = sphi 0, %s454
      %s455 = sphi 0, %s452
      %s456 = sphi 0, %s455
      %s472 = sphi 0, %s456
      %s480 = sphi 0, %s482
      %s483 = sphi 0, %s480
      %s484 = sphi 0, %s483
      %s500 = sphi 0, %s484
      %s506 = sphi 0, %s508
      %s509 = sphi 0, %s506
      %s510 = sphi 0, %s509
      %s526 = sphi 0, %s510
      %s532 = sphi 0, %s534
      %s535 = sphi 0, %s532
      %s536 = sphi 0, %s535
      %s552 = sphi 0, %s536
      %s558 = sphi 0, %s560
      %s561 = sphi 0, %s558
      %s562 = sphi 0, %s561
      %s578 = sphi 0, %s562
    $region4: #{tpu_custom_call.1} parent=1 // loop_header_branch
      %58 = sbr.rel (%p56) target = $region8
    $region5: #{tpu_custom_call.1} parent=1 // loop_body
      %s60 = ssub.s32 %s55, 1
      %s61 = ssub.s32 %s55, 2
      %s71 = sadd.s32 1, %s64
      %p72 = scmp.ge.s32.totalorder %s71, 1
      %s73 = scalar_select %p72, 0, %s71
      %s74 = sadd.s32 1, %s63
      %s75 = scalar_select %p72, %s74, %s63
      %p76 = scmp.ge.s32.totalorder %s75, 3
      %s77 = scalar_select %p76, 0, %s75
      %s78 = sadd.s32 1, %s62
      %s79 = scalar_select %p76, %s78, %s62
      %p80 = scmp.ge.s32.totalorder %s79, 2
      %s81 = scalar_select %p80, 0, %s79
      %s82 = ssub.s32 %s62, %s81
      %p83 = scmp.eq.s32.totalorder %s82, 0
      %s85 = sadd.s32 %s84, 1
      %s86 = scalar_select %p83, %s84, %s85
      %p89 = pneg %p83
      %p90 = scmp.eq.s32.totalorder %s55, 5
      %p91 = por %p89, %p90
      %p92 = scmp.ne.s32.totalorder %s84, %s87
      %p93 = scmp.eq.s32.totalorder %s55, 0
      %p94 = por %p92, %p93
      %p95 = scmp.ne.s32.totalorder %s84, %s87
      %p96 = scmp.eq.s32.totalorder %s60, 5
      %p97 = por %p95, %p96
      %p98 = scmp.ne.s32.totalorder %s87, %s88
      %p99 = scmp.eq.s32.totalorder %s60, 0
      %p100 = por %p98, %p99
      %p101 = scmp.ne.s32.totalorder %s87, %s88
      %p102 = scmp.eq.s32.totalorder %s61, 5
      %p103 = por %p101, %p102
      %p105 = scmp.ne.s32.totalorder %s88, %s104
      %p106 = scmp.eq.s32.totalorder %s61, 0
      %p107 = por %p105, %p106
      %s108 = ssub.s32 %s63, %s77
      %p109 = scmp.eq.s32.totalorder %s108, 0
      %s111 = sadd.s32 %s110, 1
      %s112 = scalar_select %p109, %s110, %s111
      %p115 = pneg %p109
      %p116 = scmp.eq.s32.totalorder %s55, 5
      %p117 = por %p115, %p116
      %p118 = scmp.ne.s32.totalorder %s110, %s113
      %p119 = scmp.eq.s32.totalorder %s55, 0
      %p120 = por %p118, %p119
      %p121 = scmp.ne.s32.totalorder %s110, %s113
      %p122 = scmp.eq.s32.totalorder %s60, 5
      %p123 = por %p121, %p122
      %p124 = scmp.ne.s32.totalorder %s113, %s114
      %p125 = scmp.eq.s32.totalorder %s60, 0
      %p126 = por %p124, %p125
      %p127 = scmp.ne.s32.totalorder %s113, %s114
      %p128 = scmp.eq.s32.totalorder %s61, 5
      %p129 = por %p127, %p128
      %p131 = scmp.ne.s32.totalorder %s114, %s130
      %p132 = scmp.eq.s32.totalorder %s61, 0
      %p133 = por %p131, %p132
      %s134 = ssub.s32 %s63, %s77
      %p135 = scmp.eq.s32.totalorder %s134, 0
      %s137 = sadd.s32 %s136, 1
      %s138 = scalar_select %p135, %s136, %s137
      %p141 = pneg %p135
      %p142 = scmp.eq.s32.totalorder %s55, 5
      %p143 = por %p141, %p142
      %p144 = scmp.ne.s32.totalorder %s136, %s139
      %p145 = scmp.eq.s32.totalorder %s55, 0
      %p146 = por %p144, %p145
      %p147 = scmp.ne.s32.totalorder %s136, %s139
      %p148 = scmp.eq.s32.totalorder %s60, 5
      %p149 = por %p147, %p148
      %p150 = scmp.ne.s32.totalorder %s139, %s140
      %p151 = scmp.eq.s32.totalorder %s60, 0
      %p152 = por %p150, %p151
      %p153 = scmp.ne.s32.totalorder %s139, %s140
      %p154 = scmp.eq.s32.totalorder %s61, 5
      %p155 = por %p153, %p154
      %p157 = scmp.ne.s32.totalorder %s140, %s156
      %p158 = scmp.eq.s32.totalorder %s61, 0
      %p159 = por %p157, %p158
      %s160 = ssub.s32 %s63, %s77
      %p161 = scmp.eq.s32.totalorder %s160, 0
      %s163 = sadd.s32 %s162, 1
      %s164 = scalar_select %p161, %s162, %s163
      %p167 = pneg %p161
      %p168 = scmp.eq.s32.totalorder %s55, 5
      %p169 = por %p167, %p168
      %p170 = scmp.ne.s32.totalorder %s162, %s165
      %p171 = scmp.eq.s32.totalorder %s55, 0
      %p172 = por %p170, %p171
      %p173 = scmp.ne.s32.totalorder %s162, %s165
      %p174 = scmp.eq.s32.totalorder %s60, 5
      %p175 = por %p173, %p174
      %p176 = scmp.ne.s32.totalorder %s165, %s166
      %p177 = scmp.eq.s32.totalorder %s60, 0
      %p178 = por %p176, %p177
      %p179 = scmp.ne.s32.totalorder %s165, %s166
      %p180 = scmp.eq.s32.totalorder %s61, 5
      %p181 = por %p179, %p180
      %p183 = scmp.ne.s32.totalorder %s166, %s182
      %p184 = scmp.eq.s32.totalorder %s61, 0
      %p185 = por %p183, %p184
      %s186 = ssub.s32 %s63, %s77
      %p187 = scmp.eq.s32.totalorder %s186, 0
      %s189 = sadd.s32 %s188, 1
      %s190 = scalar_select %p187, %s188, %s189
      %p193 = pneg %p187
      %p194 = scmp.eq.s32.totalorder %s55, 5
      %p195 = por %p193, %p194
      %p196 = scmp.ne.s32.totalorder %s188, %s191
      %p197 = scmp.eq.s32.totalorder %s55, 0
      %p198 = por %p196, %p197
      %p199 = scmp.ne.s32.totalorder %s188, %s191
      %p200 = scmp.eq.s32.totalorder %s60, 5
      %p201 = por %p199, %p200
      %p202 = scmp.ne.s32.totalorder %s191, %s192
      %p203 = scmp.eq.s32.totalorder %s60, 0
      %p204 = por %p202, %p203
      %p205 = scmp.ne.s32.totalorder %s191, %s192
      %p206 = scmp.eq.s32.totalorder %s61, 5
      %p207 = por %p205, %p206
      %p209 = scmp.ne.s32.totalorder %s192, %s208
      %p210 = scmp.eq.s32.totalorder %s61, 0
      %p211 = por %p209, %p210
      %s212 = ssub.s32 %s63, %s77
      %p213 = scmp.eq.s32.totalorder %s212, 0
      %s215 = sadd.s32 %s214, 1
      %s216 = scalar_select %p213, %s214, %s215
      %p219 = pneg %p213
      %p220 = scmp.eq.s32.totalorder %s55, 5
      %p221 = por %p219, %p220
      %p222 = scmp.ne.s32.totalorder %s214, %s217
      %p223 = scmp.eq.s32.totalorder %s55, 0
      %p224 = por %p222, %p223
      %p225 = scmp.ne.s32.totalorder %s214, %s217
      %p226 = scmp.eq.s32.totalorder %s60, 5
      %p227 = por %p225, %p226
      %p228 = scmp.ne.s32.totalorder %s217, %s218
      %p229 = scmp.eq.s32.totalorder %s60, 0
      %p230 = por %p228, %p229
      %p231 = scmp.ne.s32.totalorder %s217, %s218
      %p232 = scmp.eq.s32.totalorder %s61, 5
      %p233 = por %p231, %p232
      %p235 = scmp.ne.s32.totalorder %s218, %s234
      %p236 = scmp.eq.s32.totalorder %s61, 0
      %p237 = por %p235, %p236
      %s238 = ssub.s32 %s63, %s77
      %p239 = scmp.eq.s32.totalorder %s238, 0
      %s241 = sadd.s32 %s240, 1
      %s242 = scalar_select %p239, %s240, %s241
      %p245 = pneg %p239
      %p246 = scmp.eq.s32.totalorder %s55, 5
      %p247 = por %p245, %p246
      %p248 = scmp.ne.s32.totalorder %s240, %s243
      %p249 = scmp.eq.s32.totalorder %s55, 0
      %p250 = por %p248, %p249
      %p251 = scmp.ne.s32.totalorder %s240, %s243
      %p252 = scmp.eq.s32.totalorder %s60, 5
      %p253 = por %p251, %p252
      %p254 = scmp.ne.s32.totalorder %s243, %s244
      %p255 = scmp.eq.s32.totalorder %s60, 0
      %p256 = por %p254, %p255
      %p257 = scmp.ne.s32.totalorder %s243, %s244
      %p258 = scmp.eq.s32.totalorder %s61, 5
      %p259 = por %p257, %p258
      %p261 = scmp.ne.s32.totalorder %s244, %s260
      %p262 = scmp.eq.s32.totalorder %s61, 0
      %p263 = por %p261, %p262
      %s264 = ssub.s32 %s63, %s77
      %p265 = scmp.eq.s32.totalorder %s264, 0
      %s267 = sadd.s32 %s266, 1
      %s268 = scalar_select %p265, %s266, %s267
      %p271 = pneg %p265
      %p272 = scmp.eq.s32.totalorder %s55, 5
      %p273 = por %p271, %p272
      %p274 = scmp.ne.s32.totalorder %s266, %s269
      %p275 = scmp.eq.s32.totalorder %s55, 0
      %p276 = por %p274, %p275
      %p277 = scmp.ne.s32.totalorder %s266, %s269
      %p278 = scmp.eq.s32.totalorder %s60, 5
      %p279 = por %p277, %p278
      %p280 = scmp.ne.s32.totalorder %s269, %s270
      %p281 = scmp.eq.s32.totalorder %s60, 0
      %p282 = por %p280, %p281
      %p283 = scmp.ne.s32.totalorder %s269, %s270
      %p284 = scmp.eq.s32.totalorder %s61, 5
      %p285 = por %p283, %p284
      %p287 = scmp.ne.s32.totalorder %s270, %s286
      %p288 = scmp.eq.s32.totalorder %s61, 0
      %p289 = por %p287, %p288
      %s290 = ssub.s32 %s63, %s77
      %p291 = scmp.eq.s32.totalorder %s290, 0
      %s293 = sadd.s32 %s292, 1
      %s294 = scalar_select %p291, %s292, %s293
      %p297 = pneg %p291
      %p298 = scmp.eq.s32.totalorder %s55, 5
      %p299 = por %p297, %p298
      %p300 = scmp.ne.s32.totalorder %s292, %s295
      %p301 = scmp.eq.s32.totalorder %s55, 0
      %p302 = por %p300, %p301
      %p303 = scmp.ne.s32.totalorder %s292, %s295
      %p304 = scmp.eq.s32.totalorder %s60, 5
      %p305 = por %p303, %p304
      %p306 = scmp.ne.s32.totalorder %s295, %s296
      %p307 = scmp.eq.s32.totalorder %s60, 0
      %p308 = por %p306, %p307
      %p309 = scmp.ne.s32.totalorder %s295, %s296
      %p310 = scmp.eq.s32.totalorder %s61, 5
      %p311 = por %p309, %p310
      %p313 = scmp.ne.s32.totalorder %s296, %s312
      %p314 = scmp.eq.s32.totalorder %s61, 0
      %p315 = por %p313, %p314
      %s316 = ssub.s32 %s63, %s77
      %p317 = scmp.eq.s32.totalorder %s316, 0
      %s319 = sadd.s32 %s318, 1
      %s320 = scalar_select %p317, %s318, %s319
      %p323 = pneg %p317
      %p324 = scmp.eq.s32.totalorder %s55, 5
      %p325 = por %p323, %p324
      %p326 = scmp.ne.s32.totalorder %s318, %s321
      %p327 = scmp.eq.s32.totalorder %s55, 0
      %p328 = por %p326, %p327
      %p329 = scmp.ne.s32.totalorder %s318, %s321
      %p330 = scmp.eq.s32.totalorder %s60, 5
      %p331 = por %p329, %p330
      %p332 = scmp.ne.s32.totalorder %s321, %s322
      %p333 = scmp.eq.s32.totalorder %s60, 0
      %p334 = por %p332, %p333
      %p335 = scmp.ne.s32.totalorder %s321, %s322
      %p336 = scmp.eq.s32.totalorder %s61, 5
      %p337 = por %p335, %p336
      %p339 = scmp.ne.s32.totalorder %s322, %s338
      %p340 = scmp.eq.s32.totalorder %s61, 0
      %p341 = por %p339, %p340
      %s342 = ssub.s32 %s63, %s77
      %p343 = scmp.eq.s32.totalorder %s342, 0
      %s345 = sadd.s32 %s344, 1
      %s346 = scalar_select %p343, %s344, %s345
      %p349 = pneg %p343
      %p350 = scmp.eq.s32.totalorder %s55, 5
      %p351 = por %p349, %p350
      %p352 = scmp.ne.s32.totalorder %s344, %s347
      %p353 = scmp.eq.s32.totalorder %s55, 0
      %p354 = por %p352, %p353
      %p355 = scmp.ne.s32.totalorder %s344, %s347
      %p356 = scmp.eq.s32.totalorder %s60, 5
      %p357 = por %p355, %p356
      %p358 = scmp.ne.s32.totalorder %s347, %s348
      %p359 = scmp.eq.s32.totalorder %s60, 0
      %p360 = por %p358, %p359
      %p361 = scmp.ne.s32.totalorder %s347, %s348
      %p362 = scmp.eq.s32.totalorder %s61, 5
      %p363 = por %p361, %p362
      %p365 = scmp.ne.s32.totalorder %s348, %s364
      %p366 = scmp.eq.s32.totalorder %s61, 0
      %p367 = por %p365, %p366
      %s368 = ssub.s32 %s63, %s77
      %p369 = scmp.eq.s32.totalorder %s368, 0
      %s371 = sadd.s32 %s370, 1
      %s372 = scalar_select %p369, %s370, %s371
      %p375 = pneg %p369
      %p376 = scmp.eq.s32.totalorder %s55, 5
      %p377 = por %p375, %p376
      %p378 = scmp.ne.s32.totalorder %s370, %s373
      %p379 = scmp.eq.s32.totalorder %s55, 0
      %p380 = por %p378, %p379
      %p381 = scmp.ne.s32.totalorder %s370, %s373
      %p382 = scmp.eq.s32.totalorder %s60, 5
      %p383 = por %p381, %p382
      %p384 = scmp.ne.s32.totalorder %s373, %s374
      %p385 = scmp.eq.s32.totalorder %s60, 0
      %p386 = por %p384, %p385
      %p387 = scmp.ne.s32.totalorder %s373, %s374
      %p388 = scmp.eq.s32.totalorder %s61, 5
      %p389 = por %p387, %p388
      %p391 = scmp.ne.s32.totalorder %s374, %s390
      %p392 = scmp.eq.s32.totalorder %s61, 0
      %p393 = por %p391, %p392
      %s394 = ssub.s32 %s63, %s77
      %p395 = scmp.eq.s32.totalorder %s394, 0
      %s397 = sadd.s32 %s396, 1
      %s398 = scalar_select %p395, %s396, %s397
      %p401 = pneg %p395
      %p402 = scmp.eq.s32.totalorder %s55, 5
      %p403 = por %p401, %p402
      %p404 = scmp.ne.s32.totalorder %s396, %s399
      %p405 = scmp.eq.s32.totalorder %s55, 0
      %p406 = por %p404, %p405
      %p407 = scmp.ne.s32.totalorder %s396, %s399
      %p408 = scmp.eq.s32.totalorder %s60, 5
      %p409 = por %p407, %p408
      %p410 = scmp.ne.s32.totalorder %s399, %s400
      %p411 = scmp.eq.s32.totalorder %s60, 0
      %p412 = por %p410, %p411
      %p413 = scmp.ne.s32.totalorder %s399, %s400
      %p414 = scmp.eq.s32.totalorder %s61, 5
      %p415 = por %p413, %p414
      %p417 = scmp.ne.s32.totalorder %s400, %s416
      %p418 = scmp.eq.s32.totalorder %s61, 0
      %p419 = por %p417, %p418
      %s420 = ssub.s32 %s63, %s77
      %s421 = ssub.s32 %s64, %s73
      %s422 = sor.u32 %s420, %s421
      %p423 = scmp.eq.s32.totalorder %s422, 0
      %s425 = sadd.s32 %s424, 1
      %s426 = scalar_select %p423, %s424, %s425
      %p429 = pneg %p423
      %p430 = scmp.eq.s32.totalorder %s55, 5
      %p431 = por %p429, %p430
      %p432 = scmp.ne.s32.totalorder %s424, %s427
      %p433 = scmp.eq.s32.totalorder %s55, 0
      %p434 = por %p432, %p433
      %p435 = scmp.ne.s32.totalorder %s424, %s427
      %p436 = scmp.eq.s32.totalorder %s60, 5
      %p437 = por %p435, %p436
      %p438 = scmp.ne.s32.totalorder %s427, %s428
      %p439 = scmp.eq.s32.totalorder %s60, 0
      %p440 = por %p438, %p439
      %p441 = scmp.ne.s32.totalorder %s427, %s428
      %p442 = scmp.eq.s32.totalorder %s61, 5
      %p443 = por %p441, %p442
      %p445 = scmp.ne.s32.totalorder %s428, %s444
      %p446 = scmp.eq.s32.totalorder %s61, 0
      %p447 = por %p445, %p446
      %s448 = ssub.s32 %s63, %s77
      %s449 = ssub.s32 %s64, %s73
      %s450 = sor.u32 %s448, %s449
      %p451 = scmp.eq.s32.totalorder %s450, 0
      %s453 = sadd.s32 %s452, 1
      %s454 = scalar_select %p451, %s452, %s453
      %p457 = pneg %p451
      %p458 = scmp.eq.s32.totalorder %s55, 5
      %p459 = por %p457, %p458
      %p460 = scmp.ne.s32.totalorder %s452, %s455
      %p461 = scmp.eq.s32.totalorder %s55, 0
      %p462 = por %p460, %p461
      %p463 = scmp.ne.s32.totalorder %s452, %s455
      %p464 = scmp.eq.s32.totalorder %s60, 5
      %p465 = por %p463, %p464
      %p466 = scmp.ne.s32.totalorder %s455, %s456
      %p467 = scmp.eq.s32.totalorder %s60, 0
      %p468 = por %p466, %p467
      %p469 = scmp.ne.s32.totalorder %s455, %s456
      %p470 = scmp.eq.s32.totalorder %s61, 5
      %p471 = por %p469, %p470
      %p473 = scmp.ne.s32.totalorder %s456, %s472
      %p474 = scmp.eq.s32.totalorder %s61, 0
      %p475 = por %p473, %p474
      %s476 = ssub.s32 %s63, %s77
      %s477 = ssub.s32 %s64, %s73
      %s478 = sor.u32 %s476, %s477
      %p479 = scmp.eq.s32.totalorder %s478, 0
      %s481 = sadd.s32 %s480, 1
      %s482 = scalar_select %p479, %s480, %s481
      %p485 = pneg %p479
      %p486 = scmp.eq.s32.totalorder %s55, 5
      %p487 = por %p485, %p486
      %p488 = scmp.ne.s32.totalorder %s480, %s483
      %p489 = scmp.eq.s32.totalorder %s55, 0
      %p490 = por %p488, %p489
      %p491 = scmp.ne.s32.totalorder %s480, %s483
      %p492 = scmp.eq.s32.totalorder %s60, 5
      %p493 = por %p491, %p492
      %p494 = scmp.ne.s32.totalorder %s483, %s484
      %p495 = scmp.eq.s32.totalorder %s60, 0
      %p496 = por %p494, %p495
      %p497 = scmp.ne.s32.totalorder %s483, %s484
      %p498 = scmp.eq.s32.totalorder %s61, 5
      %p499 = por %p497, %p498
      %p501 = scmp.ne.s32.totalorder %s484, %s500
      %p502 = scmp.eq.s32.totalorder %s61, 0
      %p503 = por %p501, %p502
      %s504 = ssub.s32 %s63, %s77
      %p505 = scmp.eq.s32.totalorder %s504, 0
      %s507 = sadd.s32 %s506, 1
      %s508 = scalar_select %p505, %s506, %s507
      %p511 = pneg %p505
      %p512 = scmp.eq.s32.totalorder %s55, 5
      %p513 = por %p511, %p512
      %p514 = scmp.ne.s32.totalorder %s506, %s509
      %p515 = scmp.eq.s32.totalorder %s55, 0
      %p516 = por %p514, %p515
      %p517 = scmp.ne.s32.totalorder %s506, %s509
      %p518 = scmp.eq.s32.totalorder %s60, 5
      %p519 = por %p517, %p518
      %p520 = scmp.ne.s32.totalorder %s509, %s510
      %p521 = scmp.eq.s32.totalorder %s60, 0
      %p522 = por %p520, %p521
      %p523 = scmp.ne.s32.totalorder %s509, %s510
      %p524 = scmp.eq.s32.totalorder %s61, 5
      %p525 = por %p523, %p524
      %p527 = scmp.ne.s32.totalorder %s510, %s526
      %p528 = scmp.eq.s32.totalorder %s61, 0
      %p529 = por %p527, %p528
      %s530 = ssub.s32 %s62, %s81
      %p531 = scmp.eq.s32.totalorder %s530, 0
      %s533 = sadd.s32 %s532, 1
      %s534 = scalar_select %p531, %s532, %s533
      %p537 = pneg %p531
      %p538 = scmp.eq.s32.totalorder %s55, 5
      %p539 = por %p537, %p538
      %p540 = scmp.ne.s32.totalorder %s532, %s535
      %p541 = scmp.eq.s32.totalorder %s55, 0
      %p542 = por %p540, %p541
      %p543 = scmp.ne.s32.totalorder %s532, %s535
      %p544 = scmp.eq.s32.totalorder %s60, 5
      %p545 = por %p543, %p544
      %p546 = scmp.ne.s32.totalorder %s535, %s536
      %p547 = scmp.eq.s32.totalorder %s60, 0
      %p548 = por %p546, %p547
      %p549 = scmp.ne.s32.totalorder %s535, %s536
      %p550 = scmp.eq.s32.totalorder %s61, 5
      %p551 = por %p549, %p550
      %p553 = scmp.ne.s32.totalorder %s536, %s552
      %p554 = scmp.eq.s32.totalorder %s61, 0
      %p555 = por %p553, %p554
      %s556 = ssub.s32 %s62, %s81
      %p557 = scmp.eq.s32.totalorder %s556, 0
      %s559 = sadd.s32 %s558, 1
      %s560 = scalar_select %p557, %s558, %s559
      %p563 = pneg %p557
      %p564 = scmp.eq.s32.totalorder %s55, 5
      %p565 = por %p563, %p564
      %p566 = scmp.ne.s32.totalorder %s558, %s561
      %p567 = scmp.eq.s32.totalorder %s55, 0
      %p568 = por %p566, %p567
      %p569 = scmp.ne.s32.totalorder %s558, %s561
      %p570 = scmp.eq.s32.totalorder %s60, 5
      %p571 = por %p569, %p570
      %p572 = scmp.ne.s32.totalorder %s561, %s562
      %p573 = scmp.eq.s32.totalorder %s60, 0
      %p574 = por %p572, %p573
      %p575 = scmp.ne.s32.totalorder %s561, %s562
      %p576 = scmp.eq.s32.totalorder %s61, 5
      %p577 = por %p575, %p576
      %p579 = scmp.ne.s32.totalorder %s562, %s578
      %p580 = scmp.eq.s32.totalorder %s61, 0
      %p581 = por %p579, %p580
      %p582 = scmp.le.s32.totalorder 1, %s55
      %p583 = scmp.lt.s32.totalorder %s55, 7
      %p584 = pnand %p582, %p583
      %p585 = pneg %p584
      // Predicated region
      $region9: #{tpu_custom_call.1} parent=5 // pred_check
        _
      $region10: #{tpu_custom_call.1} parent=5 // pred_check_branch
        %587 = sbr.rel (%p584) target = $region12
      $region11: #{tpu_custom_call.1} parent=5 // pred_region
        %s588 = ssub.s32 %s55, 1
      $region12: #{tpu_custom_call.1} parent=5 // pred_fallthru
        _
      %p589 = scmp.lt.s32.totalorder %s55, 6
      // Predicated region
      $region13: #{tpu_custom_call.1} parent=5 // pred_check
        %p590 = pneg %p589
      $region14: #{tpu_custom_call.1} parent=5 // pred_check_branch
        %592 = sbr.rel (%p590) target = $region16
      $region15: #{tpu_custom_call.1} parent=5 // pred_region
        // Predicated region
        $region17: #{tpu_custom_call.1} parent=15 // pred_check
          %p593 = pneg %p94
        $region18: #{tpu_custom_call.1} parent=15 // pred_check_branch
          %595 = sbr.rel (%p593) target = $region20
        $region19: #{tpu_custom_call.1} parent=15 // pred_region
          %s596 = sand.u32 %s84, 1
          %s597 = scalar_lea.sflag [#allocation5], %s596
          %s598 = sand.u32 %s84, 1
          %s599 = smul.addr %s598, 16
          %s600 = scalar_lea.vmem [#allocation4], %s599
          %602 = vsyncadd %s597, 0
          %s603 = smul.addr %s62, 2
          %s604 = smul.addr %s603, 8
          %s605 = scalar_lea.hbm %s0, %s604
          %s606 = sshll.u32 %s605, 4
          %s607 = int_to_ptr.hbm [resolvable:$true] %s606
          %s608 = sshll.u32 %s600, 4
          %s609 = int_to_ptr.vmem [resolvable:$true] %s608
          %614 = dma.hbm_to_vmem [thread:$0]  %s607, 256, %s609, %s597, 128, 128, 8
        $region20: #{tpu_custom_call.1} parent=15 // pred_fallthru
          _
        // Predicated region
        $region21: #{tpu_custom_call.1} parent=15 // pred_check
          %p615 = pneg %p120
        $region22: #{tpu_custom_call.1} parent=15 // pred_check_branch
          %617 = sbr.rel (%p615) target = $region24
        $region23: #{tpu_custom_call.1} parent=15 // pred_region
          %s618 = sand.u32 %s55, 1
          %s619 = scalar_lea.sflag [#allocation8], %s618
          %s620 = sand.u32 %s110, 1
          %s621 = scalar_lea.vmem [#allocation7], %s620
          %623 = vsyncadd %s619, 0
          %s624 = scalar_lea.hbm %s1, %s63
          %s626 = sshll.u32 %s624, 4
          %s627 = int_to_ptr.hbm [resolvable:$true] %s626
          %s628 = sshll.u32 %s621, 4
          %s629 = int_to_ptr.vmem [resolvable:$true] %s628
          %631 = dma.hbm_to_vmem [thread:$0]  %s627, 16, %s629, %s619
        $region24: #{tpu_custom_call.1} parent=15 // pred_fallthru
          _
        // Predicated region
        $region25: #{tpu_custom_call.1} parent=15 // pred_check
          %p632 = pneg %p146
        $region26: #{tpu_custom_call.1} parent=15 // pred_check_branch
          %634 = sbr.rel (%p632) target = $region28
        $region27: #{tpu_custom_call.1} parent=15 // pred_region
          %s635 = sand.u32 %s55, 1
          %s636 = scalar_lea.sflag [#allocation8], %s635
          %s637 = sand.u32 %s136, 1
          %s638 = scalar_lea.vmem [#allocation9], %s637
          %640 = vsyncadd %s636, 0
          %s641 = scalar_lea.hbm %s2, %s63
          %s643 = sshll.u32 %s641, 4
          %s644 = int_to_ptr.hbm [resolvable:$true] %s643
          %s645 = sshll.u32 %s638, 4
          %s646 = int_to_ptr.vmem [resolvable:$true] %s645
          %648 = dma.hbm_to_vmem [thread:$0]  %s644, 16, %s646, %s636
        $region28: #{tpu_custom_call.1} parent=15 // pred_fallthru
          _
        // Predicated region
        $region29: #{tpu_custom_call.1} parent=15 // pred_check
          %p649 = pneg %p172
        $region30: #{tpu_custom_call.1} parent=15 // pred_check_branch
          %651 = sbr.rel (%p649) target = $region32
        $region31: #{tpu_custom_call.1} parent=15 // pred_region
          %s652 = sand.u32 %s55, 1
          %s653 = scalar_lea.sflag [#allocation11], %s652
          %s654 = sand.u32 %s162, 1
          %s655 = smul.addr %s654, 64
          %s656 = scalar_lea.vmem [#allocation10], %s655
          %658 = vsyncadd %s653, 0
          %s659 = smul.addr %s63, 16
          %s660 = smul.addr %s659, 4
          %s661 = scalar_lea.hbm %s3, %s660
          %s662 = sshll.u32 %s661, 4
          %s663 = int_to_ptr.hbm [resolvable:$true] %s662
          %s664 = sshll.u32 %s656, 4
          %s665 = int_to_ptr.vmem [resolvable:$true] %s664
          %670 = dma.hbm_to_vmem [thread:$0]  %s663, 1024, %s665, %s653, 64, 64, 4
        $region32: #{tpu_custom_call.1} parent=15 // pred_fallthru
          _
        // Predicated region
        $region33: #{tpu_custom_call.1} parent=15 // pred_check
          %p671 = pneg %p198
        $region34: #{tpu_custom_call.1} parent=15 // pred_check_branch
          %673 = sbr.rel (%p671) target = $region36
        $region35: #{tpu_custom_call.1} parent=15 // pred_region
          %p674 = scmp.lt.s32.totalorder %s63, 2
          %s675 = scalar_select %p674, %s63, 2
          %s676 = scalar_lea.vmem %s4, %s675
        $region36: #{tpu_custom_call.1} parent=15 // pred_fallthru
          _
        // Predicated region
        $region37: #{tpu_custom_call.1} parent=15 // pred_check
          %p677 = pneg %p224
        $region38: #{tpu_custom_call.1} parent=15 // pred_check_branch
          %679 = sbr.rel (%p677) target = $region40
        $region39: #{tpu_custom_call.1} parent=15 // pred_region
          %s680 = sand.u32 %s55, 1
          %s681 = scalar_lea.sflag [#allocation11], %s680
          %s682 = sand.u32 %s214, 1
          %s683 = smul.addr %s682, 64
          %s684 = scalar_lea.vmem [#allocation12], %s683
          %686 = vsyncadd %s681, 0
          %s687 = smul.addr %s63, 16
          %s688 = smul.addr %s687, 4
          %s689 = scalar_lea.hbm %s5, %s688
          %s690 = sshll.u32 %s689, 4
          %s691 = int_to_ptr.hbm [resolvable:$true] %s690
          %s692 = sshll.u32 %s684, 4
          %s693 = int_to_ptr.vmem [resolvable:$true] %s692
          %698 = dma.hbm_to_vmem [thread:$0]  %s691, 1024, %s693, %s681, 64, 64, 4
        $region40: #{tpu_custom_call.1} parent=15 // pred_fallthru
          _
        // Predicated region
        $region41: #{tpu_custom_call.1} parent=15 // pred_check
          %p699 = pneg %p250
        $region42: #{tpu_custom_call.1} parent=15 // pred_check_branch
          %701 = sbr.rel (%p699) target = $region44
        $region43: #{tpu_custom_call.1} parent=15 // pred_region
          %s702 = sand.u32 %s55, 1
          %s703 = scalar_lea.sflag [#allocation14], %s702
          %s704 = sand.u32 %s240, 1
          %s705 = scalar_lea.vmem [#allocation13], %s704
          %707 = vsyncadd %s703, 0
          %s708 = scalar_lea.hbm %s6, %s63
          %s710 = sshll.u32 %s708, 4
          %s711 = int_to_ptr.hbm [resolvable:$true] %s710
          %s712 = sshll.u32 %s705, 4
          %s713 = int_to_ptr.vmem [resolvable:$true] %s712
          %715 = dma.hbm_to_vmem [thread:$0]  %s711, 16, %s713, %s703
        $region44: #{tpu_custom_call.1} parent=15 // pred_fallthru
          _
        // Predicated region
        $region45: #{tpu_custom_call.1} parent=15 // pred_check
          %p716 = pneg %p276
        $region46: #{tpu_custom_call.1} parent=15 // pred_check_branch
          %718 = sbr.rel (%p716) target = $region48
        $region47: #{tpu_custom_call.1} parent=15 // pred_region
          %s719 = sand.u32 %s55, 1
          %s720 = scalar_lea.sflag [#allocation14], %s719
          %s721 = sand.u32 %s266, 1
          %s722 = smul.addr %s721, 64
          %s723 = scalar_lea.vmem [#allocation15], %s722
          %725 = vsyncadd %s720, 0
          %s726 = smul.addr %s63, 16
          %s727 = smul.addr %s726, 4
          %s728 = scalar_lea.hbm %s7, %s727
          %s729 = sshll.u32 %s728, 4
          %s730 = int_to_ptr.hbm [resolvable:$true] %s729
          %s731 = sshll.u32 %s723, 4
          %s732 = int_to_ptr.vmem [resolvable:$true] %s731
          %737 = dma.hbm_to_vmem [thread:$0]  %s730, 1024, %s732, %s720, 64, 64, 4
        $region48: #{tpu_custom_call.1} parent=15 // pred_fallthru
          _
        // Predicated region
        $region49: #{tpu_custom_call.1} parent=15 // pred_check
          %p738 = pneg %p302
        $region50: #{tpu_custom_call.1} parent=15 // pred_check_branch
          %740 = sbr.rel (%p738) target = $region52
        $region51: #{tpu_custom_call.1} parent=15 // pred_region
          %s741 = sand.u32 %s55, 1
          %s742 = scalar_lea.sflag [#allocation17], %s741
          %s743 = sand.u32 %s292, 1
          %s744 = scalar_lea.vmem [#allocation16], %s743
          %746 = vsyncadd %s742, 0
          %s747 = scalar_lea.hbm %s8, %s63
          %s749 = sshll.u32 %s747, 4
          %s750 = int_to_ptr.hbm [resolvable:$true] %s749
          %s751 = sshll.u32 %s744, 4
          %s752 = int_to_ptr.vmem [resolvable:$true] %s751
          %754 = dma.hbm_to_vmem [thread:$0]  %s750, 16, %s752, %s742
        $region52: #{tpu_custom_call.1} parent=15 // pred_fallthru
          _
        // Predicated region
        $region53: #{tpu_custom_call.1} parent=15 // pred_check
          %p755 = pneg %p328
        $region54: #{tpu_custom_call.1} parent=15 // pred_check_branch
          %757 = sbr.rel (%p755) target = $region56
        $region55: #{tpu_custom_call.1} parent=15 // pred_region
          %s758 = sand.u32 %s55, 1
          %s759 = scalar_lea.sflag [#allocation17], %s758
          %s760 = sand.u32 %s318, 1
          %s761 = smul.addr %s760, 64
          %s762 = scalar_lea.vmem [#allocation18], %s761
          %764 = vsyncadd %s759, 0
          %s765 = smul.addr %s63, 16
          %s766 = smul.addr %s765, 4
          %s767 = scalar_lea.hbm %s9, %s766
          %s768 = sshll.u32 %s767, 4
          %s769 = int_to_ptr.hbm [resolvable:$true] %s768
          %s770 = sshll.u32 %s762, 4
          %s771 = int_to_ptr.vmem [resolvable:$true] %s770
          %776 = dma.hbm_to_vmem [thread:$0]  %s769, 1024, %s771, %s759, 64, 64, 4
        $region56: #{tpu_custom_call.1} parent=15 // pred_fallthru
          _
        // Predicated region
        $region57: #{tpu_custom_call.1} parent=15 // pred_check
          %p777 = pneg %p354
        $region58: #{tpu_custom_call.1} parent=15 // pred_check_branch
          %779 = sbr.rel (%p777) target = $region60
        $region59: #{tpu_custom_call.1} parent=15 // pred_region
          %s780 = sand.u32 %s55, 1
          %s781 = scalar_lea.sflag [#allocation20], %s780
          %s782 = sand.u32 %s344, 1
          %s783 = scalar_lea.vmem [#allocation19], %s782
          %785 = vsyncadd %s781, 0
          %s786 = scalar_lea.hbm %s10, %s63
          %s788 = sshll.u32 %s786, 4
          %s789 = int_to_ptr.hbm [resolvable:$true] %s788
          %s790 = sshll.u32 %s783, 4
          %s791 = int_to_ptr.vmem [resolvable:$true] %s790
          %793 = dma.hbm_to_vmem [thread:$0]  %s789, 16, %s791, %s781
        $region60: #{tpu_custom_call.1} parent=15 // pred_fallthru
          _
        // Predicated region
        $region61: #{tpu_custom_call.1} parent=15 // pred_check
          %p794 = pneg %p380
        $region62: #{tpu_custom_call.1} parent=15 // pred_check_branch
          %796 = sbr.rel (%p794) target = $region64
        $region63: #{tpu_custom_call.1} parent=15 // pred_region
          %s797 = sand.u32 %s55, 1
          %s798 = scalar_lea.sflag [#allocation20], %s797
          %s799 = sand.u32 %s370, 1
          %s800 = scalar_lea.vmem [#allocation21], %s799
          %802 = vsyncadd %s798, 0
          %s803 = scalar_lea.hbm %s11, %s63
          %s805 = sshll.u32 %s803, 4
          %s806 = int_to_ptr.hbm [resolvable:$true] %s805
          %s807 = sshll.u32 %s800, 4
          %s808 = int_to_ptr.vmem [resolvable:$true] %s807
          %810 = dma.hbm_to_vmem [thread:$0]  %s806, 16, %s808, %s798
        $region64: #{tpu_custom_call.1} parent=15 // pred_fallthru
          _
        // Predicated region
        $region65: #{tpu_custom_call.1} parent=15 // pred_check
          %p811 = pneg %p406
        $region66: #{tpu_custom_call.1} parent=15 // pred_check_branch
          %813 = sbr.rel (%p811) target = $region68
        $region67: #{tpu_custom_call.1} parent=15 // pred_region
          %s814 = sand.u32 %s55, 1
          %s815 = scalar_lea.sflag [#allocation23], %s814
          %s816 = sand.u32 %s396, 1
          %s817 = scalar_lea.vmem [#allocation22], %s816
          %819 = vsyncadd %s815, 0
          %s820 = scalar_lea.hbm %s12, %s63
          %s822 = sshll.u32 %s820, 4
          %s823 = int_to_ptr.hbm [resolvable:$true] %s822
          %s824 = sshll.u32 %s817, 4
          %s825 = int_to_ptr.vmem [resolvable:$true] %s824
          %827 = dma.hbm_to_vmem [thread:$0]  %s823, 16, %s825, %s815
        $region68: #{tpu_custom_call.1} parent=15 // pred_fallthru
          _
        // Predicated region
        $region69: #{tpu_custom_call.1} parent=15 // pred_check
          %p828 = pneg %p434
        $region70: #{tpu_custom_call.1} parent=15 // pred_check_branch
          %830 = sbr.rel (%p828) target = $region72
        $region71: #{tpu_custom_call.1} parent=15 // pred_region
          %s831 = sand.u32 %s55, 1
          %s832 = scalar_lea.sflag [#allocation23], %s831
          %s833 = sand.u32 %s424, 1
          %s834 = smul.addr %s833, 128
          %s835 = scalar_lea.vmem [#allocation24], %s834
          %s836 = smul.u32 2, %s64
          %838 = vsyncadd %s832, 0
          %s839 = smul.addr %s63, 32
          %s840 = sadd.s32 %s836, %s839
          %s841 = smul.addr %s840, 4
          %s842 = scalar_lea.hbm %s13, %s841
          %s843 = sshll.u32 %s842, 4
          %s844 = int_to_ptr.hbm [resolvable:$true] %s843
          %s845 = sshll.u32 %s835, 4
          %s846 = int_to_ptr.vmem [resolvable:$true] %s845
          %851 = dma.hbm_to_vmem [thread:$0]  %s844, 2048, %s846, %s832, 128, 128, 8
        $region72: #{tpu_custom_call.1} parent=15 // pred_fallthru
          _
        // Predicated region
        $region73: #{tpu_custom_call.1} parent=15 // pred_check
          %p852 = pneg %p462
        $region74: #{tpu_custom_call.1} parent=15 // pred_check_branch
          %854 = sbr.rel (%p852) target = $region76
        $region75: #{tpu_custom_call.1} parent=15 // pred_region
          %s855 = smul.u32 2, %s64
          %p856 = scmp.lt.s32.totalorder %s63, 2
          %s857 = scalar_select %p856, %s63, 2
          %p858 = scmp.lt.s32.totalorder %s855, 1
          %s859 = scalar_select %p858, %s855, 1
          %s860 = smul.addr %s857, 2
          %s861 = sadd.s32 %s859, %s860
          %s862 = scalar_lea.vmem %s14, %s861
          %s863 = smul.u32 2, %s64
        $region76: #{tpu_custom_call.1} parent=15 // pred_fallthru
          _
        // Predicated region
        $region77: #{tpu_custom_call.1} parent=15 // pred_check
          %p864 = pneg %p490
        $region78: #{tpu_custom_call.1} parent=15 // pred_check_branch
          %866 = sbr.rel (%p864) target = $region80
        $region79: #{tpu_custom_call.1} parent=15 // pred_region
          %s867 = sand.u32 %s480, 1
          %s868 = scalar_lea.sflag [#allocation26], %s867
          %s869 = sand.u32 %s480, 1
          %s870 = smul.addr %s869, 128
          %s871 = scalar_lea.vmem [#allocation25], %s870
          %s872 = smul.u32 32, %s64
          %874 = vsyncadd %s868, 0
          %s875 = smul.addr %s63, 32
          %s876 = sadd.s32 %s872, %s875
          %s877 = smul.addr %s876, 4
          %s878 = scalar_lea.hbm %s15, %s877
          %s879 = sshll.u32 %s878, 4
          %s880 = int_to_ptr.hbm [resolvable:$true] %s879
          %s881 = sshll.u32 %s871, 4
          %s882 = int_to_ptr.vmem [resolvable:$true] %s881
          %887 = dma.hbm_to_vmem [thread:$0]  %s880, 2048, %s882, %s868, 64, 64, 4
        $region80: #{tpu_custom_call.1} parent=15 // pred_fallthru
          _
        // Predicated region
        $region81: #{tpu_custom_call.1} parent=15 // pred_check
          %p888 = pneg %p516
        $region82: #{tpu_custom_call.1} parent=15 // pred_check_branch
          %890 = sbr.rel (%p888) target = $region84
        $region83: #{tpu_custom_call.1} parent=15 // pred_region
          %p891 = scmp.lt.s32.totalorder %s63, 2
          %s892 = scalar_select %p891, %s63, 2
          %s893 = scalar_lea.vmem %s16, %s892
        $region84: #{tpu_custom_call.1} parent=15 // pred_fallthru
          _
      $region16: #{tpu_custom_call.1} parent=5 // pred_fallthru
        _
      %p894 = scmp.le.s32.totalorder 1, %s55
      %p895 = scmp.lt.s32.totalorder %s55, 7
      %p896 = pnand %p894, %p895
      %p897 = pneg %p896
      // Predicated region
      $region85: #{tpu_custom_call.1} parent=5 // pred_check
        _
      $region86: #{tpu_custom_call.1} parent=5 // pred_check_branch
        %899 = sbr.rel (%p896) target = $region88
      $region87: #{tpu_custom_call.1} parent=5 // pred_region
        %s900 = ssub.s32 %s55, 1
        %s901 = sand.u32 %s87, 1
        %s902 = scalar_lea.sflag [#allocation5], %s901
        %s903 = sand.u32 %s87, 1
        %s904 = smul.addr %s903, 16
        %s905 = scalar_lea.vmem [#allocation4], %s904
        // Predicated region
        $region89: #{tpu_custom_call.1} parent=87 // pred_check
          %p906 = pneg %p100
        $region90: #{tpu_custom_call.1} parent=87 // pred_check_branch
          %908 = sbr.rel (%p906) target = $region92
        $region91: #{tpu_custom_call.1} parent=87 // pred_region
          %910 = dma.done %s902, 256
        $region92: #{tpu_custom_call.1} parent=87 // pred_fallthru
          _
        %s911 = sand.u32 %s60, 1
        %s912 = scalar_lea.sflag [#allocation8], %s911
        %s913 = sand.u32 %s113, 1
        %s914 = scalar_lea.vmem [#allocation7], %s913
        // Predicated region
        $region93: #{tpu_custom_call.1} parent=87 // pred_check
          %p915 = pneg %p126
        $region94: #{tpu_custom_call.1} parent=87 // pred_check_branch
          %917 = sbr.rel (%p915) target = $region96
        $region95: #{tpu_custom_call.1} parent=87 // pred_region
          %919 = dma.done %s912, 16
        $region96: #{tpu_custom_call.1} parent=87 // pred_fallthru
          _
        %s920 = sand.u32 %s60, 1
        %s921 = scalar_lea.sflag [#allocation8], %s920
        %s922 = sand.u32 %s139, 1
        %s923 = scalar_lea.vmem [#allocation9], %s922
        // Predicated region
        $region97: #{tpu_custom_call.1} parent=87 // pred_check
          %p924 = pneg %p152
        $region98: #{tpu_custom_call.1} parent=87 // pred_check_branch
          %926 = sbr.rel (%p924) target = $region100
        $region99: #{tpu_custom_call.1} parent=87 // pred_region
          %928 = dma.done %s921, 16
        $region100: #{tpu_custom_call.1} parent=87 // pred_fallthru
          _
        %s929 = sand.u32 %s60, 1
        %s930 = scalar_lea.sflag [#allocation11], %s929
        %s931 = sand.u32 %s165, 1
        %s932 = smul.addr %s931, 64
        %s933 = scalar_lea.vmem [#allocation10], %s932
        // Predicated region
        $region101: #{tpu_custom_call.1} parent=87 // pred_check
          %p934 = pneg %p178
        $region102: #{tpu_custom_call.1} parent=87 // pred_check_branch
          %936 = sbr.rel (%p934) target = $region104
        $region103: #{tpu_custom_call.1} parent=87 // pred_region
          %938 = dma.done %s930, 1024
        $region104: #{tpu_custom_call.1} parent=87 // pred_fallthru
          _
        %s939 = sand.u32 %s60, 1
        %s940 = scalar_lea.sflag [#allocation11], %s939
        %s941 = sand.u32 %s217, 1
        %s942 = smul.addr %s941, 64
        %s943 = scalar_lea.vmem [#allocation12], %s942
        // Predicated region
        $region105: #{tpu_custom_call.1} parent=87 // pred_check
          %p944 = pneg %p230
        $region106: #{tpu_custom_call.1} parent=87 // pred_check_branch
          %946 = sbr.rel (%p944) target = $region108
        $region107: #{tpu_custom_call.1} parent=87 // pred_region
          %948 = dma.done %s940, 1024
        $region108: #{tpu_custom_call.1} parent=87 // pred_fallthru
          _
        %s949 = sand.u32 %s60, 1
        %s950 = scalar_lea.sflag [#allocation14], %s949
        %s951 = sand.u32 %s243, 1
        %s952 = scalar_lea.vmem [#allocation13], %s951
        // Predicated region
        $region109: #{tpu_custom_call.1} parent=87 // pred_check
          %p953 = pneg %p256
        $region110: #{tpu_custom_call.1} parent=87 // pred_check_branch
          %955 = sbr.rel (%p953) target = $region112
        $region111: #{tpu_custom_call.1} parent=87 // pred_region
          %957 = dma.done %s950, 16
        $region112: #{tpu_custom_call.1} parent=87 // pred_fallthru
          _
        %s958 = sand.u32 %s60, 1
        %s959 = scalar_lea.sflag [#allocation14], %s958
        %s960 = sand.u32 %s269, 1
        %s961 = smul.addr %s960, 64
        %s962 = scalar_lea.vmem [#allocation15], %s961
        // Predicated region
        $region113: #{tpu_custom_call.1} parent=87 // pred_check
          %p963 = pneg %p282
        $region114: #{tpu_custom_call.1} parent=87 // pred_check_branch
          %965 = sbr.rel (%p963) target = $region116
        $region115: #{tpu_custom_call.1} parent=87 // pred_region
          %967 = dma.done %s959, 1024
        $region116: #{tpu_custom_call.1} parent=87 // pred_fallthru
          _
        %s968 = sand.u32 %s60, 1
        %s969 = scalar_lea.sflag [#allocation17], %s968
        %s970 = sand.u32 %s295, 1
        %s971 = scalar_lea.vmem [#allocation16], %s970
        // Predicated region
        $region117: #{tpu_custom_call.1} parent=87 // pred_check
          %p972 = pneg %p308
        $region118: #{tpu_custom_call.1} parent=87 // pred_check_branch
          %974 = sbr.rel (%p972) target = $region120
        $region119: #{tpu_custom_call.1} parent=87 // pred_region
          %976 = dma.done %s969, 16
        $region120: #{tpu_custom_call.1} parent=87 // pred_fallthru
          _
        %s977 = sand.u32 %s60, 1
        %s978 = scalar_lea.sflag [#allocation17], %s977
        %s979 = sand.u32 %s321, 1
        %s980 = smul.addr %s979, 64
        %s981 = scalar_lea.vmem [#allocation18], %s980
        // Predicated region
        $region121: #{tpu_custom_call.1} parent=87 // pred_check
          %p982 = pneg %p334
        $region122: #{tpu_custom_call.1} parent=87 // pred_check_branch
          %984 = sbr.rel (%p982) target = $region124
        $region123: #{tpu_custom_call.1} parent=87 // pred_region
          %986 = dma.done %s978, 1024
        $region124: #{tpu_custom_call.1} parent=87 // pred_fallthru
          _
        %s987 = sand.u32 %s60, 1
        %s988 = scalar_lea.sflag [#allocation20], %s987
        %s989 = sand.u32 %s347, 1
        %s990 = scalar_lea.vmem [#allocation19], %s989
        // Predicated region
        $region125: #{tpu_custom_call.1} parent=87 // pred_check
          %p991 = pneg %p360
        $region126: #{tpu_custom_call.1} parent=87 // pred_check_branch
          %993 = sbr.rel (%p991) target = $region128
        $region127: #{tpu_custom_call.1} parent=87 // pred_region
          %995 = dma.done %s988, 16
        $region128: #{tpu_custom_call.1} parent=87 // pred_fallthru
          _
        %s996 = sand.u32 %s60, 1
        %s997 = scalar_lea.sflag [#allocation20], %s996
        %s998 = sand.u32 %s373, 1
        %s999 = scalar_lea.vmem [#allocation21], %s998
        // Predicated region
        $region129: #{tpu_custom_call.1} parent=87 // pred_check
          %p1000 = pneg %p386
        $region130: #{tpu_custom_call.1} parent=87 // pred_check_branch
          %1002 = sbr.rel (%p1000) target = $region132
        $region131: #{tpu_custom_call.1} parent=87 // pred_region
          %1004 = dma.done %s997, 16
        $region132: #{tpu_custom_call.1} parent=87 // pred_fallthru
          _
        %s1005 = sand.u32 %s60, 1
        %s1006 = scalar_lea.sflag [#allocation23], %s1005
        %s1007 = sand.u32 %s399, 1
        %s1008 = scalar_lea.vmem [#allocation22], %s1007
        // Predicated region
        $region133: #{tpu_custom_call.1} parent=87 // pred_check
          %p1009 = pneg %p412
        $region134: #{tpu_custom_call.1} parent=87 // pred_check_branch
          %1011 = sbr.rel (%p1009) target = $region136
        $region135: #{tpu_custom_call.1} parent=87 // pred_region
          %1013 = dma.done %s1006, 16
        $region136: #{tpu_custom_call.1} parent=87 // pred_fallthru
          _
        %s1014 = sand.u32 %s60, 1
        %s1015 = scalar_lea.sflag [#allocation23], %s1014
        %s1016 = sand.u32 %s427, 1
        %s1017 = smul.addr %s1016, 128
        %s1018 = scalar_lea.vmem [#allocation24], %s1017
        // Predicated region
        $region137: #{tpu_custom_call.1} parent=87 // pred_check
          %p1019 = pneg %p440
        $region138: #{tpu_custom_call.1} parent=87 // pred_check_branch
          %1021 = sbr.rel (%p1019) target = $region140
        $region139: #{tpu_custom_call.1} parent=87 // pred_region
          %1023 = dma.done %s1015, 2048
        $region140: #{tpu_custom_call.1} parent=87 // pred_fallthru
          _
        %s1024 = sand.u32 %s483, 1
        %s1025 = scalar_lea.sflag [#allocation26], %s1024
        %s1026 = sand.u32 %s483, 1
        %s1027 = smul.addr %s1026, 128
        %s1028 = scalar_lea.vmem [#allocation25], %s1027
        // Predicated region
        $region141: #{tpu_custom_call.1} parent=87 // pred_check
          %p1029 = pneg %p496
        $region142: #{tpu_custom_call.1} parent=87 // pred_check_branch
          %1031 = sbr.rel (%p1029) target = $region144
        $region143: #{tpu_custom_call.1} parent=87 // pred_region
          %1033 = dma.done %s1025, 2048
        $region144: #{tpu_custom_call.1} parent=87 // pred_fallthru
          _
        %s1034 = sand.u32 %s87, 1
        %s1035 = scalar_lea.sflag [#allocation5], %s1034
        %s1036 = sand.u32 %s87, 1
        %s1037 = smul.addr %s1036, 16
        %s1038 = scalar_lea.vmem [#allocation4], %s1037
        %p1039 = pneg %p100
        %p1040 = pneg %p97
        %s1041 = sand.u32 %s60, 1
        %s1042 = scalar_lea.sflag [#allocation8], %s1041
        %s1043 = sand.u32 %s113, 1
        %s1044 = scalar_lea.vmem [#allocation7], %s1043
        %p1045 = pneg %p126
        %p1046 = pneg %p123
        %s1047 = sand.u32 %s60, 1
        %s1048 = scalar_lea.sflag [#allocation8], %s1047
        %s1049 = sand.u32 %s139, 1
        %s1050 = scalar_lea.vmem [#allocation9], %s1049
        %p1051 = pneg %p152
        %p1052 = pneg %p149
        %s1053 = sand.u32 %s60, 1
        %s1054 = scalar_lea.sflag [#allocation11], %s1053
        %s1055 = sand.u32 %s165, 1
        %s1056 = smul.addr %s1055, 64
        %s1057 = scalar_lea.vmem [#allocation10], %s1056
        %p1058 = pneg %p178
        %p1059 = pneg %p175
        %p1060 = scmp.lt.s32.totalorder %s66, 2
        %s1061 = scalar_select %p1060, %s66, 2
        %s1062 = scalar_lea.vmem %s4, %s1061
        %p1063 = pneg %p204
        %p1064 = pneg %p201
        %s1065 = sand.u32 %s60, 1
        %s1066 = scalar_lea.sflag [#allocation11], %s1065
        %s1067 = sand.u32 %s217, 1
        %s1068 = smul.addr %s1067, 64
        %s1069 = scalar_lea.vmem [#allocation12], %s1068
        %p1070 = pneg %p230
        %p1071 = pneg %p227
        %s1072 = sand.u32 %s60, 1
        %s1073 = scalar_lea.sflag [#allocation14], %s1072
        %s1074 = sand.u32 %s243, 1
        %s1075 = scalar_lea.vmem [#allocation13], %s1074
        %p1076 = pneg %p256
        %p1077 = pneg %p253
        %s1078 = sand.u32 %s60, 1
        %s1079 = scalar_lea.sflag [#allocation14], %s1078
        %s1080 = sand.u32 %s269, 1
        %s1081 = smul.addr %s1080, 64
        %s1082 = scalar_lea.vmem [#allocation15], %s1081
        %p1083 = pneg %p282
        %p1084 = pneg %p279
        %s1085 = sand.u32 %s60, 1
        %s1086 = scalar_lea.sflag [#allocation17], %s1085
        %s1087 = sand.u32 %s295, 1
        %s1088 = scalar_lea.vmem [#allocation16], %s1087
        %p1089 = pneg %p308
        %p1090 = pneg %p305
        %s1091 = sand.u32 %s60, 1
        %s1092 = scalar_lea.sflag [#allocation17], %s1091
        %s1093 = sand.u32 %s321, 1
        %s1094 = smul.addr %s1093, 64
        %s1095 = scalar_lea.vmem [#allocation18], %s1094
        %p1096 = pneg %p334
        %p1097 = pneg %p331
        %s1098 = sand.u32 %s60, 1
        %s1099 = scalar_lea.sflag [#allocation20], %s1098
        %s1100 = sand.u32 %s347, 1
        %s1101 = scalar_lea.vmem [#allocation19], %s1100
        %p1102 = pneg %p360
        %p1103 = pneg %p357
        %s1104 = sand.u32 %s60, 1
        %s1105 = scalar_lea.sflag [#allocation20], %s1104
        %s1106 = sand.u32 %s373, 1
        %s1107 = scalar_lea.vmem [#allocation21], %s1106
        %p1108 = pneg %p386
        %p1109 = pneg %p383
        %s1110 = sand.u32 %s60, 1
        %s1111 = scalar_lea.sflag [#allocation23], %s1110
        %s1112 = sand.u32 %s399, 1
        %s1113 = scalar_lea.vmem [#allocation22], %s1112
        %p1114 = pneg %p412
        %p1115 = pneg %p409
        %s1116 = sand.u32 %s60, 1
        %s1117 = scalar_lea.sflag [#allocation23], %s1116
        %s1118 = sand.u32 %s427, 1
        %s1119 = smul.addr %s1118, 128
        %s1120 = scalar_lea.vmem [#allocation24], %s1119
        %p1121 = pneg %p440
        %p1122 = pneg %p437
        %s1123 = smul.u32 2, %s67
        %p1124 = scmp.lt.s32.totalorder %s66, 2
        %s1125 = scalar_select %p1124, %s66, 2
        %p1126 = scmp.lt.s32.totalorder %s1123, 1
        %s1127 = scalar_select %p1126, %s1123, 1
        %s1128 = smul.addr %s1125, 2
        %s1129 = sadd.s32 %s1127, %s1128
        %s1130 = scalar_lea.vmem %s14, %s1129
        %p1131 = pneg %p468
        %p1132 = pneg %p465
        %s1133 = sand.u32 %s483, 1
        %s1134 = scalar_lea.sflag [#allocation26], %s1133
        %s1135 = sand.u32 %s483, 1
        %s1136 = smul.addr %s1135, 128
        %s1137 = scalar_lea.vmem [#allocation25], %s1136
        %p1138 = pneg %p496
        %p1139 = pneg %p493
        %p1140 = scmp.lt.s32.totalorder %s66, 2
        %s1141 = scalar_select %p1140, %s66, 2
        %s1142 = scalar_lea.vmem %s16, %s1141
        %p1143 = pneg %p522
        %p1144 = pneg %p519
        %p1145 = pneg %p548
        %p1146 = pneg %p545
        %s1147 = sand.u32 %s535, 1
        %s1148 = scalar_lea.sflag [#allocation6], %s1147
        %s1149 = sand.u32 %s535, 1
        %s1150 = smul.addr %s1149, 16
        %s1151 = scalar_lea.vmem [#allocation27], %s1150
        %p1152 = pneg %p574
        %p1153 = pneg %p571
        %s1154 = sand.u32 %s561, 1
        %s1155 = scalar_lea.sflag [#allocation29], %s1154
        %s1156 = sand.u32 %s561, 1
        %s1157 = smul.addr %s1156, 16
        %s1158 = scalar_lea.vmem [#allocation28], %s1157
        %p1159 = scmp.lt.s32.totalorder %s66, 2
        %s1160 = scalar_select %p1159, %s66, 2
        %s1161 = scalar_lea.vmem %s4, %s1160
        %s1162 = smul.u32 2, %s67
        %s1163 = smul.u32 2, %s67
        %p1164 = scmp.lt.s32.totalorder %s66, 2
        %s1165 = scalar_select %p1164, %s66, 2
        %p1166 = scmp.lt.s32.totalorder %s1163, 1
        %s1167 = scalar_select %p1166, %s1163, 1
        %s1168 = smul.addr %s1165, 2
        %s1169 = sadd.s32 %s1167, %s1168
        %s1170 = scalar_lea.vmem %s14, %s1169
        %s1171 = smul.u32 2, %s67
        %s1172 = smul.u32 32, %s67
        %p1173 = scmp.lt.s32.totalorder %s66, 2
        %s1174 = scalar_select %p1173, %s66, 2
        %s1175 = scalar_lea.vmem %s16, %s1174
        %p1177 = scmp.eq.s32.totalorder %s66, 0
        %p1178 = scmp.eq.s32.totalorder %s67, 0
        %p1179 = pnand %p1177, %p1178
        %p1180 = pneg %p1179
        // Predicated region
        $region145: #{tpu_custom_call.1} parent=87 // pred_check
          _
        $region146: #{tpu_custom_call.1} parent=87 // pred_check_branch
          %1182 = sbr.rel (%p1179) target = $region148
        $region147: #{tpu_custom_call.1} parent=87 // pred_region
          %v1183 = vld [vmem:[%s905] sm:$0xff]
          %v1184 = vld [vmem:[%s905 + $0x8] sm:$0xff]
          %1185 = vst [vmem:[%s1151] sm:$0xff] %v1183
          %1186 = vst [vmem:[%s1151 + $0x8] sm:$0xff] %v1184
        $region148: #{tpu_custom_call.1} parent=87 // pred_fallthru
          _
        // Predicated region
        $region149: #{tpu_custom_call.1} parent=87 // pred_check
          %p1187 = pneg %p1178
        $region150: #{tpu_custom_call.1} parent=87 // pred_check_branch
          %1189 = sbr.rel (%p1187) target = $region152
        $region151: #{tpu_custom_call.1} parent=87 // pred_region
          %v1190 = vld [vmem:[%s1151] sm:$0xff]
          %v1191 = vld [vmem:[%s1151 + $0x8] sm:$0xff]
          %v1192 = vld [vmem:[%s914] sm:$0x1]
          %v1193 = vld [vmem:[%s923] sm:$0x1]
          %1194 = vadd.xlane.f32.xlu0 %v1190
          %v1195 = vpop.xlane.xlu0 %1194
          %1196 = vadd.xlane.f32.xlu0 %v1191
          %v1197 = vpop.xlane.xlu0 %1196
          %v1198 = vrcp.pop 128.0
          %v1199 = vmul.f32 128.0, %v1198
          %v1200 = vsub.f32 1.0, %v1199
          %v1201 = vmul.f32 %v1198, %v1200
          %v1202 = vadd.f32 %v1198, %v1201
          %vm1203 = vweird.f32 %v1198
          %v1204 = vsel %vm1203, %v1198, %v1202
          %v1205 = vmul.f32 %v1195, %v1204
          %v1206 = vmul.f32 %v1197, %v1204
          %v1207 = vsub.f32 %v1190, %v1205
          %v1208 = vsub.f32 %v1191, %v1206
          %v1209 = vmul.f32 %v1207, %v1207
          %v1210 = vmul.f32 %v1208, %v1208
          %1211 = vadd.xlane.f32.xlu0 %v1209
          %v1212 = vpop.xlane.xlu0 %1211
          %1213 = vadd.xlane.f32.xlu0 %v1210
          %v1214 = vpop.xlane.xlu0 %1213
          %v1215 = vmul.f32 %v1212, %v1204
          %v1216 = vmul.f32 %v1214, %v1204
          %v1217 = vadd.f32 %v1215, 1e-05
          %v1218 = vadd.f32 %v1216, 1e-05
          %v1219 = vrsqrt.pop %v1217
          %v1220 = vmul.f32 %v1219, %v1217
          %v1221 = vmul.f32 %v1220, %v1219
          %v1222 = vmul.f32 0.5, %v1221
          %v1223 = vsub.f32 1.5, %v1222
          %v1224 = vmul.f32 %v1219, %v1223
          %vm1225 = vweird.f32 %v1217
          %vm1226 = vweird.f32 %v1219
          %vm1227 = vmor %vm1225, %vm1226
          %v1228 = vsel %vm1227, %v1219, %v1224
          %v1229 = vrsqrt.pop %v1218
          %v1230 = vmul.f32 %v1229, %v1218
          %v1231 = vmul.f32 %v1230, %v1229
          %v1232 = vmul.f32 0.5, %v1231
          %v1233 = vsub.f32 1.5, %v1232
          %v1234 = vmul.f32 %v1229, %v1233
          %vm1235 = vweird.f32 %v1218
          %vm1236 = vweird.f32 %v1229
          %vm1237 = vmor %vm1235, %vm1236
          %v1238 = vsel %vm1237, %v1229, %v1234
          %v1239 = vmul.f32 %v1207, %v1228
          %v1240 = vmul.f32 %v1208, %v1238
          %v1242 = vperm.slane %v1192, 0
          %v1244 = vmul.f32 %v1239, %v1242
          %v1245 = vmul.f32 %v1240, %v1242
          %v1247 = vperm.slane %v1193, 0
          %v1249 = vadd.f32 %v1244, %v1247
          %v1250 = vadd.f32 %v1245, %v1247
          %v1251 = vpack.c.bf16 %v1250, %v1249
          %v1252 = vld [vmem:[%s933] sm:$0xf]
          %v1253 = vld [vmem:[%s933 + $0x4] sm:$0xf]
          %v1254 = vld [vmem:[%s933 + $0x8] sm:$0xf]
          %v1255 = vld [vmem:[%s933 + $0xc] sm:$0xf]
          %v1256 = vld [vmem:[%s933 + $0x10] sm:$0xf]
          %v1257 = vld [vmem:[%s933 + $0x14] sm:$0xf]
          %v1258 = vld [vmem:[%s933 + $0x18] sm:$0xf]
          %v1259 = vld [vmem:[%s933 + $0x1c] sm:$0xf]
          %v1260 = vld [vmem:[%s933 + $0x20] sm:$0xf]
          %v1261 = vld [vmem:[%s933 + $0x24] sm:$0xf]
          %v1262 = vld [vmem:[%s933 + $0x28] sm:$0xf]
          %v1263 = vld [vmem:[%s933 + $0x2c] sm:$0xf]
          %v1264 = vld [vmem:[%s933 + $0x30] sm:$0xf]
          %v1265 = vld [vmem:[%s933 + $0x34] sm:$0xf]
          %v1266 = vld [vmem:[%s933 + $0x38] sm:$0xf]
          %v1267 = vld [vmem:[%s933 + $0x3c] sm:$0xf]
          %v1268 = vld [vmem:[%s1161] sm:$0x1]
          %v1270 = vperm.slane %v1268, 0
          %v1288 = vunpack.c.l.b16 %v1252
          %v1289 = vunpack.c.l.b16 %v1253
          %v1290 = vunpack.c.l.b16 %v1254
          %v1291 = vunpack.c.l.b16 %v1255
          %v1292 = vunpack.c.l.b16 %v1256
          %v1293 = vunpack.c.l.b16 %v1257
          %v1294 = vunpack.c.l.b16 %v1258
          %v1295 = vunpack.c.l.b16 %v1259
          %v1296 = vunpack.c.l.b16 %v1260
          %v1297 = vunpack.c.l.b16 %v1261
          %v1298 = vunpack.c.l.b16 %v1262
          %v1299 = vunpack.c.l.b16 %v1263
          %v1300 = vunpack.c.l.b16 %v1264
          %v1301 = vunpack.c.l.b16 %v1265
          %v1302 = vunpack.c.l.b16 %v1266
          %v1303 = vunpack.c.l.b16 %v1267
          %v1304 = vpack.c.b16 %v1289, %v1288
          %v1305 = vpack.c.b16 %v1291, %v1290
          %v1306 = vpack.c.b16 %v1293, %v1292
          %v1307 = vpack.c.b16 %v1295, %v1294
          %v1308 = vpack.c.b16 %v1297, %v1296
          %v1309 = vpack.c.b16 %v1299, %v1298
          %v1310 = vpack.c.b16 %v1301, %v1300
          %v1311 = vpack.c.b16 %v1303, %v1302
          %1320 = vmatpush.bf16.msra.mxu0 %v1311
          %1321 = vmatpush.bf16.msra.mxu0 %v1310
          %1322 = vmatpush.bf16.msra.mxu0 %v1309
          %1323 = vmatpush.bf16.msra.mxu0 %v1308
          %1324 = vmatpush.bf16.msra.mxu0 %v1307
          %1325 = vmatpush.bf16.msra.mxu0 %v1306
          %1326 = vmatpush.bf16.msra.mxu0 %v1305
          %1327 = vmatpush.bf16.msra.mxu0 %v1304
          %1328 = vmatmul.bf16.gmra.mxu0 %v1251
          %v1329 = vpop.f32.mrf.mxu0
          %v1330 = vadd.f32 %v1270, %v1329
          %v1331 = vpop.f32.mrf.mxu0
          %v1332 = vadd.f32 %v1270, %v1331
          %1333 = vdwg.mxu0
          %v1334 = vld [vmem:[%s943] sm:$0xf]
          %v1335 = vld [vmem:[%s943 + $0x4] sm:$0xf]
          %v1336 = vld [vmem:[%s943 + $0x8] sm:$0xf]
          %v1337 = vld [vmem:[%s943 + $0xc] sm:$0xf]
          %v1338 = vld [vmem:[%s943 + $0x10] sm:$0xf]
          %v1339 = vld [vmem:[%s943 + $0x14] sm:$0xf]
          %v1340 = vld [vmem:[%s943 + $0x18] sm:$0xf]
          %v1341 = vld [vmem:[%s943 + $0x1c] sm:$0xf]
          %v1342 = vld [vmem:[%s943 + $0x20] sm:$0xf]
          %v1343 = vld [vmem:[%s943 + $0x24] sm:$0xf]
          %v1344 = vld [vmem:[%s943 + $0x28] sm:$0xf]
          %v1345 = vld [vmem:[%s943 + $0x2c] sm:$0xf]
          %v1346 = vld [vmem:[%s943 + $0x30] sm:$0xf]
          %v1347 = vld [vmem:[%s943 + $0x34] sm:$0xf]
          %v1348 = vld [vmem:[%s943 + $0x38] sm:$0xf]
          %v1349 = vld [vmem:[%s943 + $0x3c] sm:$0xf]
          %v1350 = vld [vmem:[%s952] sm:$0x1]
          %v1352 = vperm.slane %v1350, 0
          %v1370 = vunpack.c.l.b16 %v1334
          %v1371 = vunpack.c.l.b16 %v1335
          %v1372 = vunpack.c.l.b16 %v1336
          %v1373 = vunpack.c.l.b16 %v1337
          %v1374 = vunpack.c.l.b16 %v1338
          %v1375 = vunpack.c.l.b16 %v1339
          %v1376 = vunpack.c.l.b16 %v1340
          %v1377 = vunpack.c.l.b16 %v1341
          %v1378 = vunpack.c.l.b16 %v1342
          %v1379 = vunpack.c.l.b16 %v1343
          %v1380 = vunpack.c.l.b16 %v1344
          %v1381 = vunpack.c.l.b16 %v1345
          %v1382 = vunpack.c.l.b16 %v1346
          %v1383 = vunpack.c.l.b16 %v1347
          %v1384 = vunpack.c.l.b16 %v1348
          %v1385 = vunpack.c.l.b16 %v1349
          %v1386 = vpack.c.b16 %v1371, %v1370
          %v1387 = vpack.c.b16 %v1373, %v1372
          %v1388 = vpack.c.b16 %v1375, %v1374
          %v1389 = vpack.c.b16 %v1377, %v1376
          %v1390 = vpack.c.b16 %v1379, %v1378
          %v1391 = vpack.c.b16 %v1381, %v1380
          %v1392 = vpack.c.b16 %v1383, %v1382
          %v1393 = vpack.c.b16 %v1385, %v1384
          %1402 = vmatpush.bf16.msra.mxu0 %v1393
          %1403 = vmatpush.bf16.msra.mxu0 %v1392
          %1404 = vmatpush.bf16.msra.mxu0 %v1391
          %1405 = vmatpush.bf16.msra.mxu0 %v1390
          %1406 = vmatpush.bf16.msra.mxu0 %v1389
          %1407 = vmatpush.bf16.msra.mxu0 %v1388
          %1408 = vmatpush.bf16.msra.mxu0 %v1387
          %1409 = vmatpush.bf16.msra.mxu0 %v1386
          %1410 = vmatmul.bf16.gmra.mxu0 %v1251
          %v1411 = vpop.f32.mrf.mxu0
          %v1412 = vadd.f32 %v1352, %v1411
          %v1413 = vpop.f32.mrf.mxu0
          %v1414 = vadd.f32 %v1352, %v1413
          %1415 = vdwg.mxu0
          %v1416 = vld [vmem:[%s962] sm:$0xf]
          %v1417 = vld [vmem:[%s962 + $0x4] sm:$0xf]
          %v1418 = vld [vmem:[%s962 + $0x8] sm:$0xf]
          %v1419 = vld [vmem:[%s962 + $0xc] sm:$0xf]
          %v1420 = vld [vmem:[%s962 + $0x10] sm:$0xf]
          %v1421 = vld [vmem:[%s962 + $0x14] sm:$0xf]
          %v1422 = vld [vmem:[%s962 + $0x18] sm:$0xf]
          %v1423 = vld [vmem:[%s962 + $0x1c] sm:$0xf]
          %v1424 = vld [vmem:[%s962 + $0x20] sm:$0xf]
          %v1425 = vld [vmem:[%s962 + $0x24] sm:$0xf]
          %v1426 = vld [vmem:[%s962 + $0x28] sm:$0xf]
          %v1427 = vld [vmem:[%s962 + $0x2c] sm:$0xf]
          %v1428 = vld [vmem:[%s962 + $0x30] sm:$0xf]
          %v1429 = vld [vmem:[%s962 + $0x34] sm:$0xf]
          %v1430 = vld [vmem:[%s962 + $0x38] sm:$0xf]
          %v1431 = vld [vmem:[%s962 + $0x3c] sm:$0xf]
          %v1432 = vld [vmem:[%s971] sm:$0x1]
          %v1434 = vperm.slane %v1432, 0
          %v1452 = vunpack.c.l.b16 %v1416
          %v1453 = vunpack.c.l.b16 %v1417
          %v1454 = vunpack.c.l.b16 %v1418
          %v1455 = vunpack.c.l.b16 %v1419
          %v1456 = vunpack.c.l.b16 %v1420
          %v1457 = vunpack.c.l.b16 %v1421
          %v1458 = vunpack.c.l.b16 %v1422
          %v1459 = vunpack.c.l.b16 %v1423
          %v1460 = vunpack.c.l.b16 %v1424
          %v1461 = vunpack.c.l.b16 %v1425
          %v1462 = vunpack.c.l.b16 %v1426
          %v1463 = vunpack.c.l.b16 %v1427
          %v1464 = vunpack.c.l.b16 %v1428
          %v1465 = vunpack.c.l.b16 %v1429
          %v1466 = vunpack.c.l.b16 %v1430
          %v1467 = vunpack.c.l.b16 %v1431
          %v1468 = vpack.c.b16 %v1453, %v1452
          %v1469 = vpack.c.b16 %v1455, %v1454
          %v1470 = vpack.c.b16 %v1457, %v1456
          %v1471 = vpack.c.b16 %v1459, %v1458
          %v1472 = vpack.c.b16 %v1461, %v1460
          %v1473 = vpack.c.b16 %v1463, %v1462
          %v1474 = vpack.c.b16 %v1465, %v1464
          %v1475 = vpack.c.b16 %v1467, %v1466
          %1484 = vmatpush.bf16.msra.mxu0 %v1475
          %1485 = vmatpush.bf16.msra.mxu0 %v1474
          %1486 = vmatpush.bf16.msra.mxu0 %v1473
          %1487 = vmatpush.bf16.msra.mxu0 %v1472
          %1488 = vmatpush.bf16.msra.mxu0 %v1471
          %1489 = vmatpush.bf16.msra.mxu0 %v1470
          %1490 = vmatpush.bf16.msra.mxu0 %v1469
          %1491 = vmatpush.bf16.msra.mxu0 %v1468
          %1492 = vmatmul.bf16.gmra.mxu0 %v1251
          %v1493 = vpop.f32.mrf.mxu0
          %v1494 = vadd.f32 %v1434, %v1493
          %v1495 = vpop.f32.mrf.mxu0
          %v1496 = vadd.f32 %v1434, %v1495
          %1497 = vdwg.mxu0
          %v1498 = vpack.c.bf16 %v1330, %v1330
          %v1499 = vpack.c.bf16 %v1332, %v1332
          %v1500 = vpack.c.bf16 %v1412, %v1412
          %v1501 = vpack.c.bf16 %v1414, %v1414
          %v1502 = vpack.c.bf16 %v1494, %v1494
          %v1503 = vpack.c.bf16 %v1496, %v1496
          %v1504 = vlaneseq
          %v1505 = vshrl.u32 %v1504, 7
          %v1506 = vadd.s32 %v1505, 8
          %v1507 = vlaneseq
          %v1508 = vand.u32 %v1507, 127
          %vm1509 = vcmp.le.s32.totalorder %v1508, %v1505
          %vm1510 = vcmp.le.s32.totalorder %v1508, %v1506
          %1513 = vrot.lane.b32.xlu0 %v1498, 64
          %v1514 = vpop.permute.xlu0 %1513
          %1515 = vrot.lane.b32.xlu0 %v1499, 64
          %v1516 = vpop.permute.xlu0 %1515
          %v1519 = vpack.i.b16 %v1514, %v1498
          %v1520 = vshrl.u32 %v1498, 16
          %v1521 = vshrl.u32 %v1514, 16
          %v1522 = vpack.i.b16 %v1521, %v1520
          %v1525 = vpack.i.b16 %v1516, %v1499
          %v1526 = vshrl.u32 %v1499, 16
          %v1527 = vshrl.u32 %v1516, 16
          %v1528 = vpack.i.b16 %v1527, %v1526
          %v1531 = vunpack.c.l.s4 1983009808
          %v1532 = vunpack.c.0.s8 %v1531
          %v1533 = vperm.slane %v1519, %v1532
          %v1534 = vrot.slane %v1533, 4
          %vm1535 = vcmask 1047556
          %v1536 = vsel %vm1535, 0, %v1534
          %v1538 = vunpack.c.l.s4 1934713408
          %v1539 = vunpack.c.0.s8 %v1538
          %v1540 = vperm.slane %v1533, %v1539
          %v1542 = vunpack.c.l.s4 1934713408
          %v1543 = vunpack.c.0.s8 %v1542
          %v1544 = vperm.slane %v1536, %v1543
          %v1545 = vrot.slane %v1540, 4
          %v1546 = vsel %vm1535, 0, %v1545
          %v1547 = vrot.slane %v1544, 4
          %v1548 = vsel %vm1535, 0, %v1547
          %v1551 = vunpack.c.l.s4 1983009808
          %v1552 = vunpack.c.0.s8 %v1551
          %v1553 = vperm.slane %v1522, %v1552
          %v1554 = vrot.slane %v1553, 4
          %v1555 = vsel %vm1535, 0, %v1554
          %v1557 = vunpack.c.l.s4 1934713408
          %v1558 = vunpack.c.0.s8 %v1557
          %v1559 = vperm.slane %v1553, %v1558
          %v1561 = vunpack.c.l.s4 1934713408
          %v1562 = vunpack.c.0.s8 %v1561
          %v1563 = vperm.slane %v1555, %v1562
          %v1564 = vrot.slane %v1559, 4
          %v1565 = vsel %vm1535, 0, %v1564
          %v1566 = vrot.slane %v1563, 4
          %v1567 = vsel %vm1535, 0, %v1566
          %v1570 = vunpack.c.l.s4 1983009808
          %v1571 = vunpack.c.0.s8 %v1570
          %v1572 = vperm.slane %v1525, %v1571
          %v1573 = vrot.slane %v1572, 4
          %v1574 = vsel %vm1535, 0, %v1573
          %v1576 = vunpack.c.l.s4 1934713408
          %v1577 = vunpack.c.0.s8 %v1576
          %v1578 = vperm.slane %v1572, %v1577
          %v1580 = vunpack.c.l.s4 1934713408
          %v1581 = vunpack.c.0.s8 %v1580
          %v1582 = vperm.slane %v1574, %v1581
          %v1583 = vrot.slane %v1578, 4
          %v1584 = vsel %vm1535, 0, %v1583
          %v1585 = vrot.slane %v1582, 4
          %v1586 = vsel %vm1535, 0, %v1585
          %v1589 = vunpack.c.l.s4 1983009808
          %v1590 = vunpack.c.0.s8 %v1589
          %v1591 = vperm.slane %v1528, %v1590
          %v1592 = vrot.slane %v1591, 4
          %v1593 = vsel %vm1535, 0, %v1592
          %v1595 = vunpack.c.l.s4 1934713408
          %v1596 = vunpack.c.0.s8 %v1595
          %v1597 = vperm.slane %v1591, %v1596
          %v1599 = vunpack.c.l.s4 1934713408
          %v1600 = vunpack.c.0.s8 %v1599
          %v1601 = vperm.slane %v1593, %v1600
          %v1602 = vrot.slane %v1597, 4
          %v1603 = vsel %vm1535, 0, %v1602
          %v1604 = vrot.slane %v1601, 4
          %v1605 = vsel %vm1535, 0, %v1604
          %v1606 = vsel %vm1535, %v1547, %v1540
          %v1608 = vunpack.c.l.s4 1983009808
          %v1609 = vunpack.c.0.s8 %v1608
          %v1610 = vperm.slane %v1606, %v1609
          %v1611 = vrot.slane %v1548, 4
          %v1612 = vsel %vm1535, %v1611, %v1546
          %v1614 = vunpack.c.l.s4 1983009808
          %v1615 = vunpack.c.0.s8 %v1614
          %v1616 = vperm.slane %v1612, %v1615
          %v1617 = vrot.slane %v1616, 4
          %v1618 = vsel %vm1535, %v1617, %v1610
          %v1620 = vunpack.c.l.s4 1934713408
          %v1621 = vunpack.c.0.s8 %v1620
          %v1622 = vperm.slane %v1618, %v1621
          %v1623 = vsel %vm1535, %v1566, %v1559
          %v1625 = vunpack.c.l.s4 1983009808
          %v1626 = vunpack.c.0.s8 %v1625
          %v1627 = vperm.slane %v1623, %v1626
          %v1628 = vrot.slane %v1567, 4
          %v1629 = vsel %vm1535, %v1628, %v1565
          %v1631 = vunpack.c.l.s4 1983009808
          %v1632 = vunpack.c.0.s8 %v1631
          %v1633 = vperm.slane %v1629, %v1632
          %v1634 = vrot.slane %v1633, 4
          %v1635 = vsel %vm1535, %v1634, %v1627
          %v1637 = vunpack.c.l.s4 1934713408
          %v1638 = vunpack.c.0.s8 %v1637
          %v1639 = vperm.slane %v1635, %v1638
          %v1640 = vsel %vm1535, %v1585, %v1578
          %v1642 = vunpack.c.l.s4 1983009808
          %v1643 = vunpack.c.0.s8 %v1642
          %v1644 = vperm.slane %v1640, %v1643
          %v1645 = vrot.slane %v1586, 4
          %v1646 = vsel %vm1535, %v1645, %v1584
          %v1648 = vunpack.c.l.s4 1983009808
          %v1649 = vunpack.c.0.s8 %v1648
          %v1650 = vperm.slane %v1646, %v1649
          %v1651 = vrot.slane %v1650, 4
          %v1652 = vsel %vm1535, %v1651, %v1644
          %v1654 = vunpack.c.l.s4 1934713408
          %v1655 = vunpack.c.0.s8 %v1654
          %v1656 = vperm.slane %v1652, %v1655
          %v1657 = vsel %vm1535, %v1604, %v1597
          %v1659 = vunpack.c.l.s4 1983009808
          %v1660 = vunpack.c.0.s8 %v1659
          %v1661 = vperm.slane %v1657, %v1660
          %v1662 = vrot.slane %v1605, 4
          %v1663 = vsel %vm1535, %v1662, %v1603
          %v1665 = vunpack.c.l.s4 1983009808
          %v1666 = vunpack.c.0.s8 %v1665
          %v1667 = vperm.slane %v1663, %v1666
          %v1668 = vrot.slane %v1667, 4
          %v1669 = vsel %vm1535, %v1668, %v1661
          %v1671 = vunpack.c.l.s4 1934713408
          %v1672 = vunpack.c.0.s8 %v1671
          %v1673 = vperm.slane %v1669, %v1672
          %v1676 = vpack.i.b16 %v1639, %v1622
          %v1677 = vshrl.u32 %v1622, 16
          %v1678 = vshrl.u32 %v1639, 16
          %v1679 = vpack.i.b16 %v1678, %v1677
          %v1682 = vpack.i.b16 %v1673, %v1656
          %v1683 = vshrl.u32 %v1656, 16
          %v1684 = vshrl.u32 %v1673, 16
          %v1685 = vpack.i.b16 %v1684, %v1683
          %1688 = vrot.lane.b32.xlu0 %v1500, 64
          %v1689 = vpop.permute.xlu0 %1688
          %1690 = vrot.lane.b32.xlu0 %v1501, 64
          %v1691 = vpop.permute.xlu0 %1690
          %v1694 = vpack.i.b16 %v1689, %v1500
          %v1695 = vshrl.u32 %v1500, 16
          %v1696 = vshrl.u32 %v1689, 16
          %v1697 = vpack.i.b16 %v1696, %v1695
          %v1700 = vpack.i.b16 %v1691, %v1501
          %v1701 = vshrl.u32 %v1501, 16
          %v1702 = vshrl.u32 %v1691, 16
          %v1703 = vpack.i.b16 %v1702, %v1701
          %v1706 = vunpack.c.l.s4 1983009808
          %v1707 = vunpack.c.0.s8 %v1706
          %v1708 = vperm.slane %v1694, %v1707
          %v1709 = vrot.slane %v1708, 4
          %v1710 = vsel %vm1535, 0, %v1709
          %v1712 = vunpack.c.l.s4 1934713408
          %v1713 = vunpack.c.0.s8 %v1712
          %v1714 = vperm.slane %v1708, %v1713
          %v1716 = vunpack.c.l.s4 1934713408
          %v1717 = vunpack.c.0.s8 %v1716
          %v1718 = vperm.slane %v1710, %v1717
          %v1719 = vrot.slane %v1714, 4
          %v1720 = vsel %vm1535, 0, %v1719
          %v1721 = vrot.slane %v1718, 4
          %v1722 = vsel %vm1535, 0, %v1721
          %v1725 = vunpack.c.l.s4 1983009808
          %v1726 = vunpack.c.0.s8 %v1725
          %v1727 = vperm.slane %v1697, %v1726
          %v1728 = vrot.slane %v1727, 4
          %v1729 = vsel %vm1535, 0, %v1728
          %v1731 = vunpack.c.l.s4 1934713408
          %v1732 = vunpack.c.0.s8 %v1731
          %v1733 = vperm.slane %v1727, %v1732
          %v1735 = vunpack.c.l.s4 1934713408
          %v1736 = vunpack.c.0.s8 %v1735
          %v1737 = vperm.slane %v1729, %v1736
          %v1738 = vrot.slane %v1733, 4
          %v1739 = vsel %vm1535, 0, %v1738
          %v1740 = vrot.slane %v1737, 4
          %v1741 = vsel %vm1535, 0, %v1740
          %v1744 = vunpack.c.l.s4 1983009808
          %v1745 = vunpack.c.0.s8 %v1744
          %v1746 = vperm.slane %v1700, %v1745
          %v1747 = vrot.slane %v1746, 4
          %v1748 = vsel %vm1535, 0, %v1747
          %v1750 = vunpack.c.l.s4 1934713408
          %v1751 = vunpack.c.0.s8 %v1750
          %v1752 = vperm.slane %v1746, %v1751
          %v1754 = vunpack.c.l.s4 1934713408
          %v1755 = vunpack.c.0.s8 %v1754
          %v1756 = vperm.slane %v1748, %v1755
          %v1757 = vrot.slane %v1752, 4
          %v1758 = vsel %vm1535, 0, %v1757
          %v1759 = vrot.slane %v1756, 4
          %v1760 = vsel %vm1535, 0, %v1759
          %v1763 = vunpack.c.l.s4 1983009808
          %v1764 = vunpack.c.0.s8 %v1763
          %v1765 = vperm.slane %v1703, %v1764
          %v1766 = vrot.slane %v1765, 4
          %v1767 = vsel %vm1535, 0, %v1766
          %v1769 = vunpack.c.l.s4 1934713408
          %v1770 = vunpack.c.0.s8 %v1769
          %v1771 = vperm.slane %v1765, %v1770
          %v1773 = vunpack.c.l.s4 1934713408
          %v1774 = vunpack.c.0.s8 %v1773
          %v1775 = vperm.slane %v1767, %v1774
          %v1776 = vrot.slane %v1771, 4
          %v1777 = vsel %vm1535, 0, %v1776
          %v1778 = vrot.slane %v1775, 4
          %v1779 = vsel %vm1535, 0, %v1778
          %v1780 = vsel %vm1535, %v1721, %v1714
          %v1782 = vunpack.c.l.s4 1983009808
          %v1783 = vunpack.c.0.s8 %v1782
          %v1784 = vperm.slane %v1780, %v1783
          %v1785 = vrot.slane %v1722, 4
          %v1786 = vsel %vm1535, %v1785, %v1720
          %v1788 = vunpack.c.l.s4 1983009808
          %v1789 = vunpack.c.0.s8 %v1788
          %v1790 = vperm.slane %v1786, %v1789
          %v1791 = vrot.slane %v1790, 4
          %v1792 = vsel %vm1535, %v1791, %v1784
          %v1794 = vunpack.c.l.s4 1934713408
          %v1795 = vunpack.c.0.s8 %v1794
          %v1796 = vperm.slane %v1792, %v1795
          %v1797 = vsel %vm1535, %v1740, %v1733
          %v1799 = vunpack.c.l.s4 1983009808
          %v1800 = vunpack.c.0.s8 %v1799
          %v1801 = vperm.slane %v1797, %v1800
          %v1802 = vrot.slane %v1741, 4
          %v1803 = vsel %vm1535, %v1802, %v1739
          %v1805 = vunpack.c.l.s4 1983009808
          %v1806 = vunpack.c.0.s8 %v1805
          %v1807 = vperm.slane %v1803, %v1806
          %v1808 = vrot.slane %v1807, 4
          %v1809 = vsel %vm1535, %v1808, %v1801
          %v1811 = vunpack.c.l.s4 1934713408
          %v1812 = vunpack.c.0.s8 %v1811
          %v1813 = vperm.slane %v1809, %v1812
          %v1814 = vsel %vm1535, %v1759, %v1752
          %v1816 = vunpack.c.l.s4 1983009808
          %v1817 = vunpack.c.0.s8 %v1816
          %v1818 = vperm.slane %v1814, %v1817
          %v1819 = vrot.slane %v1760, 4
          %v1820 = vsel %vm1535, %v1819, %v1758
          %v1822 = vunpack.c.l.s4 1983009808
          %v1823 = vunpack.c.0.s8 %v1822
          %v1824 = vperm.slane %v1820, %v1823
          %v1825 = vrot.slane %v1824, 4
          %v1826 = vsel %vm1535, %v1825, %v1818
          %v1828 = vunpack.c.l.s4 1934713408
          %v1829 = vunpack.c.0.s8 %v1828
          %v1830 = vperm.slane %v1826, %v1829
          %v1831 = vsel %vm1535, %v1778, %v1771
          %v1833 = vunpack.c.l.s4 1983009808
          %v1834 = vunpack.c.0.s8 %v1833
          %v1835 = vperm.slane %v1831, %v1834
          %v1836 = vrot.slane %v1779, 4
          %v1837 = vsel %vm1535, %v1836, %v1777
          %v1839 = vunpack.c.l.s4 1983009808
          %v1840 = vunpack.c.0.s8 %v1839
          %v1841 = vperm.slane %v1837, %v1840
          %v1842 = vrot.slane %v1841, 4
          %v1843 = vsel %vm1535, %v1842, %v1835
          %v1845 = vunpack.c.l.s4 1934713408
          %v1846 = vunpack.c.0.s8 %v1845
          %v1847 = vperm.slane %v1843, %v1846
          %v1850 = vpack.i.b16 %v1813, %v1796
          %v1851 = vshrl.u32 %v1796, 16
          %v1852 = vshrl.u32 %v1813, 16
          %v1853 = vpack.i.b16 %v1852, %v1851
          %v1856 = vpack.i.b16 %v1847, %v1830
          %v1857 = vshrl.u32 %v1830, 16
          %v1858 = vshrl.u32 %v1847, 16
          %v1859 = vpack.i.b16 %v1858, %v1857
          %1862 = vrot.lane.b32.xlu0 %v1502, 64
          %v1863 = vpop.permute.xlu0 %1862
          %1864 = vrot.lane.b32.xlu0 %v1503, 64
          %v1865 = vpop.permute.xlu0 %1864
          %v1868 = vpack.i.b16 %v1863, %v1502
          %v1869 = vshrl.u32 %v1502, 16
          %v1870 = vshrl.u32 %v1863, 16
          %v1871 = vpack.i.b16 %v1870, %v1869
          %v1874 = vpack.i.b16 %v1865, %v1503
          %v1875 = vshrl.u32 %v1503, 16
          %v1876 = vshrl.u32 %v1865, 16
          %v1877 = vpack.i.b16 %v1876, %v1875
          %v1880 = vunpack.c.l.s4 1983009808
          %v1881 = vunpack.c.0.s8 %v1880
          %v1882 = vperm.slane %v1868, %v1881
          %v1883 = vrot.slane %v1882, 4
          %v1884 = vsel %vm1535, 0, %v1883
          %v1886 = vunpack.c.l.s4 1934713408
          %v1887 = vunpack.c.0.s8 %v1886
          %v1888 = vperm.slane %v1882, %v1887
          %v1890 = vunpack.c.l.s4 1934713408
          %v1891 = vunpack.c.0.s8 %v1890
          %v1892 = vperm.slane %v1884, %v1891
          %v1893 = vrot.slane %v1888, 4
          %v1894 = vsel %vm1535, 0, %v1893
          %v1895 = vrot.slane %v1892, 4
          %v1896 = vsel %vm1535, 0, %v1895
          %v1899 = vunpack.c.l.s4 1983009808
          %v1900 = vunpack.c.0.s8 %v1899
          %v1901 = vperm.slane %v1871, %v1900
          %v1902 = vrot.slane %v1901, 4
          %v1903 = vsel %vm1535, 0, %v1902
          %v1905 = vunpack.c.l.s4 1934713408
          %v1906 = vunpack.c.0.s8 %v1905
          %v1907 = vperm.slane %v1901, %v1906
          %v1909 = vunpack.c.l.s4 1934713408
          %v1910 = vunpack.c.0.s8 %v1909
          %v1911 = vperm.slane %v1903, %v1910
          %v1912 = vrot.slane %v1907, 4
          %v1913 = vsel %vm1535, 0, %v1912
          %v1914 = vrot.slane %v1911, 4
          %v1915 = vsel %vm1535, 0, %v1914
          %v1918 = vunpack.c.l.s4 1983009808
          %v1919 = vunpack.c.0.s8 %v1918
          %v1920 = vperm.slane %v1874, %v1919
          %v1921 = vrot.slane %v1920, 4
          %v1922 = vsel %vm1535, 0, %v1921
          %v1924 = vunpack.c.l.s4 1934713408
          %v1925 = vunpack.c.0.s8 %v1924
          %v1926 = vperm.slane %v1920, %v1925
          %v1928 = vunpack.c.l.s4 1934713408
          %v1929 = vunpack.c.0.s8 %v1928
          %v1930 = vperm.slane %v1922, %v1929
          %v1931 = vrot.slane %v1926, 4
          %v1932 = vsel %vm1535, 0, %v1931
          %v1933 = vrot.slane %v1930, 4
          %v1934 = vsel %vm1535, 0, %v1933
          %v1937 = vunpack.c.l.s4 1983009808
          %v1938 = vunpack.c.0.s8 %v1937
          %v1939 = vperm.slane %v1877, %v1938
          %v1940 = vrot.slane %v1939, 4
          %v1941 = vsel %vm1535, 0, %v1940
          %v1943 = vunpack.c.l.s4 1934713408
          %v1944 = vunpack.c.0.s8 %v1943
          %v1945 = vperm.slane %v1939, %v1944
          %v1947 = vunpack.c.l.s4 1934713408
          %v1948 = vunpack.c.0.s8 %v1947
          %v1949 = vperm.slane %v1941, %v1948
          %v1950 = vrot.slane %v1945, 4
          %v1951 = vsel %vm1535, 0, %v1950
          %v1952 = vrot.slane %v1949, 4
          %v1953 = vsel %vm1535, 0, %v1952
          %v1954 = vsel %vm1535, %v1895, %v1888
          %v1956 = vunpack.c.l.s4 1983009808
          %v1957 = vunpack.c.0.s8 %v1956
          %v1958 = vperm.slane %v1954, %v1957
          %v1959 = vrot.slane %v1896, 4
          %v1960 = vsel %vm1535, %v1959, %v1894
          %v1962 = vunpack.c.l.s4 1983009808
          %v1963 = vunpack.c.0.s8 %v1962
          %v1964 = vperm.slane %v1960, %v1963
          %v1965 = vrot.slane %v1964, 4
          %v1966 = vsel %vm1535, %v1965, %v1958
          %v1968 = vunpack.c.l.s4 1934713408
          %v1969 = vunpack.c.0.s8 %v1968
          %v1970 = vperm.slane %v1966, %v1969
          %v1971 = vsel %vm1535, %v1914, %v1907
          %v1973 = vunpack.c.l.s4 1983009808
          %v1974 = vunpack.c.0.s8 %v1973
          %v1975 = vperm.slane %v1971, %v1974
          %v1976 = vrot.slane %v1915, 4
          %v1977 = vsel %vm1535, %v1976, %v1913
          %v1979 = vunpack.c.l.s4 1983009808
          %v1980 = vunpack.c.0.s8 %v1979
          %v1981 = vperm.slane %v1977, %v1980
          %v1982 = vrot.slane %v1981, 4
          %v1983 = vsel %vm1535, %v1982, %v1975
          %v1985 = vunpack.c.l.s4 1934713408
          %v1986 = vunpack.c.0.s8 %v1985
          %v1987 = vperm.slane %v1983, %v1986
          %v1988 = vsel %vm1535, %v1933, %v1926
          %v1990 = vunpack.c.l.s4 1983009808
          %v1991 = vunpack.c.0.s8 %v1990
          %v1992 = vperm.slane %v1988, %v1991
          %v1993 = vrot.slane %v1934, 4
          %v1994 = vsel %vm1535, %v1993, %v1932
          %v1996 = vunpack.c.l.s4 1983009808
          %v1997 = vunpack.c.0.s8 %v1996
          %v1998 = vperm.slane %v1994, %v1997
          %v1999 = vrot.slane %v1998, 4
          %v2000 = vsel %vm1535, %v1999, %v1992
          %v2002 = vunpack.c.l.s4 1934713408
          %v2003 = vunpack.c.0.s8 %v2002
          %v2004 = vperm.slane %v2000, %v2003
          %v2005 = vsel %vm1535, %v1952, %v1945
          %v2007 = vunpack.c.l.s4 1983009808
          %v2008 = vunpack.c.0.s8 %v2007
          %v2009 = vperm.slane %v2005, %v2008
          %v2010 = vrot.slane %v1953, 4
          %v2011 = vsel %vm1535, %v2010, %v1951
          %v2013 = vunpack.c.l.s4 1983009808
          %v2014 = vunpack.c.0.s8 %v2013
          %v2015 = vperm.slane %v2011, %v2014
          %v2016 = vrot.slane %v2015, 4
          %v2017 = vsel %vm1535, %v2016, %v2009
          %v2019 = vunpack.c.l.s4 1934713408
          %v2020 = vunpack.c.0.s8 %v2019
          %v2021 = vperm.slane %v2017, %v2020
          %v2024 = vpack.i.b16 %v1987, %v1970
          %v2025 = vshrl.u32 %v1970, 16
          %v2026 = vshrl.u32 %v1987, 16
          %v2027 = vpack.i.b16 %v2026, %v2025
          %v2030 = vpack.i.b16 %v2021, %v2004
          %v2031 = vshrl.u32 %v2004, 16
          %v2032 = vshrl.u32 %v2021, 16
          %v2033 = vpack.i.b16 %v2032, %v2031
          %v2034 = vunpack.c.l.b16 %v1676
          %v2035 = vunpack.c.l.b16 %v1682
          %v2036 = vpack.c.b16 %v2035, %v2034
          %v2037 = vunpack.c.l.b16 %v1850
          %v2038 = vunpack.c.l.b16 %v1856
          %v2039 = vpack.c.b16 %v2038, %v2037
          %vm2040 = vcmask 523264
          %v2042 = vsel %vm2040, %v2036, 0
          %v2045 = vsel %vm2040, %v2039, 0
          %2047 = vmatpush.bf16.xpose.msra.mxu0 0
          %2048 = vmatpush.bf16.xpose.msra.mxu0 0
          %2049 = vmatpush.bf16.xpose.msra.mxu0 0
          %2050 = vmatpush.bf16.xpose.msra.mxu0 0
          %2051 = vmatpush.bf16.xpose.msra.mxu0 0
          %2052 = vmatpush.bf16.xpose.msra.mxu0 0
          %2053 = vmatpush.bf16.xpose.msra.mxu0 0
          %2054 = vmatpush.bf16.xpose.msra.mxu0 %v2045
          %2055 = vmatmul.bf16.gmra.mxu0 %v2042
          %v2056 = vpop.f32.mrf.mxu0
          %v2057 = vadd.f32 0.0, %v2056
          %v2058 = vpop.f32.mrf.mxu0
          %v2059 = vadd.f32 0.0, %v2058
          %2060 = vdwg.mxu0
          %v2061 = vunpack.c.l.b16 %v1679
          %v2062 = vunpack.c.l.b16 %v1685
          %v2063 = vpack.c.b16 %v2062, %v2061
          %v2064 = vunpack.c.l.b16 %v1853
          %v2065 = vunpack.c.l.b16 %v1859
          %v2066 = vpack.c.b16 %v2065, %v2064
          %v2068 = vsel %vm2040, %v2063, 0
          %v2071 = vsel %vm2040, %v2066, 0
          %2073 = vmatpush.bf16.xpose.msra.mxu0 0
          %2074 = vmatpush.bf16.xpose.msra.mxu0 0
          %2075 = vmatpush.bf16.xpose.msra.mxu0 0
          %2076 = vmatpush.bf16.xpose.msra.mxu0 0
          %2077 = vmatpush.bf16.xpose.msra.mxu0 0
          %2078 = vmatpush.bf16.xpose.msra.mxu0 0
          %2079 = vmatpush.bf16.xpose.msra.mxu0 0
          %2080 = vmatpush.bf16.xpose.msra.mxu0 %v2071
          %2081 = vmatmul.bf16.gmra.mxu0 %v2068
          %v2082 = vpop.f32.mrf.mxu0
          %v2083 = vadd.f32 0.0, %v2082
          %v2084 = vpop.f32.mrf.mxu0
          %v2085 = vadd.f32 0.0, %v2084
          %2086 = vdwg.mxu0
          %v2087 = vsel %vm1509, 1, 0
          %v2088 = vsel %vm1510, 1, 0
          %vm2089 = vcmp.eq.s32.totalorder %v2087, 1
          %vm2090 = vcmp.eq.s32.totalorder %v2088, 1
          %v2091 = vsel %vm2089, %v2057, -1e+09
          %v2092 = vsel %vm2090, %v2059, -1e+09
          %v2093 = vsel %vm2089, %v2083, -1e+09
          %v2094 = vsel %vm2090, %v2085, -1e+09
          %vm2095 = vcmask 130048
          %v2096 = vsel %vm2095, %v2091, -inf
          %2097 = vmax.xlane.f32.xlu0 %v2096
          %v2098 = vpop.xlane.xlu0 %2097
          %v2099 = vsel %vm2095, %v2092, -inf
          %2100 = vmax.xlane.f32.xlu0 %v2099
          %v2101 = vpop.xlane.xlu0 %2100
          %v2102 = vsel %vm2095, %v2093, -inf
          %2103 = vmax.xlane.f32.xlu0 %v2102
          %v2104 = vpop.xlane.xlu0 %2103
          %v2105 = vsel %vm2095, %v2094, -inf
          %2106 = vmax.xlane.f32.xlu0 %v2105
          %v2107 = vpop.xlane.xlu0 %2106
          %v2108 = vsub.f32 %v2091, %v2098
          %v2109 = vsub.f32 %v2092, %v2101
          %v2110 = vsub.f32 %v2093, %v2104
          %v2111 = vsub.f32 %v2094, %v2107
          %v2112 = vmul.f32 %v2108, 1.442695
          %v2113 = vpow.pop %v2112
          %v2114 = vmul.f32 %v2109, 1.442695
          %v2115 = vpow.pop %v2114
          %v2116 = vmul.f32 %v2110, 1.442695
          %v2117 = vpow.pop %v2116
          %v2118 = vmul.f32 %v2111, 1.442695
          %v2119 = vpow.pop %v2118
          %v2120 = vsel %vm2095, %v2113, 0.0
          %2121 = vadd.xlane.f32.xlu0 %v2120
          %v2122 = vpop.xlane.xlu0 %2121
          %v2123 = vsel %vm2095, %v2115, 0.0
          %2124 = vadd.xlane.f32.xlu0 %v2123
          %v2125 = vpop.xlane.xlu0 %2124
          %v2126 = vsel %vm2095, %v2117, 0.0
          %2127 = vadd.xlane.f32.xlu0 %v2126
          %v2128 = vpop.xlane.xlu0 %2127
          %v2129 = vsel %vm2095, %v2119, 0.0
          %2130 = vadd.xlane.f32.xlu0 %v2129
          %v2131 = vpop.xlane.xlu0 %2130
          %v2132 = vrcp.pop %v2122
          %v2133 = vrcp.pop %v2125
          %v2134 = vrcp.pop %v2128
          %v2135 = vrcp.pop %v2131
          %v2136 = vmul.f32 %v2113, %v2132
          %v2137 = vmul.f32 %v2115, %v2133
          %v2138 = vmul.f32 %v2117, %v2134
          %v2139 = vmul.f32 %v2119, %v2135
          %v2140 = vpack.c.bf16 %v2136, %v2136
          %v2141 = vpack.c.bf16 %v2137, %v2137
          %v2142 = vpack.c.bf16 %v2138, %v2138
          %v2143 = vpack.c.bf16 %v2139, %v2139
          %v2146 = vunpack.c.l.b16 %v2140
          %v2147 = vunpack.c.l.b16 %v2141
          %v2148 = vpack.c.b16 %v2147, %v2146
          %v2149 = vunpack.c.l.b16 %v2024
          %v2150 = vunpack.c.l.b16 %v2030
          %v2151 = vpack.c.b16 %v2150, %v2149
          %v2154 = vsel %vm2095, %v2148, 0
          %2156 = vmatpush.bf16.msra.mxu0 0
          %2157 = vmatpush.bf16.msra.mxu0 0
          %2158 = vmatpush.bf16.msra.mxu0 0
          %2159 = vmatpush.bf16.msra.mxu0 0
          %2160 = vmatpush.bf16.msra.mxu0 0
          %2161 = vmatpush.bf16.msra.mxu0 0
          %2162 = vmatpush.bf16.msra.mxu0 0
          %2163 = vmatpush.bf16.msra.mxu0 %v2151
          %2164 = vmatmul.bf16.gmra.mxu0 %v2154
          %v2165 = vpop.f32.mrf.mxu0
          %v2166 = vadd.f32 0.0, %v2165
          %v2167 = vpop.f32.mrf.mxu0
          %v2168 = vadd.f32 0.0, %v2167
          %2169 = vdwg.mxu0
          %v2172 = vunpack.c.l.b16 %v2142
          %v2173 = vunpack.c.l.b16 %v2143
          %v2174 = vpack.c.b16 %v2173, %v2172
          %v2175 = vunpack.c.l.b16 %v2027
          %v2176 = vunpack.c.l.b16 %v2033
          %v2177 = vpack.c.b16 %v2176, %v2175
          %v2180 = vsel %vm2095, %v2174, 0
          %2182 = vmatpush.bf16.msra.mxu0 0
          %2183 = vmatpush.bf16.msra.mxu0 0
          %2184 = vmatpush.bf16.msra.mxu0 0
          %2185 = vmatpush.bf16.msra.mxu0 0
          %2186 = vmatpush.bf16.msra.mxu0 0
          %2187 = vmatpush.bf16.msra.mxu0 0
          %2188 = vmatpush.bf16.msra.mxu0 0
          %2189 = vmatpush.bf16.msra.mxu0 %v2177
          %2190 = vmatmul.bf16.gmra.mxu0 %v2180
          %v2191 = vpop.f32.mrf.mxu0
          %v2192 = vadd.f32 0.0, %v2191
          %v2193 = vpop.f32.mrf.mxu0
          %v2194 = vadd.f32 0.0, %v2193
          %2195 = vdwg.mxu0
          %v2196 = vpack.c.bf16 %v2166, %v2166
          %v2197 = vpack.c.bf16 %v2168, %v2168
          %v2198 = vpack.c.bf16 %v2192, %v2192
          %v2199 = vpack.c.bf16 %v2194, %v2194
          %v2202 = vpack.i.b16 %v2198, %v2196
          %v2203 = vshrl.u32 %v2196, 16
          %v2204 = vshrl.u32 %v2198, 16
          %v2205 = vpack.i.b16 %v2204, %v2203
          %v2208 = vpack.i.b16 %v2199, %v2197
          %v2209 = vshrl.u32 %v2197, 16
          %v2210 = vshrl.u32 %v2199, 16
          %v2211 = vpack.i.b16 %v2210, %v2209
          %v2214 = vunpack.c.l.s4 1983009808
          %v2215 = vunpack.c.0.s8 %v2214
          %v2216 = vperm.slane %v2202, %v2215
          %v2217 = vrot.slane %v2216, 4
          %v2218 = vsel %vm1535, 0, %v2217
          %v2220 = vunpack.c.l.s4 1934713408
          %v2221 = vunpack.c.0.s8 %v2220
          %v2222 = vperm.slane %v2216, %v2221
          %v2224 = vunpack.c.l.s4 1934713408
          %v2225 = vunpack.c.0.s8 %v2224
          %v2226 = vperm.slane %v2218, %v2225
          %v2227 = vrot.slane %v2222, 4
          %v2228 = vsel %vm1535, 0, %v2227
          %v2229 = vrot.slane %v2226, 4
          %v2230 = vsel %vm1535, 0, %v2229
          %v2233 = vunpack.c.l.s4 1983009808
          %v2234 = vunpack.c.0.s8 %v2233
          %v2235 = vperm.slane %v2205, %v2234
          %v2236 = vrot.slane %v2235, 4
          %v2237 = vsel %vm1535, 0, %v2236
          %v2239 = vunpack.c.l.s4 1934713408
          %v2240 = vunpack.c.0.s8 %v2239
          %v2241 = vperm.slane %v2235, %v2240
          %v2243 = vunpack.c.l.s4 1934713408
          %v2244 = vunpack.c.0.s8 %v2243
          %v2245 = vperm.slane %v2237, %v2244
          %v2246 = vrot.slane %v2241, 4
          %v2247 = vsel %vm1535, 0, %v2246
          %v2248 = vrot.slane %v2245, 4
          %v2249 = vsel %vm1535, 0, %v2248
          %v2252 = vunpack.c.l.s4 1983009808
          %v2253 = vunpack.c.0.s8 %v2252
          %v2254 = vperm.slane %v2208, %v2253
          %v2255 = vrot.slane %v2254, 4
          %v2256 = vsel %vm1535, 0, %v2255
          %v2258 = vunpack.c.l.s4 1934713408
          %v2259 = vunpack.c.0.s8 %v2258
          %v2260 = vperm.slane %v2254, %v2259
          %v2262 = vunpack.c.l.s4 1934713408
          %v2263 = vunpack.c.0.s8 %v2262
          %v2264 = vperm.slane %v2256, %v2263
          %v2265 = vrot.slane %v2260, 4
          %v2266 = vsel %vm1535, 0, %v2265
          %v2267 = vrot.slane %v2264, 4
          %v2268 = vsel %vm1535, 0, %v2267
          %v2271 = vunpack.c.l.s4 1983009808
          %v2272 = vunpack.c.0.s8 %v2271
          %v2273 = vperm.slane %v2211, %v2272
          %v2274 = vrot.slane %v2273, 4
          %v2275 = vsel %vm1535, 0, %v2274
          %v2277 = vunpack.c.l.s4 1934713408
          %v2278 = vunpack.c.0.s8 %v2277
          %v2279 = vperm.slane %v2273, %v2278
          %v2281 = vunpack.c.l.s4 1934713408
          %v2282 = vunpack.c.0.s8 %v2281
          %v2283 = vperm.slane %v2275, %v2282
          %v2284 = vrot.slane %v2279, 4
          %v2285 = vsel %vm1535, 0, %v2284
          %v2286 = vrot.slane %v2283, 4
          %v2287 = vsel %vm1535, 0, %v2286
          %v2288 = vsel %vm1535, %v2229, %v2222
          %v2290 = vunpack.c.l.s4 1983009808
          %v2291 = vunpack.c.0.s8 %v2290
          %v2292 = vperm.slane %v2288, %v2291
          %v2293 = vrot.slane %v2230, 4
          %v2294 = vsel %vm1535, %v2293, %v2228
          %v2296 = vunpack.c.l.s4 1983009808
          %v2297 = vunpack.c.0.s8 %v2296
          %v2298 = vperm.slane %v2294, %v2297
          %v2299 = vrot.slane %v2298, 4
          %v2300 = vsel %vm1535, %v2299, %v2292
          %v2302 = vunpack.c.l.s4 1934713408
          %v2303 = vunpack.c.0.s8 %v2302
          %v2304 = vperm.slane %v2300, %v2303
          %v2305 = vsel %vm1535, %v2248, %v2241
          %v2307 = vunpack.c.l.s4 1983009808
          %v2308 = vunpack.c.0.s8 %v2307
          %v2309 = vperm.slane %v2305, %v2308
          %v2310 = vrot.slane %v2249, 4
          %v2311 = vsel %vm1535, %v2310, %v2247
          %v2313 = vunpack.c.l.s4 1983009808
          %v2314 = vunpack.c.0.s8 %v2313
          %v2315 = vperm.slane %v2311, %v2314
          %v2316 = vrot.slane %v2315, 4
          %v2317 = vsel %vm1535, %v2316, %v2309
          %v2319 = vunpack.c.l.s4 1934713408
          %v2320 = vunpack.c.0.s8 %v2319
          %v2321 = vperm.slane %v2317, %v2320
          %v2322 = vsel %vm1535, %v2267, %v2260
          %v2324 = vunpack.c.l.s4 1983009808
          %v2325 = vunpack.c.0.s8 %v2324
          %v2326 = vperm.slane %v2322, %v2325
          %v2327 = vrot.slane %v2268, 4
          %v2328 = vsel %vm1535, %v2327, %v2266
          %v2330 = vunpack.c.l.s4 1983009808
          %v2331 = vunpack.c.0.s8 %v2330
          %v2332 = vperm.slane %v2328, %v2331
          %v2333 = vrot.slane %v2332, 4
          %v2334 = vsel %vm1535, %v2333, %v2326
          %v2336 = vunpack.c.l.s4 1934713408
          %v2337 = vunpack.c.0.s8 %v2336
          %v2338 = vperm.slane %v2334, %v2337
          %v2339 = vsel %vm1535, %v2286, %v2279
          %v2341 = vunpack.c.l.s4 1983009808
          %v2342 = vunpack.c.0.s8 %v2341
          %v2343 = vperm.slane %v2339, %v2342
          %v2344 = vrot.slane %v2287, 4
          %v2345 = vsel %vm1535, %v2344, %v2285
          %v2347 = vunpack.c.l.s4 1983009808
          %v2348 = vunpack.c.0.s8 %v2347
          %v2349 = vperm.slane %v2345, %v2348
          %v2350 = vrot.slane %v2349, 4
          %v2351 = vsel %vm1535, %v2350, %v2343
          %v2353 = vunpack.c.l.s4 1934713408
          %v2354 = vunpack.c.0.s8 %v2353
          %v2355 = vperm.slane %v2351, %v2354
          %v2358 = vpack.i.b16 %v2321, %v2304
          %v2359 = vshrl.u32 %v2304, 16
          %v2360 = vshrl.u32 %v2321, 16
          %v2361 = vpack.i.b16 %v2360, %v2359
          %v2364 = vpack.i.b16 %v2355, %v2338
          %v2365 = vshrl.u32 %v2338, 16
          %v2366 = vshrl.u32 %v2355, 16
          %v2367 = vpack.i.b16 %v2366, %v2365
          %v2368 = vunpack.c.l.b16 %v2358
          %v2369 = vunpack.c.l.b16 %v2364
          %v2370 = vpack.c.b16 %v2369, %v2368
          %v2371 = vunpack.c.l.b16 %v2361
          %v2372 = vunpack.c.l.b16 %v2367
          %v2373 = vpack.c.b16 %v2372, %v2371
          %2374 = vrot.lane.b32.xlu0 %v2373, 64
          %v2375 = vpop.permute.xlu0 %2374
          %v2378 = vsel %vm2040, %v2370, %v2375
          %v2380 = vld [vmem:[%s981] sm:$0xf]
          %v2381 = vld [vmem:[%s981 + $0x4] sm:$0xf]
          %v2382 = vld [vmem:[%s981 + $0x8] sm:$0xf]
          %v2383 = vld [vmem:[%s981 + $0xc] sm:$0xf]
          %v2384 = vld [vmem:[%s981 + $0x10] sm:$0xf]
          %v2385 = vld [vmem:[%s981 + $0x14] sm:$0xf]
          %v2386 = vld [vmem:[%s981 + $0x18] sm:$0xf]
          %v2387 = vld [vmem:[%s981 + $0x1c] sm:$0xf]
          %v2388 = vld [vmem:[%s981 + $0x20] sm:$0xf]
          %v2389 = vld [vmem:[%s981 + $0x24] sm:$0xf]
          %v2390 = vld [vmem:[%s981 + $0x28] sm:$0xf]
          %v2391 = vld [vmem:[%s981 + $0x2c] sm:$0xf]
          %v2392 = vld [vmem:[%s981 + $0x30] sm:$0xf]
          %v2393 = vld [vmem:[%s981 + $0x34] sm:$0xf]
          %v2394 = vld [vmem:[%s981 + $0x38] sm:$0xf]
          %v2395 = vld [vmem:[%s981 + $0x3c] sm:$0xf]
          %v2396 = vld [vmem:[%s990] sm:$0x1]
          %v2398 = vperm.slane %v2396, 0
          %v2416 = vunpack.c.l.b16 %v2380
          %v2417 = vunpack.c.l.b16 %v2381
          %v2418 = vunpack.c.l.b16 %v2382
          %v2419 = vunpack.c.l.b16 %v2383
          %v2420 = vunpack.c.l.b16 %v2384
          %v2421 = vunpack.c.l.b16 %v2385
          %v2422 = vunpack.c.l.b16 %v2386
          %v2423 = vunpack.c.l.b16 %v2387
          %v2424 = vunpack.c.l.b16 %v2388
          %v2425 = vunpack.c.l.b16 %v2389
          %v2426 = vunpack.c.l.b16 %v2390
          %v2427 = vunpack.c.l.b16 %v2391
          %v2428 = vunpack.c.l.b16 %v2392
          %v2429 = vunpack.c.l.b16 %v2393
          %v2430 = vunpack.c.l.b16 %v2394
          %v2431 = vunpack.c.l.b16 %v2395
          %v2432 = vpack.c.b16 %v2417, %v2416
          %v2433 = vpack.c.b16 %v2419, %v2418
          %v2434 = vpack.c.b16 %v2421, %v2420
          %v2435 = vpack.c.b16 %v2423, %v2422
          %v2436 = vpack.c.b16 %v2425, %v2424
          %v2437 = vpack.c.b16 %v2427, %v2426
          %v2438 = vpack.c.b16 %v2429, %v2428
          %v2439 = vpack.c.b16 %v2431, %v2430
          %2448 = vmatpush.bf16.msra.mxu0 %v2439
          %2449 = vmatpush.bf16.msra.mxu0 %v2438
          %2450 = vmatpush.bf16.msra.mxu0 %v2437
          %2451 = vmatpush.bf16.msra.mxu0 %v2436
          %2452 = vmatpush.bf16.msra.mxu0 %v2435
          %2453 = vmatpush.bf16.msra.mxu0 %v2434
          %2454 = vmatpush.bf16.msra.mxu0 %v2433
          %2455 = vmatpush.bf16.msra.mxu0 %v2432
          %2456 = vmatmul.bf16.gmra.mxu0 %v2378
          %v2457 = vpop.f32.mrf.mxu0
          %v2458 = vadd.f32 %v2398, %v2457
          %v2459 = vpop.f32.mrf.mxu0
          %v2460 = vadd.f32 %v2398, %v2459
          %2461 = vdwg.mxu0
          %v2462 = vadd.f32 %v1190, %v2458
          %v2463 = vadd.f32 %v1191, %v2460
          %2464 = vst [vmem:[%s1151] sm:$0xff] %v2462
          %2465 = vst [vmem:[%s1151 + $0x8] sm:$0xff] %v2463
          %v2466 = vld [vmem:[%s999] sm:$0x1]
          %v2467 = vld [vmem:[%s1008] sm:$0x1]
          %2468 = vadd.xlane.f32.xlu0 %v2462
          %v2469 = vpop.xlane.xlu0 %2468
          %2470 = vadd.xlane.f32.xlu0 %v2463
          %v2471 = vpop.xlane.xlu0 %2470
          %v2472 = vmul.f32 %v2469, %v1204
          %v2473 = vmul.f32 %v2471, %v1204
          %v2474 = vsub.f32 %v2462, %v2472
          %v2475 = vsub.f32 %v2463, %v2473
          %v2476 = vmul.f32 %v2474, %v2474
          %v2477 = vmul.f32 %v2475, %v2475
          %2478 = vadd.xlane.f32.xlu0 %v2476
          %v2479 = vpop.xlane.xlu0 %2478
          %2480 = vadd.xlane.f32.xlu0 %v2477
          %v2481 = vpop.xlane.xlu0 %2480
          %v2482 = vmul.f32 %v2479, %v1204
          %v2483 = vmul.f32 %v2481, %v1204
          %v2484 = vadd.f32 %v2482, 1e-05
          %v2485 = vadd.f32 %v2483, 1e-05
          %v2486 = vrsqrt.pop %v2484
          %v2487 = vmul.f32 %v2486, %v2484
          %v2488 = vmul.f32 %v2487, %v2486
          %v2489 = vmul.f32 0.5, %v2488
          %v2490 = vsub.f32 1.5, %v2489
          %v2491 = vmul.f32 %v2486, %v2490
          %vm2492 = vweird.f32 %v2484
          %vm2493 = vweird.f32 %v2486
          %vm2494 = vmor %vm2492, %vm2493
          %v2495 = vsel %vm2494, %v2486, %v2491
          %v2496 = vrsqrt.pop %v2485
          %v2497 = vmul.f32 %v2496, %v2485
          %v2498 = vmul.f32 %v2497, %v2496
          %v2499 = vmul.f32 0.5, %v2498
          %v2500 = vsub.f32 1.5, %v2499
          %v2501 = vmul.f32 %v2496, %v2500
          %vm2502 = vweird.f32 %v2485
          %vm2503 = vweird.f32 %v2496
          %vm2504 = vmor %vm2502, %vm2503
          %v2505 = vsel %vm2504, %v2496, %v2501
          %v2506 = vmul.f32 %v2474, %v2495
          %v2507 = vmul.f32 %v2475, %v2505
          %v2509 = vperm.slane %v2466, 0
          %v2511 = vmul.f32 %v2506, %v2509
          %v2512 = vmul.f32 %v2507, %v2509
          %v2514 = vperm.slane %v2467, 0
          %v2516 = vadd.f32 %v2511, %v2514
          %v2517 = vadd.f32 %v2512, %v2514
          %v2518 = vpack.c.bf16 %v2516, %v2516
          %v2519 = vpack.c.bf16 %v2517, %v2517
          %2520 = vst [vmem:[#allocation2] sm:$0xf] %v2518
          %2521 = vst [vmem:[#allocation2 + $0x4] sm:$0xf] %v2519
        $region152: #{tpu_custom_call.1} parent=87 // pred_fallthru
          _
        %v2522 = vld [vmem:[#allocation2] sm:$0xf]
        %v2523 = vld [vmem:[#allocation2 + $0x4] sm:$0xf]
        %v2524 = vld [vmem:[%s1018] sm:$0xff]
        %v2525 = vld [vmem:[%s1018 + $0x8] sm:$0xff]
        %v2526 = vld [vmem:[%s1018 + $0x10] sm:$0xff]
        %v2527 = vld [vmem:[%s1018 + $0x18] sm:$0xff]
        %v2528 = vld [vmem:[%s1018 + $0x20] sm:$0xff]
        %v2529 = vld [vmem:[%s1018 + $0x28] sm:$0xff]
        %v2530 = vld [vmem:[%s1018 + $0x30] sm:$0xff]
        %v2531 = vld [vmem:[%s1018 + $0x38] sm:$0xff]
        %v2532 = vld [vmem:[%s1018 + $0x40] sm:$0xff]
        %v2533 = vld [vmem:[%s1018 + $0x48] sm:$0xff]
        %v2534 = vld [vmem:[%s1018 + $0x50] sm:$0xff]
        %v2535 = vld [vmem:[%s1018 + $0x58] sm:$0xff]
        %v2536 = vld [vmem:[%s1018 + $0x60] sm:$0xff]
        %v2537 = vld [vmem:[%s1018 + $0x68] sm:$0xff]
        %v2538 = vld [vmem:[%s1018 + $0x70] sm:$0xff]
        %v2539 = vld [vmem:[%s1018 + $0x78] sm:$0xff]
        %v2540 = vld [vmem:[%s1170] sm:$0x3]
        %v2542 = vperm.slane %v2540, 0
        %v2543 = vperm.slane %v2540, 1
        %v2548 = vunpack.c.l.b16 %v2522
        %v2549 = vunpack.c.l.b16 %v2523
        %v2550 = vpack.c.b16 %v2549, %v2548
        %v2568 = vunpack.c.l.b16 %v2524
        %v2569 = vunpack.c.h.b16 %v2524
        %v2570 = vunpack.c.l.b16 %v2525
        %v2571 = vunpack.c.h.b16 %v2525
        %v2572 = vunpack.c.l.b16 %v2526
        %v2573 = vunpack.c.h.b16 %v2526
        %v2574 = vunpack.c.l.b16 %v2527
        %v2575 = vunpack.c.h.b16 %v2527
        %v2576 = vunpack.c.l.b16 %v2528
        %v2577 = vunpack.c.h.b16 %v2528
        %v2578 = vunpack.c.l.b16 %v2529
        %v2579 = vunpack.c.h.b16 %v2529
        %v2580 = vunpack.c.l.b16 %v2530
        %v2581 = vunpack.c.h.b16 %v2530
        %v2582 = vunpack.c.l.b16 %v2531
        %v2583 = vunpack.c.h.b16 %v2531
        %v2584 = vunpack.c.l.b16 %v2532
        %v2585 = vunpack.c.h.b16 %v2532
        %v2586 = vunpack.c.l.b16 %v2533
        %v2587 = vunpack.c.h.b16 %v2533
        %v2588 = vunpack.c.l.b16 %v2534
        %v2589 = vunpack.c.h.b16 %v2534
        %v2590 = vunpack.c.l.b16 %v2535
        %v2591 = vunpack.c.h.b16 %v2535
        %v2592 = vunpack.c.l.b16 %v2536
        %v2593 = vunpack.c.h.b16 %v2536
        %v2594 = vunpack.c.l.b16 %v2537
        %v2595 = vunpack.c.h.b16 %v2537
        %v2596 = vunpack.c.l.b16 %v2538
        %v2597 = vunpack.c.h.b16 %v2538
        %v2598 = vunpack.c.l.b16 %v2539
        %v2599 = vunpack.c.h.b16 %v2539
        %v2600 = vpack.c.b16 %v2570, %v2568
        %v2601 = vpack.c.b16 %v2571, %v2569
        %v2602 = vpack.c.b16 %v2574, %v2572
        %v2603 = vpack.c.b16 %v2575, %v2573
        %v2604 = vpack.c.b16 %v2578, %v2576
        %v2605 = vpack.c.b16 %v2579, %v2577
        %v2606 = vpack.c.b16 %v2582, %v2580
        %v2607 = vpack.c.b16 %v2583, %v2581
        %v2608 = vpack.c.b16 %v2586, %v2584
        %v2609 = vpack.c.b16 %v2587, %v2585
        %v2610 = vpack.c.b16 %v2590, %v2588
        %v2611 = vpack.c.b16 %v2591, %v2589
        %v2612 = vpack.c.b16 %v2594, %v2592
        %v2613 = vpack.c.b16 %v2595, %v2593
        %v2614 = vpack.c.b16 %v2598, %v2596
        %v2615 = vpack.c.b16 %v2599, %v2597
        %2632 = vmatpush.bf16.msra.mxu0 %v2614
        %2633 = vmatpush.bf16.msra.mxu0 %v2612
        %2634 = vmatpush.bf16.msra.mxu0 %v2610
        %2635 = vmatpush.bf16.msra.mxu0 %v2608
        %2636 = vmatpush.bf16.msra.mxu0 %v2606
        %2637 = vmatpush.bf16.msra.mxu0 %v2604
        %2638 = vmatpush.bf16.msra.mxu0 %v2602
        %2639 = vmatpush.bf16.msra.mxu0 %v2600
        %2640 = vmatmul.bf16.gmra.mxu0 %v2550
        %v2641 = vpop.f32.mrf.mxu0
        %v2642 = vadd.f32 %v2542, %v2641
        %v2643 = vpop.f32.mrf.mxu0
        %v2644 = vadd.f32 %v2542, %v2643
        %2645 = vdwg.mxu0
        %2646 = vmatpush.bf16.msra.mxu0 %v2615
        %2647 = vmatpush.bf16.msra.mxu0 %v2613
        %2648 = vmatpush.bf16.msra.mxu0 %v2611
        %2649 = vmatpush.bf16.msra.mxu0 %v2609
        %2650 = vmatpush.bf16.msra.mxu0 %v2607
        %2651 = vmatpush.bf16.msra.mxu0 %v2605
        %2652 = vmatpush.bf16.msra.mxu0 %v2603
        %2653 = vmatpush.bf16.msra.mxu0 %v2601
        %2654 = vmatmul.bf16.gmra.mxu0 %v2550
        %v2655 = vpop.f32.mrf.mxu0
        %v2656 = vadd.f32 %v2543, %v2655
        %v2657 = vpop.f32.mrf.mxu0
        %v2658 = vadd.f32 %v2543, %v2657
        %2659 = vdwg.mxu0
        %v2660 = vmul.f32 %v2642, 0.5
        %v2661 = vmul.f32 %v2656, 0.5
        %v2662 = vmul.f32 %v2644, 0.5
        %v2663 = vmul.f32 %v2658, 0.5
        %v2664 = vmul.f32 %v2642, 0.70710677
        %v2665 = vmul.f32 %v2656, 0.70710677
        %v2666 = vmul.f32 %v2644, 0.70710677
        %v2667 = vmul.f32 %v2658, 0.70710677
        %v2668 = vmul.f32 %v2664, %v2664
        %v2669 = vmin.f32 16.0, %v2668
        %v2670 = vmul.f32 %v2669, 2.1237322e-06
        %v2671 = vadd.f32 %v2670, 0.00028619796
        %v2672 = vmul.f32 %v2669, %v2671
        %v2673 = vadd.f32 %v2672, 0.0036580483
        %v2674 = vmul.f32 %v2669, %v2673
        %v2675 = vadd.f32 %v2674, 0.05243302
        %v2676 = vmul.f32 %v2669, %v2675
        %v2677 = vadd.f32 %v2676, 0.18741608
        %v2678 = vmul.f32 %v2669, %v2677
        %v2679 = vadd.f32 %v2678, 1.1283791
        %v2680 = vmul.f32 %v2664, %v2679
        %v2681 = vmul.f32 %v2669, 3.8918573e-05
        %v2682 = vadd.f32 %v2681, 0.001143296
        %v2683 = vmul.f32 %v2669, %v2682
        %v2684 = vadd.f32 %v2683, 0.014752088
        %v2685 = vmul.f32 %v2669, %v2684
        %v2686 = vadd.f32 %v2685, 0.112945676
        %v2687 = vmul.f32 %v2669, %v2686
        %v2688 = vadd.f32 %v2687, 0.4994258
        %v2689 = vmul.f32 %v2669, %v2688
        %v2690 = vadd.f32 %v2689, 1.0
        %v2691 = vrcp.pop %v2690
        %v2692 = vmul.f32 %v2690, %v2691
        %v2693 = vsub.f32 1.0, %v2692
        %v2694 = vmul.f32 %v2691, %v2693
        %v2695 = vadd.f32 %v2691, %v2694
        %vm2696 = vweird.f32 %v2690
        %vm2697 = vweird.f32 %v2691
        %vm2698 = vmor %vm2696, %vm2697
        %v2699 = vsel %vm2698, %v2691, %v2695
        %v2700 = vand.u32 2147483647, %v2690
        %vm2701 = vcmp.eq.f32.partialorder %v2700, 8.507059e+37
        %v2702 = vand.u32 %v2690, 2147483648
        %v2703 = vor.u32 1.1754944e-38, %v2702
        %v2704 = vsel %vm2701, %v2703, %v2699
        %v2705 = vmul.f32 %v2680, %v2704
        %v2706 = vmin.f32 %v2705, 1.0
        %v2707 = vmax.f32 %v2706, -1.0
        %v2708 = vmul.f32 %v2665, %v2665
        %v2709 = vmin.f32 16.0, %v2708
        %v2710 = vmul.f32 %v2709, 2.1237322e-06
        %v2711 = vadd.f32 %v2710, 0.00028619796
        %v2712 = vmul.f32 %v2709, %v2711
        %v2713 = vadd.f32 %v2712, 0.0036580483
        %v2714 = vmul.f32 %v2709, %v2713
        %v2715 = vadd.f32 %v2714, 0.05243302
        %v2716 = vmul.f32 %v2709, %v2715
        %v2717 = vadd.f32 %v2716, 0.18741608
        %v2718 = vmul.f32 %v2709, %v2717
        %v2719 = vadd.f32 %v2718, 1.1283791
        %v2720 = vmul.f32 %v2665, %v2719
        %v2721 = vmul.f32 %v2709, 3.8918573e-05
        %v2722 = vadd.f32 %v2721, 0.001143296
        %v2723 = vmul.f32 %v2709, %v2722
        %v2724 = vadd.f32 %v2723, 0.014752088
        %v2725 = vmul.f32 %v2709, %v2724
        %v2726 = vadd.f32 %v2725, 0.112945676
        %v2727 = vmul.f32 %v2709, %v2726
        %v2728 = vadd.f32 %v2727, 0.4994258
        %v2729 = vmul.f32 %v2709, %v2728
        %v2730 = vadd.f32 %v2729, 1.0
        %v2731 = vrcp.pop %v2730
        %v2732 = vmul.f32 %v2730, %v2731
        %v2733 = vsub.f32 1.0, %v2732
        %v2734 = vmul.f32 %v2731, %v2733
        %v2735 = vadd.f32 %v2731, %v2734
        %vm2736 = vweird.f32 %v2730
        %vm2737 = vweird.f32 %v2731
        %vm2738 = vmor %vm2736, %vm2737
        %v2739 = vsel %vm2738, %v2731, %v2735
        %v2740 = vand.u32 2147483647, %v2730
        %vm2741 = vcmp.eq.f32.partialorder %v2740, 8.507059e+37
        %v2742 = vand.u32 %v2730, 2147483648
        %v2743 = vor.u32 1.1754944e-38, %v2742
        %v2744 = vsel %vm2741, %v2743, %v2739
        %v2745 = vmul.f32 %v2720, %v2744
        %v2746 = vmin.f32 %v2745, 1.0
        %v2747 = vmax.f32 %v2746, -1.0
        %v2748 = vmul.f32 %v2666, %v2666
        %v2749 = vmin.f32 16.0, %v2748
        %v2750 = vmul.f32 %v2749, 2.1237322e-06
        %v2751 = vadd.f32 %v2750, 0.00028619796
        %v2752 = vmul.f32 %v2749, %v2751
        %v2753 = vadd.f32 %v2752, 0.0036580483
        %v2754 = vmul.f32 %v2749, %v2753
        %v2755 = vadd.f32 %v2754, 0.05243302
        %v2756 = vmul.f32 %v2749, %v2755
        %v2757 = vadd.f32 %v2756, 0.18741608
        %v2758 = vmul.f32 %v2749, %v2757
        %v2759 = vadd.f32 %v2758, 1.1283791
        %v2760 = vmul.f32 %v2666, %v2759
        %v2761 = vmul.f32 %v2749, 3.8918573e-05
        %v2762 = vadd.f32 %v2761, 0.001143296
        %v2763 = vmul.f32 %v2749, %v2762
        %v2764 = vadd.f32 %v2763, 0.014752088
        %v2765 = vmul.f32 %v2749, %v2764
        %v2766 = vadd.f32 %v2765, 0.112945676
        %v2767 = vmul.f32 %v2749, %v2766
        %v2768 = vadd.f32 %v2767, 0.4994258
        %v2769 = vmul.f32 %v2749, %v2768
        %v2770 = vadd.f32 %v2769, 1.0
        %v2771 = vrcp.pop %v2770
        %v2772 = vmul.f32 %v2770, %v2771
        %v2773 = vsub.f32 1.0, %v2772
        %v2774 = vmul.f32 %v2771, %v2773
        %v2775 = vadd.f32 %v2771, %v2774
        %vm2776 = vweird.f32 %v2770
        %vm2777 = vweird.f32 %v2771
        %vm2778 = vmor %vm2776, %vm2777
        %v2779 = vsel %vm2778, %v2771, %v2775
        %v2780 = vand.u32 2147483647, %v2770
        %vm2781 = vcmp.eq.f32.partialorder %v2780, 8.507059e+37
        %v2782 = vand.u32 %v2770, 2147483648
        %v2783 = vor.u32 1.1754944e-38, %v2782
        %v2784 = vsel %vm2781, %v2783, %v2779
        %v2785 = vmul.f32 %v2760, %v2784
        %v2786 = vmin.f32 %v2785, 1.0
        %v2787 = vmax.f32 %v2786, -1.0
        %v2788 = vmul.f32 %v2667, %v2667
        %v2789 = vmin.f32 16.0, %v2788
        %v2790 = vmul.f32 %v2789, 2.1237322e-06
        %v2791 = vadd.f32 %v2790, 0.00028619796
        %v2792 = vmul.f32 %v2789, %v2791
        %v2793 = vadd.f32 %v2792, 0.0036580483
        %v2794 = vmul.f32 %v2789, %v2793
        %v2795 = vadd.f32 %v2794, 0.05243302
        %v2796 = vmul.f32 %v2789, %v2795
        %v2797 = vadd.f32 %v2796, 0.18741608
        %v2798 = vmul.f32 %v2789, %v2797
        %v2799 = vadd.f32 %v2798, 1.1283791
        %v2800 = vmul.f32 %v2667, %v2799
        %v2801 = vmul.f32 %v2789, 3.8918573e-05
        %v2802 = vadd.f32 %v2801, 0.001143296
        %v2803 = vmul.f32 %v2789, %v2802
        %v2804 = vadd.f32 %v2803, 0.014752088
        %v2805 = vmul.f32 %v2789, %v2804
        %v2806 = vadd.f32 %v2805, 0.112945676
        %v2807 = vmul.f32 %v2789, %v2806
        %v2808 = vadd.f32 %v2807, 0.4994258
        %v2809 = vmul.f32 %v2789, %v2808
        %v2810 = vadd.f32 %v2809, 1.0
        %v2811 = vrcp.pop %v2810
        %v2812 = vmul.f32 %v2810, %v2811
        %v2813 = vsub.f32 1.0, %v2812
        %v2814 = vmul.f32 %v2811, %v2813
        %v2815 = vadd.f32 %v2811, %v2814
        %vm2816 = vweird.f32 %v2810
        %vm2817 = vweird.f32 %v2811
        %vm2818 = vmor %vm2816, %vm2817
        %v2819 = vsel %vm2818, %v2811, %v2815
        %v2820 = vand.u32 2147483647, %v2810
        %vm2821 = vcmp.eq.f32.partialorder %v2820, 8.507059e+37
        %v2822 = vand.u32 %v2810, 2147483648
        %v2823 = vor.u32 1.1754944e-38, %v2822
        %v2824 = vsel %vm2821, %v2823, %v2819
        %v2825 = vmul.f32 %v2800, %v2824
        %v2826 = vmin.f32 %v2825, 1.0
        %v2827 = vmax.f32 %v2826, -1.0
        %v2828 = vadd.f32 %v2707, 1.0
        %v2829 = vadd.f32 %v2747, 1.0
        %v2830 = vadd.f32 %v2787, 1.0
        %v2831 = vadd.f32 %v2827, 1.0
        %v2832 = vmul.f32 %v2660, %v2828
        %v2833 = vmul.f32 %v2661, %v2829
        %v2834 = vmul.f32 %v2662, %v2830
        %v2835 = vmul.f32 %v2663, %v2831
        %v2836 = vpack.c.bf16 %v2834, %v2832
        %v2837 = vpack.c.bf16 %v2835, %v2833
        %v2838 = vld [vmem:[%s1028] sm:$0xf]
        %v2839 = vld [vmem:[%s1028 + $0x4] sm:$0xf]
        %v2840 = vld [vmem:[%s1028 + $0x8] sm:$0xf]
        %v2841 = vld [vmem:[%s1028 + $0xc] sm:$0xf]
        %v2842 = vld [vmem:[%s1028 + $0x10] sm:$0xf]
        %v2843 = vld [vmem:[%s1028 + $0x14] sm:$0xf]
        %v2844 = vld [vmem:[%s1028 + $0x18] sm:$0xf]
        %v2845 = vld [vmem:[%s1028 + $0x1c] sm:$0xf]
        %v2846 = vld [vmem:[%s1028 + $0x20] sm:$0xf]
        %v2847 = vld [vmem:[%s1028 + $0x24] sm:$0xf]
        %v2848 = vld [vmem:[%s1028 + $0x28] sm:$0xf]
        %v2849 = vld [vmem:[%s1028 + $0x2c] sm:$0xf]
        %v2850 = vld [vmem:[%s1028 + $0x30] sm:$0xf]
        %v2851 = vld [vmem:[%s1028 + $0x34] sm:$0xf]
        %v2852 = vld [vmem:[%s1028 + $0x38] sm:$0xf]
        %v2853 = vld [vmem:[%s1028 + $0x3c] sm:$0xf]
        %v2854 = vld [vmem:[%s1028 + $0x40] sm:$0xf]
        %v2855 = vld [vmem:[%s1028 + $0x44] sm:$0xf]
        %v2856 = vld [vmem:[%s1028 + $0x48] sm:$0xf]
        %v2857 = vld [vmem:[%s1028 + $0x4c] sm:$0xf]
        %v2858 = vld [vmem:[%s1028 + $0x50] sm:$0xf]
        %v2859 = vld [vmem:[%s1028 + $0x54] sm:$0xf]
        %v2860 = vld [vmem:[%s1028 + $0x58] sm:$0xf]
        %v2861 = vld [vmem:[%s1028 + $0x5c] sm:$0xf]
        %v2862 = vld [vmem:[%s1028 + $0x60] sm:$0xf]
        %v2863 = vld [vmem:[%s1028 + $0x64] sm:$0xf]
        %v2864 = vld [vmem:[%s1028 + $0x68] sm:$0xf]
        %v2865 = vld [vmem:[%s1028 + $0x6c] sm:$0xf]
        %v2866 = vld [vmem:[%s1028 + $0x70] sm:$0xf]
        %v2867 = vld [vmem:[%s1028 + $0x74] sm:$0xf]
        %v2868 = vld [vmem:[%s1028 + $0x78] sm:$0xf]
        %v2869 = vld [vmem:[%s1028 + $0x7c] sm:$0xf]
        %v2902 = vunpack.c.l.b16 %v2838
        %v2903 = vunpack.c.l.b16 %v2839
        %v2904 = vunpack.c.l.b16 %v2840
        %v2905 = vunpack.c.l.b16 %v2841
        %v2906 = vunpack.c.l.b16 %v2842
        %v2907 = vunpack.c.l.b16 %v2843
        %v2908 = vunpack.c.l.b16 %v2844
        %v2909 = vunpack.c.l.b16 %v2845
        %v2910 = vunpack.c.l.b16 %v2846
        %v2911 = vunpack.c.l.b16 %v2847
        %v2912 = vunpack.c.l.b16 %v2848
        %v2913 = vunpack.c.l.b16 %v2849
        %v2914 = vunpack.c.l.b16 %v2850
        %v2915 = vunpack.c.l.b16 %v2851
        %v2916 = vunpack.c.l.b16 %v2852
        %v2917 = vunpack.c.l.b16 %v2853
        %v2918 = vunpack.c.l.b16 %v2854
        %v2919 = vunpack.c.l.b16 %v2855
        %v2920 = vunpack.c.l.b16 %v2856
        %v2921 = vunpack.c.l.b16 %v2857
        %v2922 = vunpack.c.l.b16 %v2858
        %v2923 = vunpack.c.l.b16 %v2859
        %v2924 = vunpack.c.l.b16 %v2860
        %v2925 = vunpack.c.l.b16 %v2861
        %v2926 = vunpack.c.l.b16 %v2862
        %v2927 = vunpack.c.l.b16 %v2863
        %v2928 = vunpack.c.l.b16 %v2864
        %v2929 = vunpack.c.l.b16 %v2865
        %v2930 = vunpack.c.l.b16 %v2866
        %v2931 = vunpack.c.l.b16 %v2867
        %v2932 = vunpack.c.l.b16 %v2868
        %v2933 = vunpack.c.l.b16 %v2869
        %v2934 = vpack.c.b16 %v2903, %v2902
        %v2935 = vpack.c.b16 %v2905, %v2904
        %v2936 = vpack.c.b16 %v2907, %v2906
        %v2937 = vpack.c.b16 %v2909, %v2908
        %v2938 = vpack.c.b16 %v2911, %v2910
        %v2939 = vpack.c.b16 %v2913, %v2912
        %v2940 = vpack.c.b16 %v2915, %v2914
        %v2941 = vpack.c.b16 %v2917, %v2916
        %v2942 = vpack.c.b16 %v2919, %v2918
        %v2943 = vpack.c.b16 %v2921, %v2920
        %v2944 = vpack.c.b16 %v2923, %v2922
        %v2945 = vpack.c.b16 %v2925, %v2924
        %v2946 = vpack.c.b16 %v2927, %v2926
        %v2947 = vpack.c.b16 %v2929, %v2928
        %v2948 = vpack.c.b16 %v2931, %v2930
        %v2949 = vpack.c.b16 %v2933, %v2932
        %2966 = vmatpush.bf16.msra.mxu0 %v2941
        %2967 = vmatpush.bf16.msra.mxu0 %v2940
        %2968 = vmatpush.bf16.msra.mxu0 %v2939
        %2969 = vmatpush.bf16.msra.mxu0 %v2938
        %2970 = vmatpush.bf16.msra.mxu0 %v2937
        %2971 = vmatpush.bf16.msra.mxu0 %v2936
        %2972 = vmatpush.bf16.msra.mxu0 %v2935
        %2973 = vmatpush.bf16.msra.mxu0 %v2934
        %2974 = vmatmul.bf16.gmra.mxu0 %v2836
        %v2975 = vpop.f32.mrf.mxu0
        %v2976 = vadd.f32 0.0, %v2975
        %v2977 = vpop.f32.mrf.mxu0
        %v2978 = vadd.f32 0.0, %v2977
        %2979 = vdwg.mxu0
        %2980 = vmatpush.bf16.msra.mxu0 %v2949
        %2981 = vmatpush.bf16.msra.mxu0 %v2948
        %2982 = vmatpush.bf16.msra.mxu0 %v2947
        %2983 = vmatpush.bf16.msra.mxu0 %v2946
        %2984 = vmatpush.bf16.msra.mxu0 %v2945
        %2985 = vmatpush.bf16.msra.mxu0 %v2944
        %2986 = vmatpush.bf16.msra.mxu0 %v2943
        %2987 = vmatpush.bf16.msra.mxu0 %v2942
        %2988 = vmatmul.bf16.gmra.mxu0 %v2837
        %v2989 = vpop.f32.mrf.mxu0
        %v2990 = vadd.f32 %v2976, %v2989
        %v2991 = vpop.f32.mrf.mxu0
        %v2992 = vadd.f32 %v2978, %v2991
        %2993 = vdwg.mxu0
        // Predicated region
        $region153: #{tpu_custom_call.1} parent=87 // pred_check
          %p2994 = pneg %p1178
        $region154: #{tpu_custom_call.1} parent=87 // pred_check_branch
          %2996 = sbr.rel (%p2994) target = $region156
        $region155: #{tpu_custom_call.1} parent=87 // pred_region
          %2997 = vst [vmem:[#allocation3] sm:$0xff] %v2990
          %2998 = vst [vmem:[#allocation3 + $0x8] sm:$0xff] %v2992
        $region156: #{tpu_custom_call.1} parent=87 // pred_fallthru
          _
        %p2999 = scmp.gt.s32.totalorder %s67, 0
        // Predicated region
        $region157: #{tpu_custom_call.1} parent=87 // pred_check
          %p3000 = pneg %p2999
        $region158: #{tpu_custom_call.1} parent=87 // pred_check_branch
          %3002 = sbr.rel (%p3000) target = $region160
        $region159: #{tpu_custom_call.1} parent=87 // pred_region
          %v3003 = vld [vmem:[#allocation3] sm:$0xff]
          %v3004 = vld [vmem:[#allocation3 + $0x8] sm:$0xff]
          %v3005 = vadd.f32 %v3003, %v2990
          %v3006 = vadd.f32 %v3004, %v2992
          %3007 = vst [vmem:[#allocation3] sm:$0xff] %v3005
          %3008 = vst [vmem:[#allocation3 + $0x8] sm:$0xff] %v3006
        $region160: #{tpu_custom_call.1} parent=87 // pred_fallthru
          _
        // Predicated region
        $region161: #{tpu_custom_call.1} parent=87 // pred_check
          %p3009 = pneg %p1178
        $region162: #{tpu_custom_call.1} parent=87 // pred_check_branch
          %3011 = sbr.rel (%p3009) target = $region164
        $region163: #{tpu_custom_call.1} parent=87 // pred_region
          %v3012 = vld [vmem:[%s1151] sm:$0xff]
          %v3013 = vld [vmem:[%s1151 + $0x8] sm:$0xff]
          %v3014 = vld [vmem:[#allocation3] sm:$0xff]
          %v3015 = vld [vmem:[#allocation3 + $0x8] sm:$0xff]
          %v3016 = vadd.f32 %v3012, %v3014
          %v3017 = vadd.f32 %v3013, %v3015
          %v3018 = vld [vmem:[%s1175] sm:$0x1]
          %v3020 = vperm.slane %v3018, 0
          %v3022 = vadd.f32 %v3016, %v3020
          %v3023 = vadd.f32 %v3017, %v3020
          %3024 = vst [vmem:[%s1151] sm:$0xff] %v3022
          %3025 = vst [vmem:[%s1151 + $0x8] sm:$0xff] %v3023
        $region164: #{tpu_custom_call.1} parent=87 // pred_fallthru
          _
        %p3026 = scmp.eq.s32.totalorder %s66, 1
        %p3027 = pnand %p1178, %p3026
        %p3028 = pneg %p3027
        // Predicated region
        $region165: #{tpu_custom_call.1} parent=87 // pred_check
          _
        $region166: #{tpu_custom_call.1} parent=87 // pred_check_branch
          %3030 = sbr.rel (%p3027) target = $region168
        $region167: #{tpu_custom_call.1} parent=87 // pred_region
          %v3031 = vld [vmem:[%s1151] sm:$0xff]
          %v3032 = vld [vmem:[%s1151 + $0x8] sm:$0xff]
          %3033 = vst [vmem:[%s1158] sm:$0xff] %v3031
          %3034 = vst [vmem:[%s1158 + $0x8] sm:$0xff] %v3032
        $region168: #{tpu_custom_call.1} parent=87 // pred_fallthru
          _
        %s3035 = sand.u32 %s535, 1
        %s3036 = scalar_lea.sflag [#allocation6], %s3035
        %s3037 = sand.u32 %s535, 1
        %s3038 = smul.addr %s3037, 16
        %s3039 = scalar_lea.vmem [#allocation27], %s3038
        %s3040 = sand.u32 %s561, 1
        %s3041 = scalar_lea.sflag [#allocation29], %s3040
        %s3042 = sand.u32 %s561, 1
        %s3043 = smul.addr %s3042, 16
        %s3044 = scalar_lea.vmem [#allocation28], %s3043
        // Predicated region
        $region169: #{tpu_custom_call.1} parent=87 // pred_check
          %p3045 = pneg %p545
        $region170: #{tpu_custom_call.1} parent=87 // pred_check_branch
          %3047 = sbr.rel (%p3045) target = $region172
        $region171: #{tpu_custom_call.1} parent=87 // pred_region
          %3049 = vsyncadd %s3036, 0
          %s3050 = smul.addr %s65, 2
          %s3051 = smul.addr %s3050, 8
          %s3052 = scalar_lea.hbm %s17, %s3051
          %s3053 = sshll.u32 %s3039, 4
          %s3054 = int_to_ptr.vmem [resolvable:$true] %s3053
          %s3055 = sshll.u32 %s3052, 4
          %s3056 = int_to_ptr.hbm [resolvable:$true] %s3055
          %3061 = dma.vmem_to_hbm [thread:$0]  %s3054, 256, %s3056, %s3036, 128, 128, 8
        $region172: #{tpu_custom_call.1} parent=87 // pred_fallthru
          _
        // Predicated region
        $region173: #{tpu_custom_call.1} parent=87 // pred_check
          %p3062 = pneg %p571
        $region174: #{tpu_custom_call.1} parent=87 // pred_check_branch
          %3064 = sbr.rel (%p3062) target = $region176
        $region175: #{tpu_custom_call.1} parent=87 // pred_region
          %3066 = vsyncadd %s3041, 0
          %s3067 = smul.addr %s65, 2
          %s3068 = smul.addr %s3067, 8
          %s3069 = scalar_lea.hbm %s18, %s3068
          %s3070 = sshll.u32 %s3044, 4
          %s3071 = int_to_ptr.vmem [resolvable:$true] %s3070
          %s3072 = sshll.u32 %s3069, 4
          %s3073 = int_to_ptr.hbm [resolvable:$true] %s3072
          %3078 = dma.vmem_to_hbm [thread:$0]  %s3071, 256, %s3073, %s3041, 128, 128, 8
        $region176: #{tpu_custom_call.1} parent=87 // pred_fallthru
          _
      $region88: #{tpu_custom_call.1} parent=5 // pred_fallthru
        _
      %p3079 = scmp.le.s32.totalorder 2, %s55
      // Predicated region
      $region177: #{tpu_custom_call.1} parent=5 // pred_check
        %p3080 = pneg %p3079
      $region178: #{tpu_custom_call.1} parent=5 // pred_check_branch
        %3082 = sbr.rel (%p3080) target = $region180
      $region179: #{tpu_custom_call.1} parent=5 // pred_region
        %s3083 = ssub.s32 %s55, 2
        // Predicated region
        $region181: #{tpu_custom_call.1} parent=179 // pred_check
          %p3084 = pneg %p551
        $region182: #{tpu_custom_call.1} parent=179 // pred_check_branch
          %3086 = sbr.rel (%p3084) target = $region184
        $region183: #{tpu_custom_call.1} parent=179 // pred_region
          %s3087 = sand.u32 %s536, 1
          %s3088 = scalar_lea.sflag [#allocation6], %s3087
          %s3089 = sand.u32 %s536, 1
          %s3090 = smul.addr %s3089, 16
          %s3091 = scalar_lea.vmem [#allocation27], %s3090
          %3093 = dma.done %s3088, 256
        $region184: #{tpu_custom_call.1} parent=179 // pred_fallthru
          _
        // Predicated region
        $region185: #{tpu_custom_call.1} parent=179 // pred_check
          %p3094 = pneg %p577
        $region186: #{tpu_custom_call.1} parent=179 // pred_check_branch
          %3096 = sbr.rel (%p3094) target = $region188
        $region187: #{tpu_custom_call.1} parent=179 // pred_region
          %s3097 = sand.u32 %s562, 1
          %s3098 = scalar_lea.sflag [#allocation29], %s3097
          %s3099 = sand.u32 %s562, 1
          %s3100 = smul.addr %s3099, 16
          %s3101 = scalar_lea.vmem [#allocation28], %s3100
          %3103 = dma.done %s3098, 256
        $region188: #{tpu_custom_call.1} parent=179 // pred_fallthru
          _
      $region180: #{tpu_custom_call.1} parent=5 // pred_fallthru
        _
    $region6: #{tpu_custom_call.1} parent=1 // loop_footer
      %s59 = sadd.s32 1, %s55
    $region7: #{tpu_custom_call.1} parent=1 // loop_footer_branch
      %54 = sbr.rel target = $region3
    $region8: #{tpu_custom_call.1} parent=1 // loop_exit
      _
    %3104 = vsyncpa [#allocation5], 1
    %s3105 = scalar_lea.sflag [#allocation5], 1
    %3106 = vsyncpa %s3105, 1
    %3107 = vsyncpa [#allocation8], 1
    %s3108 = scalar_lea.sflag [#allocation8], 1
    %3109 = vsyncpa %s3108, 1
    %3110 = vsyncpa [#allocation11], 1
    %s3111 = scalar_lea.sflag [#allocation11], 1
    %3112 = vsyncpa %s3111, 1
    %3113 = vsyncpa [#allocation14], 1
    %s3114 = scalar_lea.sflag [#allocation14], 1
    %3115 = vsyncpa %s3114, 1
    %3116 = vsyncpa [#allocation17], 1
    %s3117 = scalar_lea.sflag [#allocation17], 1
    %3118 = vsyncpa %s3117, 1
    %3119 = vsyncpa [#allocation20], 1
    %s3120 = scalar_lea.sflag [#allocation20], 1
    %3121 = vsyncpa %s3120, 1
    %3122 = vsyncpa [#allocation23], 1
    %s3123 = scalar_lea.sflag [#allocation23], 1
    %3124 = vsyncpa %s3123, 1
    %3125 = vsyncpa [#allocation26], 1
    %s3126 = scalar_lea.sflag [#allocation26], 1
    %3127 = vsyncpa %s3126, 1
    %3128 = vsyncpa [#allocation6], 1
    %s3129 = scalar_lea.sflag [#allocation6], 1
    %3130 = vsyncpa %s3129, 1
    %3131 = vsyncpa [#allocation29], 1
    %s3132 = scalar_lea.sflag [#allocation29], 1
    %3133 = vsyncpa %s3132, 1

</llo_original>
